<compile_context>
chip_gen: v7x
topology: tpu7x:2x2x1
jax: 0.10.0
libtpu: 0.0.40
codegen_flags: <defaults>
</compile_context>

<pallas_src>
import functools

import jax
import jax.numpy as jnp
import numpy as np
from jax.experimental import pallas as pl
from jax.experimental.pallas import tpu as pltpu

K = 7          # spatial-attention kernel size (fixed by the module)
PAD = K // 2


def _sigmoid(v):
    # sigmoid(v) == (1 + tanh(v/2)) / 2 ; numerically stable, runs on the EUP.
    return 0.5 * jnp.tanh(0.5 * v) + 0.5


def _tree_sum(terms):
    """Balanced-tree sum: exposes ILP to the 4 VALUs instead of a serial chain."""
    terms = list(terms)
    while len(terms) > 1:
        nxt = [terms[i] + terms[i + 1] for i in range(0, len(terms) - 1, 2)]
        if len(terms) % 2:
            nxt.append(terms[-1])
        terms = nxt
    return terms[0]


def _cbam_kernel(x_ref, w1_ref, b1_ref, w2_ref, b2_ref, wsp_ref, bsp_ref,
                 mask_ref, out_ref, *, W):
    # x_ref    : (Bt, C, HW)   VMEM (lane-dense: HW on lanes)
    # w1_ref   : (C, mid)      VMEM (transpose of torch conv1 weight)
    # b1_ref   : (1, mid)      VMEM
    # w2_ref   : (C, mid)      VMEM (torch conv2 weight)
    # b2_ref   : (C, 1)        VMEM
    # wsp_ref  : (2*K*K,)      SMEM (7x7 spatial-conv weights, flat [c,i,j])
    # bsp_ref  : (1,)          SMEM
    # mask_ref : (K, HW)       VMEM (row-wrap validity mask per column offset)
    # out_ref  : (Bt, C, HW)   VMEM
    Bt, C, HW = x_ref.shape
    OFF = PAD * (W + 1)            # zero pad on each side of the flat maps
    SLC = HW + 2 * PAD             # width of each row-shifted slice

    x = x_ref[...].astype(jnp.float32)                               # (Bt,C,HW)

    # ---- channel attention: GAP -> 1x1 conv -> ReLU -> 1x1 conv -> sigmoid
    pooled = jnp.sum(x, axis=2, keepdims=True) * (1.0 / HW)          # (Bt,C,1)
    h = jnp.sum(pooled * w1_ref[...], axis=1, keepdims=True)         # (Bt,1,mid)
    h = jnp.maximum(h + b1_ref[...], 0.0)
    ch = jnp.sum(h * w2_ref[...], axis=2, keepdims=True)             # (Bt,C,1)
    ch = _sigmoid(ch + b2_ref[...])
    x_ch = x * ch                                                    # (Bt,C,HW)

    # ---- spatial attention: channel mean/max -> 7x7 conv (pad=3) -> sigmoid
    avg_map = jnp.sum(x_ch, axis=1, keepdims=True) * (1.0 / C)       # (Bt,1,HW)
    max_map = jnp.max(x_ch, axis=1, keepdims=True)                   # (Bt,1,HW)

    zpad = jnp.zeros((Bt, 1, OFF), jnp.float32)
    padded = [jnp.concatenate([zpad, avg_map, zpad], axis=-1),       # (Bt,1,L)
              jnp.concatenate([zpad, max_map, zpad], axis=-1)]

    # 7 row-shifted slices per map, built once and reused for all 7 column
    # offsets (14 lane shifts total instead of 98).
    shifted = [[padded[c][:, :, OFF - PAD + W * di:OFF - PAD + W * di + SLC]
                for di in range(-PAD, PAD + 1)]
               for c in range(2)]

    contribs = []
    for dj in range(-PAD, PAD + 1):
        per_c = []
        for c in range(2):
            terms = [wsp_ref[c * K * K + (di + PAD) * K + (dj + PAD)]
                     * shifted[c][di + PAD]
                     for di in range(-PAD, PAD + 1)]
            per_c.append(_tree_sum(terms))                           # (Bt,1,SLC)
        comb = (per_c[0] + per_c[1])[:, :, dj + PAD:dj + PAD + HW]   # (Bt,1,HW)
        if dj != 0:   # zero taps that wrapped across an image row
            comb = comb * mask_ref[pl.ds(dj + PAD, 1), :]
        contribs.append(comb)
    sp = _sigmoid(_tree_sum(contribs) + bsp_ref[0])                  # (Bt,1,HW)

    # Lane-dense, unmasked full-block store.
    out_ref[...] = (x_ch * sp).astype(out_ref.dtype)


def _pick_block_batch(B, C, HW, limit_bytes=512 * 1024):
    """Largest divisor of B whose x-block stays under ~512 KiB."""
    bt = 1
    for cand in range(1, B + 1):
        if B % cand == 0 and cand * C * HW * 4 <= limit_bytes:
            bt = cand
    return bt


def cbam_pallas(x, params):
    B, C, H, W = x.shape
    HW = H * W
    mid = params["w1"].shape[0]

    # Parameter plumbing (plain JAX glue): reshape torch-style conv weights.
    w1v = jnp.transpose(params["w1"].reshape(mid, C)).astype(jnp.float32)  # (C,mid)
    w2v = params["w2"].reshape(C, mid).astype(jnp.float32)                 # (C,mid)
    b1v = params["b1"].reshape(1, mid).astype(jnp.float32)
    b2v = params["b2"].reshape(C, 1).astype(jnp.float32)
    wspf = params["wsp"].reshape(-1).astype(jnp.float32)                   # (2*K*K,)
    bspf = params["bsp"].reshape(1).astype(jnp.float32)

    # Row-wrap validity masks for the 7 horizontal conv offsets (host-built).
    xs = np.arange(HW) % W
    djs = np.arange(-PAD, PAD + 1)
    masks = jnp.asarray(
        ((xs[None, :] + djs[:, None] >= 0)
         & (xs[None, :] + djs[:, None] < W)).astype(np.float32))           # (K, HW)

    x_flat = x.reshape(B, C, HW)
    Bt = _pick_block_batch(B, C, HW)
    nb = B // Bt

    kernel = functools.partial(_cbam_kernel, W=W)

    grid_spec = pltpu.PrefetchScalarGridSpec(
        num_scalar_prefetch=0,
        grid=(nb,),
        in_specs=[
            pl.BlockSpec((Bt, C, HW), lambda b: (b, 0, 0)),
            pl.BlockSpec((C, mid), lambda b: (0, 0)),
            pl.BlockSpec((1, mid), lambda b: (0, 0)),
            pl.BlockSpec((C, mid), lambda b: (0, 0)),
            pl.BlockSpec((C, 1), lambda b: (0, 0)),
            pl.BlockSpec(memory_space=pltpu.MemorySpace.SMEM),
            pl.BlockSpec(memory_space=pltpu.MemorySpace.SMEM),
            pl.BlockSpec((K, HW), lambda b: (0, 0)),
        ],
        out_specs=pl.BlockSpec((Bt, C, HW), lambda b: (b, 0, 0)),
    )
    out_flat = pl.pallas_call(
        kernel,
        out_shape=jax.ShapeDtypeStruct((B, C, HW), x.dtype),
        grid_spec=grid_spec,
        compiler_params=pltpu.CompilerParams(
            dimension_semantics=("parallel",)),
    )(x_flat, w1v, b1v, w2v, b2v, wspf, bspf, masks)
    return out_flat.reshape(B, C, H, W)


def init_params(key, chs, reduction=16):
    mid = chs // reduction
    ks = jax.random.split(key, 6)
    return dict(
        w1=jax.random.normal(ks[0], (mid, chs, 1, 1), jnp.float32) * 0.2,
        b1=jax.random.normal(ks[1], (mid,), jnp.float32) * 0.1,
        w2=jax.random.normal(ks[2], (chs, mid, 1, 1), jnp.float32) * 0.2,
        b2=jax.random.normal(ks[3], (chs,), jnp.float32) * 0.1,
        wsp=jax.random.normal(ks[4], (1, 2, 7, 7), jnp.float32) * 0.1,
        bsp=jax.random.normal(ks[5], (1,), jnp.float32) * 0.1,
    )


def cbam_ref(x, params):
    """Pure-JAX reference matching the PyTorch forward exactly."""
    B, C, H, W = x.shape
    mid = params["w1"].shape[0]
    w1 = params["w1"].reshape(mid, C)
    w2 = params["w2"].reshape(C, mid)
    pooled = jnp.mean(x, axis=(2, 3))                                  # (B, C)
    h = jnp.maximum(pooled @ w1.T + params["b1"], 0.0)                 # (B, mid)
    ch = jax.nn.sigmoid(h @ w2.T + params["b2"])                       # (B, C)
    x_ch = x * ch[:, :, None, None]
    avg = jnp.mean(x_ch, axis=1, keepdims=True)
    mx = jnp.max(x_ch, axis=1, keepdims=True)
    inp = jnp.concatenate([avg, mx], axis=1)                           # (B, 2, H, W)
    sp = jax.lax.conv_general_dilated(
        inp, params["wsp"], window_strides=(1, 1), padding=((3, 3), (3, 3)),
        dimension_numbers=("NCHW", "OIHW", "NCHW"))
    sp = jax.nn.sigmoid(sp + params["bsp"].reshape(1, 1, 1, 1))
    return x_ch * sp


if __name__ == "__main__":
    key = jax.random.PRNGKey(0)
    kx, kp = jax.random.split(key)
    B, C, H, W = 2, 32, 16, 16          # reduction=16 -> hidden channels = 2
    x = jax.random.normal(kx, (B, C, H, W), jnp.float32)
    params = init_params(kp, C, reduction=16)

    out = jax.block_until_ready(cbam_pallas(x, params))

    ref = cbam_ref(x, params)
    np.testing.assert_allclose(np.asarray(out), np.asarray(ref),
                               rtol=1e-4, atol=1e-4)
    print("KERNEL_OK")
</pallas_src>

<mosaic_0001>
module attributes {stable_mosaic.version = 11 : i64} {
  func.func @_cbam_kernel(%arg0: i32, %arg1: memref<2x32x256xf32, #tpu.memory_space<vmem>>, %arg2: memref<32x2xf32, #tpu.memory_space<vmem>>, %arg3: memref<1x2xf32, #tpu.memory_space<vmem>>, %arg4: memref<32x2xf32, #tpu.memory_space<vmem>>, %arg5: memref<32x1xf32, #tpu.memory_space<vmem>>, %arg6: memref<98xf32, #tpu.memory_space<smem>>, %arg7: memref<1xf32, #tpu.memory_space<smem>>, %arg8: memref<7x256xf32, #tpu.memory_space<vmem>>, %arg9: memref<2x32x256xf32, #tpu.memory_space<vmem>>) attributes {dimension_semantics = [#tpu.dimension_semantics<parallel>], iteration_bounds = array<i64: 1>, scalar_prefetch = 0 : i64, scratch_operands = 0 : i64, tpu.core_type = #tpu.core_type<tc>, window_params = [{transform_indices = @transform_0, window_bounds = array<i64: 2, 32, 256>}, {pipeline_mode = #tpu.pipeline_mode<synchronous>, transform_indices = @transform_1, window_bounds = array<i64: 32, 2>}, {pipeline_mode = #tpu.pipeline_mode<synchronous>, transform_indices = @transform_2, window_bounds = array<i64: 1, 2>}, {pipeline_mode = #tpu.pipeline_mode<synchronous>, transform_indices = @transform_3, window_bounds = array<i64: 32, 2>}, {pipeline_mode = #tpu.pipeline_mode<synchronous>, transform_indices = @transform_4, window_bounds = array<i64: 32, 1>}, {transform_indices = @transform_5, window_bounds = array<i64: 98>}, {transform_indices = @transform_6, window_bounds = array<i64: 1>}, {pipeline_mode = #tpu.pipeline_mode<synchronous>, transform_indices = @transform_7, window_bounds = array<i64: 7, 256>}, {transform_indices = @transform_8, window_bounds = array<i64: 2, 32, 256>}]} {
    %c0 = arith.constant 0 : index
    %c0_0 = arith.constant 0 : index
    %c0_1 = arith.constant 0 : index
    %0 = vector.load %arg1[%c0, %c0_0, %c0_1] : memref<2x32x256xf32, #tpu.memory_space<vmem>>, vector<2x32x256xf32>
    %cst = arith.constant dense<0.000000e+00> : vector<2x32xf32>
    %1 = vector.multi_reduction <add>, %0, %cst [2] : vector<2x32x256xf32> to vector<2x32xf32>
    %2 = vector.shape_cast %1 : vector<2x32xf32> to vector<2x32x1xf32>
    %cst_2 = arith.constant 3.906250e-03 : f32
    %3 = vector.broadcast %cst_2 : f32 to vector<2x32x1xf32>
    %4 = arith.mulf %2, %3 : vector<2x32x1xf32>
    %c0_3 = arith.constant 0 : index
    %c0_4 = arith.constant 0 : index
    %5 = vector.load %arg2[%c0_3, %c0_4] : memref<32x2xf32, #tpu.memory_space<vmem>>, vector<32x2xf32>
    %6 = vector.shape_cast %5 : vector<32x2xf32> to vector<1x32x2xf32>
    %7 = vector.broadcast %4 : vector<2x32x1xf32> to vector<2x32x2xf32>
    %8 = vector.broadcast %6 : vector<1x32x2xf32> to vector<2x32x2xf32>
    %9 = arith.mulf %7, %8 : vector<2x32x2xf32>
    %cst_5 = arith.constant dense<0.000000e+00> : vector<2x2xf32>
    %10 = vector.multi_reduction <add>, %9, %cst_5 [1] : vector<2x32x2xf32> to vector<2x2xf32>
    %11 = vector.shape_cast %10 : vector<2x2xf32> to vector<2x1x2xf32>
    %c0_6 = arith.constant 0 : index
    %c0_7 = arith.constant 0 : index
    %12 = vector.load %arg3[%c0_6, %c0_7] : memref<1x2xf32, #tpu.memory_space<vmem>>, vector<1x2xf32>
    %13 = vector.shape_cast %12 : vector<1x2xf32> to vector<1x1x2xf32>
    %14 = vector.broadcast %13 : vector<1x1x2xf32> to vector<2x1x2xf32>
    %15 = arith.addf %11, %14 : vector<2x1x2xf32>
    %cst_8 = arith.constant 0.000000e+00 : f32
    %16 = vector.broadcast %cst_8 : f32 to vector<2x1x2xf32>
    %17 = arith.maximumf %15, %16 : vector<2x1x2xf32>
    %c0_9 = arith.constant 0 : index
    %c0_10 = arith.constant 0 : index
    %18 = vector.load %arg4[%c0_9, %c0_10] : memref<32x2xf32, #tpu.memory_space<vmem>>, vector<32x2xf32>
    %19 = vector.shape_cast %18 : vector<32x2xf32> to vector<1x32x2xf32>
    %20 = vector.broadcast %17 : vector<2x1x2xf32> to vector<2x32x2xf32>
    %21 = vector.broadcast %19 : vector<1x32x2xf32> to vector<2x32x2xf32>
    %22 = arith.mulf %20, %21 : vector<2x32x2xf32>
    %cst_11 = arith.constant dense<0.000000e+00> : vector<2x32xf32>
    %23 = vector.multi_reduction <add>, %22, %cst_11 [2] : vector<2x32x2xf32> to vector<2x32xf32>
    %24 = vector.shape_cast %23 : vector<2x32xf32> to vector<2x32x1xf32>
    %c0_12 = arith.constant 0 : index
    %c0_13 = arith.constant 0 : index
    %25 = vector.load %arg5[%c0_12, %c0_13] : memref<32x1xf32, #tpu.memory_space<vmem>>, vector<32x1xf32>
    %26 = vector.shape_cast %25 : vector<32x1xf32> to vector<1x32x1xf32>
    %27 = vector.broadcast %26 : vector<1x32x1xf32> to vector<2x32x1xf32>
    %28 = arith.addf %24, %27 : vector<2x32x1xf32>
    %cst_14 = arith.constant 5.000000e-01 : f32
    %29 = vector.broadcast %cst_14 : f32 to vector<2x32x1xf32>
    %30 = arith.mulf %29, %28 : vector<2x32x1xf32>
    %31 = math.tanh %30 : vector<2x32x1xf32>
    %cst_15 = arith.constant 5.000000e-01 : f32
    %32 = vector.broadcast %cst_15 : f32 to vector<2x32x1xf32>
    %33 = arith.mulf %32, %31 : vector<2x32x1xf32>
    %cst_16 = arith.constant 5.000000e-01 : f32
    %34 = vector.broadcast %cst_16 : f32 to vector<2x32x1xf32>
    %35 = arith.addf %33, %34 : vector<2x32x1xf32>
    %36 = vector.broadcast %35 : vector<2x32x1xf32> to vector<2x32x256xf32>
    %37 = arith.mulf %0, %36 : vector<2x32x256xf32>
    %cst_17 = arith.constant dense<0.000000e+00> : vector<2x256xf32>
    %38 = vector.multi_reduction <add>, %37, %cst_17 [1] : vector<2x32x256xf32> to vector<2x256xf32>
    %39 = vector.shape_cast %38 : vector<2x256xf32> to vector<2x1x256xf32>
    %cst_18 = arith.constant 3.125000e-02 : f32
    %40 = vector.broadcast %cst_18 : f32 to vector<2x1x256xf32>
    %41 = arith.mulf %39, %40 : vector<2x1x256xf32>
    %cst_19 = arith.constant dense<0xFF800000> : vector<2x256xf32>
    %42 = vector.multi_reduction <maximumf>, %37, %cst_19 [1] : vector<2x32x256xf32> to vector<2x256xf32>
    %43 = vector.shape_cast %42 : vector<2x256xf32> to vector<2x1x256xf32>
    %cst_20 = arith.constant 0.000000e+00 : f32
    %44 = vector.broadcast %cst_20 : f32 to vector<2x1x51xf32>
    %45 = tpu.concatenate %44, %41, %44 in 2 : vector<2x1x51xf32>, vector<2x1x256xf32>, vector<2x1x51xf32> -> vector<2x1x358xf32>
    %46 = tpu.concatenate %44, %43, %44 in 2 : vector<2x1x51xf32>, vector<2x1x256xf32>, vector<2x1x51xf32> -> vector<2x1x358xf32>
    %47 = vector.extract_strided_slice %45 {offsets = [0, 0, 0], sizes = [2, 1, 262], strides = [1, 1, 1]} : vector<2x1x358xf32> to vector<2x1x262xf32>
    %48 = vector.extract_strided_slice %45 {offsets = [0, 0, 16], sizes = [2, 1, 262], strides = [1, 1, 1]} : vector<2x1x358xf32> to vector<2x1x262xf32>
    %49 = vector.extract_strided_slice %45 {offsets = [0, 0, 32], sizes = [2, 1, 262], strides = [1, 1, 1]} : vector<2x1x358xf32> to vector<2x1x262xf32>
    %50 = vector.extract_strided_slice %45 {offsets = [0, 0, 48], sizes = [2, 1, 262], strides = [1, 1, 1]} : vector<2x1x358xf32> to vector<2x1x262xf32>
    %51 = vector.extract_strided_slice %45 {offsets = [0, 0, 64], sizes = [2, 1, 262], strides = [1, 1, 1]} : vector<2x1x358xf32> to vector<2x1x262xf32>
    %52 = vector.extract_strided_slice %45 {offsets = [0, 0, 80], sizes = [2, 1, 262], strides = [1, 1, 1]} : vector<2x1x358xf32> to vector<2x1x262xf32>
    %53 = vector.extract_strided_slice %45 {offsets = [0, 0, 96], sizes = [2, 1, 262], strides = [1, 1, 1]} : vector<2x1x358xf32> to vector<2x1x262xf32>
    %54 = vector.extract_strided_slice %46 {offsets = [0, 0, 0], sizes = [2, 1, 262], strides = [1, 1, 1]} : vector<2x1x358xf32> to vector<2x1x262xf32>
    %55 = vector.extract_strided_slice %46 {offsets = [0, 0, 16], sizes = [2, 1, 262], strides = [1, 1, 1]} : vector<2x1x358xf32> to vector<2x1x262xf32>
    %56 = vector.extract_strided_slice %46 {offsets = [0, 0, 32], sizes = [2, 1, 262], strides = [1, 1, 1]} : vector<2x1x358xf32> to vector<2x1x262xf32>
    %57 = vector.extract_strided_slice %46 {offsets = [0, 0, 48], sizes = [2, 1, 262], strides = [1, 1, 1]} : vector<2x1x358xf32> to vector<2x1x262xf32>
    %58 = vector.extract_strided_slice %46 {offsets = [0, 0, 64], sizes = [2, 1, 262], strides = [1, 1, 1]} : vector<2x1x358xf32> to vector<2x1x262xf32>
    %59 = vector.extract_strided_slice %46 {offsets = [0, 0, 80], sizes = [2, 1, 262], strides = [1, 1, 1]} : vector<2x1x358xf32> to vector<2x1x262xf32>
    %60 = vector.extract_strided_slice %46 {offsets = [0, 0, 96], sizes = [2, 1, 262], strides = [1, 1, 1]} : vector<2x1x358xf32> to vector<2x1x262xf32>
    %c0_21 = arith.constant 0 : index
    %61 = memref.load %arg6[%c0_21] : memref<98xf32, #tpu.memory_space<smem>>
    %62 = vector.broadcast %61 : f32 to vector<2x1x262xf32>
    %63 = arith.mulf %62, %47 : vector<2x1x262xf32>
    %c7 = arith.constant 7 : index
    %64 = memref.load %arg6[%c7] : memref<98xf32, #tpu.memory_space<smem>>
    %65 = vector.broadcast %64 : f32 to vector<2x1x262xf32>
    %66 = arith.mulf %65, %48 : vector<2x1x262xf32>
    %c14 = arith.constant 14 : index
    %67 = memref.load %arg6[%c14] : memref<98xf32, #tpu.memory_space<smem>>
    %68 = vector.broadcast %67 : f32 to vector<2x1x262xf32>
    %69 = arith.mulf %68, %49 : vector<2x1x262xf32>
    %c21 = arith.constant 21 : index
    %70 = memref.load %arg6[%c21] : memref<98xf32, #tpu.memory_space<smem>>
    %71 = vector.broadcast %70 : f32 to vector<2x1x262xf32>
    %72 = arith.mulf %71, %50 : vector<2x1x262xf32>
    %c28 = arith.constant 28 : index
    %73 = memref.load %arg6[%c28] : memref<98xf32, #tpu.memory_space<smem>>
    %74 = vector.broadcast %73 : f32 to vector<2x1x262xf32>
    %75 = arith.mulf %74, %51 : vector<2x1x262xf32>
    %c35 = arith.constant 35 : index
    %76 = memref.load %arg6[%c35] : memref<98xf32, #tpu.memory_space<smem>>
    %77 = vector.broadcast %76 : f32 to vector<2x1x262xf32>
    %78 = arith.mulf %77, %52 : vector<2x1x262xf32>
    %c42 = arith.constant 42 : index
    %79 = memref.load %arg6[%c42] : memref<98xf32, #tpu.memory_space<smem>>
    %80 = vector.broadcast %79 : f32 to vector<2x1x262xf32>
    %81 = arith.mulf %80, %53 : vector<2x1x262xf32>
    %82 = arith.addf %63, %66 : vector<2x1x262xf32>
    %83 = arith.addf %69, %72 : vector<2x1x262xf32>
    %84 = arith.addf %75, %78 : vector<2x1x262xf32>
    %85 = arith.addf %82, %83 : vector<2x1x262xf32>
    %86 = arith.addf %84, %81 : vector<2x1x262xf32>
    %87 = arith.addf %85, %86 : vector<2x1x262xf32>
    %c49 = arith.constant 49 : index
    %88 = memref.load %arg6[%c49] : memref<98xf32, #tpu.memory_space<smem>>
    %89 = vector.broadcast %88 : f32 to vector<2x1x262xf32>
    %90 = arith.mulf %89, %54 : vector<2x1x262xf32>
    %c56 = arith.constant 56 : index
    %91 = memref.load %arg6[%c56] : memref<98xf32, #tpu.memory_space<smem>>
    %92 = vector.broadcast %91 : f32 to vector<2x1x262xf32>
    %93 = arith.mulf %92, %55 : vector<2x1x262xf32>
    %c63 = arith.constant 63 : index
    %94 = memref.load %arg6[%c63] : memref<98xf32, #tpu.memory_space<smem>>
    %95 = vector.broadcast %94 : f32 to vector<2x1x262xf32>
    %96 = arith.mulf %95, %56 : vector<2x1x262xf32>
    %c70 = arith.constant 70 : index
    %97 = memref.load %arg6[%c70] : memref<98xf32, #tpu.memory_space<smem>>
    %98 = vector.broadcast %97 : f32 to vector<2x1x262xf32>
    %99 = arith.mulf %98, %57 : vector<2x1x262xf32>
    %c77 = arith.constant 77 : index
    %100 = memref.load %arg6[%c77] : memref<98xf32, #tpu.memory_space<smem>>
    %101 = vector.broadcast %100 : f32 to vector<2x1x262xf32>
    %102 = arith.mulf %101, %58 : vector<2x1x262xf32>
    %c84 = arith.constant 84 : index
    %103 = memref.load %arg6[%c84] : memref<98xf32, #tpu.memory_space<smem>>
    %104 = vector.broadcast %103 : f32 to vector<2x1x262xf32>
    %105 = arith.mulf %104, %59 : vector<2x1x262xf32>
    %c91 = arith.constant 91 : index
    %106 = memref.load %arg6[%c91] : memref<98xf32, #tpu.memory_space<smem>>
    %107 = vector.broadcast %106 : f32 to vector<2x1x262xf32>
    %108 = arith.mulf %107, %60 : vector<2x1x262xf32>
    %109 = arith.addf %90, %93 : vector<2x1x262xf32>
    %110 = arith.addf %96, %99 : vector<2x1x262xf32>
    %111 = arith.addf %102, %105 : vector<2x1x262xf32>
    %112 = arith.addf %109, %110 : vector<2x1x262xf32>
    %113 = arith.addf %111, %108 : vector<2x1x262xf32>
    %114 = arith.addf %112, %113 : vector<2x1x262xf32>
    %115 = arith.addf %87, %114 : vector<2x1x262xf32>
    %116 = vector.extract_strided_slice %115 {offsets = [0, 0, 0], sizes = [2, 1, 256], strides = [1, 1, 1]} : vector<2x1x262xf32> to vector<2x1x256xf32>
    %c0_22 = arith.constant 0 : index
    %c0_23 = arith.constant 0 : index
    %117 = vector.load %arg8[%c0_22, %c0_23] : memref<7x256xf32, #tpu.memory_space<vmem>>, vector<1x256xf32>
    %118 = vector.shape_cast %117 : vector<1x256xf32> to vector<1x1x256xf32>
    %119 = vector.broadcast %118 : vector<1x1x256xf32> to vector<2x1x256xf32>
    %120 = arith.mulf %116, %119 : vector<2x1x256xf32>
    %c1 = arith.constant 1 : index
    %121 = memref.load %arg6[%c1] : memref<98xf32, #tpu.memory_space<smem>>
    %122 = vector.broadcast %121 : f32 to vector<2x1x262xf32>
    %123 = arith.mulf %122, %47 : vector<2x1x262xf32>
    %c8 = arith.constant 8 : index
    %124 = memref.load %arg6[%c8] : memref<98xf32, #tpu.memory_space<smem>>
    %125 = vector.broadcast %124 : f32 to vector<2x1x262xf32>
    %126 = arith.mulf %125, %48 : vector<2x1x262xf32>
    %c15 = arith.constant 15 : index
    %127 = memref.load %arg6[%c15] : memref<98xf32, #tpu.memory_space<smem>>
    %128 = vector.broadcast %127 : f32 to vector<2x1x262xf32>
    %129 = arith.mulf %128, %49 : vector<2x1x262xf32>
    %c22 = arith.constant 22 : index
    %130 = memref.load %arg6[%c22] : memref<98xf32, #tpu.memory_space<smem>>
    %131 = vector.broadcast %130 : f32 to vector<2x1x262xf32>
    %132 = arith.mulf %131, %50 : vector<2x1x262xf32>
    %c29 = arith.constant 29 : index
    %133 = memref.load %arg6[%c29] : memref<98xf32, #tpu.memory_space<smem>>
    %134 = vector.broadcast %133 : f32 to vector<2x1x262xf32>
    %135 = arith.mulf %134, %51 : vector<2x1x262xf32>
    %c36 = arith.constant 36 : index
    %136 = memref.load %arg6[%c36] : memref<98xf32, #tpu.memory_space<smem>>
    %137 = vector.broadcast %136 : f32 to vector<2x1x262xf32>
    %138 = arith.mulf %137, %52 : vector<2x1x262xf32>
    %c43 = arith.constant 43 : index
    %139 = memref.load %arg6[%c43] : memref<98xf32, #tpu.memory_space<smem>>
    %140 = vector.broadcast %139 : f32 to vector<2x1x262xf32>
    %141 = arith.mulf %140, %53 : vector<2x1x262xf32>
    %142 = arith.addf %123, %126 : vector<2x1x262xf32>
    %143 = arith.addf %129, %132 : vector<2x1x262xf32>
    %144 = arith.addf %135, %138 : vector<2x1x262xf32>
    %145 = arith.addf %142, %143 : vector<2x1x262xf32>
    %146 = arith.addf %144, %141 : vector<2x1x262xf32>
    %147 = arith.addf %145, %146 : vector<2x1x262xf32>
    %c50 = arith.constant 50 : index
    %148 = memref.load %arg6[%c50] : memref<98xf32, #tpu.memory_space<smem>>
    %149 = vector.broadcast %148 : f32 to vector<2x1x262xf32>
    %150 = arith.mulf %149, %54 : vector<2x1x262xf32>
    %c57 = arith.constant 57 : index
    %151 = memref.load %arg6[%c57] : memref<98xf32, #tpu.memory_space<smem>>
    %152 = vector.broadcast %151 : f32 to vector<2x1x262xf32>
    %153 = arith.mulf %152, %55 : vector<2x1x262xf32>
    %c64 = arith.constant 64 : index
    %154 = memref.load %arg6[%c64] : memref<98xf32, #tpu.memory_space<smem>>
    %155 = vector.broadcast %154 : f32 to vector<2x1x262xf32>
    %156 = arith.mulf %155, %56 : vector<2x1x262xf32>
    %c71 = arith.constant 71 : index
    %157 = memref.load %arg6[%c71] : memref<98xf32, #tpu.memory_space<smem>>
    %158 = vector.broadcast %157 : f32 to vector<2x1x262xf32>
    %159 = arith.mulf %158, %57 : vector<2x1x262xf32>
    %c78 = arith.constant 78 : index
    %160 = memref.load %arg6[%c78] : memref<98xf32, #tpu.memory_space<smem>>
    %161 = vector.broadcast %160 : f32 to vector<2x1x262xf32>
    %162 = arith.mulf %161, %58 : vector<2x1x262xf32>
    %c85 = arith.constant 85 : index
    %163 = memref.load %arg6[%c85] : memref<98xf32, #tpu.memory_space<smem>>
    %164 = vector.broadcast %163 : f32 to vector<2x1x262xf32>
    %165 = arith.mulf %164, %59 : vector<2x1x262xf32>
    %c92 = arith.constant 92 : index
    %166 = memref.load %arg6[%c92] : memref<98xf32, #tpu.memory_space<smem>>
    %167 = vector.broadcast %166 : f32 to vector<2x1x262xf32>
    %168 = arith.mulf %167, %60 : vector<2x1x262xf32>
    %169 = arith.addf %150, %153 : vector<2x1x262xf32>
    %170 = arith.addf %156, %159 : vector<2x1x262xf32>
    %171 = arith.addf %162, %165 : vector<2x1x262xf32>
    %172 = arith.addf %169, %170 : vector<2x1x262xf32>
    %173 = arith.addf %171, %168 : vector<2x1x262xf32>
    %174 = arith.addf %172, %173 : vector<2x1x262xf32>
    %175 = arith.addf %147, %174 : vector<2x1x262xf32>
    %176 = vector.extract_strided_slice %175 {offsets = [0, 0, 1], sizes = [2, 1, 256], strides = [1, 1, 1]} : vector<2x1x262xf32> to vector<2x1x256xf32>
    %c1_24 = arith.constant 1 : index
    %c0_25 = arith.constant 0 : index
    %177 = vector.load %arg8[%c1_24, %c0_25] : memref<7x256xf32, #tpu.memory_space<vmem>>, vector<1x256xf32>
    %178 = vector.shape_cast %177 : vector<1x256xf32> to vector<1x1x256xf32>
    %179 = vector.broadcast %178 : vector<1x1x256xf32> to vector<2x1x256xf32>
    %180 = arith.mulf %176, %179 : vector<2x1x256xf32>
    %c2 = arith.constant 2 : index
    %181 = memref.load %arg6[%c2] : memref<98xf32, #tpu.memory_space<smem>>
    %182 = vector.broadcast %181 : f32 to vector<2x1x262xf32>
    %183 = arith.mulf %182, %47 : vector<2x1x262xf32>
    %c9 = arith.constant 9 : index
    %184 = memref.load %arg6[%c9] : memref<98xf32, #tpu.memory_space<smem>>
    %185 = vector.broadcast %184 : f32 to vector<2x1x262xf32>
    %186 = arith.mulf %185, %48 : vector<2x1x262xf32>
    %c16 = arith.constant 16 : index
    %187 = memref.load %arg6[%c16] : memref<98xf32, #tpu.memory_space<smem>>
    %188 = vector.broadcast %187 : f32 to vector<2x1x262xf32>
    %189 = arith.mulf %188, %49 : vector<2x1x262xf32>
    %c23 = arith.constant 23 : index
    %190 = memref.load %arg6[%c23] : memref<98xf32, #tpu.memory_space<smem>>
    %191 = vector.broadcast %190 : f32 to vector<2x1x262xf32>
    %192 = arith.mulf %191, %50 : vector<2x1x262xf32>
    %c30 = arith.constant 30 : index
    %193 = memref.load %arg6[%c30] : memref<98xf32, #tpu.memory_space<smem>>
    %194 = vector.broadcast %193 : f32 to vector<2x1x262xf32>
    %195 = arith.mulf %194, %51 : vector<2x1x262xf32>
    %c37 = arith.constant 37 : index
    %196 = memref.load %arg6[%c37] : memref<98xf32, #tpu.memory_space<smem>>
    %197 = vector.broadcast %196 : f32 to vector<2x1x262xf32>
    %198 = arith.mulf %197, %52 : vector<2x1x262xf32>
    %c44 = arith.constant 44 : index
    %199 = memref.load %arg6[%c44] : memref<98xf32, #tpu.memory_space<smem>>
    %200 = vector.broadcast %199 : f32 to vector<2x1x262xf32>
    %201 = arith.mulf %200, %53 : vector<2x1x262xf32>
    %202 = arith.addf %183, %186 : vector<2x1x262xf32>
    %203 = arith.addf %189, %192 : vector<2x1x262xf32>
    %204 = arith.addf %195, %198 : vector<2x1x262xf32>
    %205 = arith.addf %202, %203 : vector<2x1x262xf32>
    %206 = arith.addf %204, %201 : vector<2x1x262xf32>
    %207 = arith.addf %205, %206 : vector<2x1x262xf32>
    %c51 = arith.constant 51 : index
    %208 = memref.load %arg6[%c51] : memref<98xf32, #tpu.memory_space<smem>>
    %209 = vector.broadcast %208 : f32 to vector<2x1x262xf32>
    %210 = arith.mulf %209, %54 : vector<2x1x262xf32>
    %c58 = arith.constant 58 : index
    %211 = memref.load %arg6[%c58] : memref<98xf32, #tpu.memory_space<smem>>
    %212 = vector.broadcast %211 : f32 to vector<2x1x262xf32>
    %213 = arith.mulf %212, %55 : vector<2x1x262xf32>
    %c65 = arith.constant 65 : index
    %214 = memref.load %arg6[%c65] : memref<98xf32, #tpu.memory_space<smem>>
    %215 = vector.broadcast %214 : f32 to vector<2x1x262xf32>
    %216 = arith.mulf %215, %56 : vector<2x1x262xf32>
    %c72 = arith.constant 72 : index
    %217 = memref.load %arg6[%c72] : memref<98xf32, #tpu.memory_space<smem>>
    %218 = vector.broadcast %217 : f32 to vector<2x1x262xf32>
    %219 = arith.mulf %218, %57 : vector<2x1x262xf32>
    %c79 = arith.constant 79 : index
    %220 = memref.load %arg6[%c79] : memref<98xf32, #tpu.memory_space<smem>>
    %221 = vector.broadcast %220 : f32 to vector<2x1x262xf32>
    %222 = arith.mulf %221, %58 : vector<2x1x262xf32>
    %c86 = arith.constant 86 : index
    %223 = memref.load %arg6[%c86] : memref<98xf32, #tpu.memory_space<smem>>
    %224 = vector.broadcast %223 : f32 to vector<2x1x262xf32>
    %225 = arith.mulf %224, %59 : vector<2x1x262xf32>
    %c93 = arith.constant 93 : index
    %226 = memref.load %arg6[%c93] : memref<98xf32, #tpu.memory_space<smem>>
    %227 = vector.broadcast %226 : f32 to vector<2x1x262xf32>
    %228 = arith.mulf %227, %60 : vector<2x1x262xf32>
    %229 = arith.addf %210, %213 : vector<2x1x262xf32>
    %230 = arith.addf %216, %219 : vector<2x1x262xf32>
    %231 = arith.addf %222, %225 : vector<2x1x262xf32>
    %232 = arith.addf %229, %230 : vector<2x1x262xf32>
    %233 = arith.addf %231, %228 : vector<2x1x262xf32>
    %234 = arith.addf %232, %233 : vector<2x1x262xf32>
    %235 = arith.addf %207, %234 : vector<2x1x262xf32>
    %236 = vector.extract_strided_slice %235 {offsets = [0, 0, 2], sizes = [2, 1, 256], strides = [1, 1, 1]} : vector<2x1x262xf32> to vector<2x1x256xf32>
    %c2_26 = arith.constant 2 : index
    %c0_27 = arith.constant 0 : index
    %237 = vector.load %arg8[%c2_26, %c0_27] : memref<7x256xf32, #tpu.memory_space<vmem>>, vector<1x256xf32>
    %238 = vector.shape_cast %237 : vector<1x256xf32> to vector<1x1x256xf32>
    %239 = vector.broadcast %238 : vector<1x1x256xf32> to vector<2x1x256xf32>
    %240 = arith.mulf %236, %239 : vector<2x1x256xf32>
    %c3 = arith.constant 3 : index
    %241 = memref.load %arg6[%c3] : memref<98xf32, #tpu.memory_space<smem>>
    %242 = vector.broadcast %241 : f32 to vector<2x1x262xf32>
    %243 = arith.mulf %242, %47 : vector<2x1x262xf32>
    %c10 = arith.constant 10 : index
    %244 = memref.load %arg6[%c10] : memref<98xf32, #tpu.memory_space<smem>>
    %245 = vector.broadcast %244 : f32 to vector<2x1x262xf32>
    %246 = arith.mulf %245, %48 : vector<2x1x262xf32>
    %c17 = arith.constant 17 : index
    %247 = memref.load %arg6[%c17] : memref<98xf32, #tpu.memory_space<smem>>
    %248 = vector.broadcast %247 : f32 to vector<2x1x262xf32>
    %249 = arith.mulf %248, %49 : vector<2x1x262xf32>
    %c24 = arith.constant 24 : index
    %250 = memref.load %arg6[%c24] : memref<98xf32, #tpu.memory_space<smem>>
    %251 = vector.broadcast %250 : f32 to vector<2x1x262xf32>
    %252 = arith.mulf %251, %50 : vector<2x1x262xf32>
    %c31 = arith.constant 31 : index
    %253 = memref.load %arg6[%c31] : memref<98xf32, #tpu.memory_space<smem>>
    %254 = vector.broadcast %253 : f32 to vector<2x1x262xf32>
    %255 = arith.mulf %254, %51 : vector<2x1x262xf32>
    %c38 = arith.constant 38 : index
    %256 = memref.load %arg6[%c38] : memref<98xf32, #tpu.memory_space<smem>>
    %257 = vector.broadcast %256 : f32 to vector<2x1x262xf32>
    %258 = arith.mulf %257, %52 : vector<2x1x262xf32>
    %c45 = arith.constant 45 : index
    %259 = memref.load %arg6[%c45] : memref<98xf32, #tpu.memory_space<smem>>
    %260 = vector.broadcast %259 : f32 to vector<2x1x262xf32>
    %261 = arith.mulf %260, %53 : vector<2x1x262xf32>
    %262 = arith.addf %243, %246 : vector<2x1x262xf32>
    %263 = arith.addf %249, %252 : vector<2x1x262xf32>
    %264 = arith.addf %255, %258 : vector<2x1x262xf32>
    %265 = arith.addf %262, %263 : vector<2x1x262xf32>
    %266 = arith.addf %264, %261 : vector<2x1x262xf32>
    %267 = arith.addf %265, %266 : vector<2x1x262xf32>
    %c52 = arith.constant 52 : index
    %268 = memref.load %arg6[%c52] : memref<98xf32, #tpu.memory_space<smem>>
    %269 = vector.broadcast %268 : f32 to vector<2x1x262xf32>
    %270 = arith.mulf %269, %54 : vector<2x1x262xf32>
    %c59 = arith.constant 59 : index
    %271 = memref.load %arg6[%c59] : memref<98xf32, #tpu.memory_space<smem>>
    %272 = vector.broadcast %271 : f32 to vector<2x1x262xf32>
    %273 = arith.mulf %272, %55 : vector<2x1x262xf32>
    %c66 = arith.constant 66 : index
    %274 = memref.load %arg6[%c66] : memref<98xf32, #tpu.memory_space<smem>>
    %275 = vector.broadcast %274 : f32 to vector<2x1x262xf32>
    %276 = arith.mulf %275, %56 : vector<2x1x262xf32>
    %c73 = arith.constant 73 : index
    %277 = memref.load %arg6[%c73] : memref<98xf32, #tpu.memory_space<smem>>
    %278 = vector.broadcast %277 : f32 to vector<2x1x262xf32>
    %279 = arith.mulf %278, %57 : vector<2x1x262xf32>
    %c80 = arith.constant 80 : index
    %280 = memref.load %arg6[%c80] : memref<98xf32, #tpu.memory_space<smem>>
    %281 = vector.broadcast %280 : f32 to vector<2x1x262xf32>
    %282 = arith.mulf %281, %58 : vector<2x1x262xf32>
    %c87 = arith.constant 87 : index
    %283 = memref.load %arg6[%c87] : memref<98xf32, #tpu.memory_space<smem>>
    %284 = vector.broadcast %283 : f32 to vector<2x1x262xf32>
    %285 = arith.mulf %284, %59 : vector<2x1x262xf32>
    %c94 = arith.constant 94 : index
    %286 = memref.load %arg6[%c94] : memref<98xf32, #tpu.memory_space<smem>>
    %287 = vector.broadcast %286 : f32 to vector<2x1x262xf32>
    %288 = arith.mulf %287, %60 : vector<2x1x262xf32>
    %289 = arith.addf %270, %273 : vector<2x1x262xf32>
    %290 = arith.addf %276, %279 : vector<2x1x262xf32>
    %291 = arith.addf %282, %285 : vector<2x1x262xf32>
    %292 = arith.addf %289, %290 : vector<2x1x262xf32>
    %293 = arith.addf %291, %288 : vector<2x1x262xf32>
    %294 = arith.addf %292, %293 : vector<2x1x262xf32>
    %295 = arith.addf %267, %294 : vector<2x1x262xf32>
    %296 = vector.extract_strided_slice %295 {offsets = [0, 0, 3], sizes = [2, 1, 256], strides = [1, 1, 1]} : vector<2x1x262xf32> to vector<2x1x256xf32>
    %c4 = arith.constant 4 : index
    %297 = memref.load %arg6[%c4] : memref<98xf32, #tpu.memory_space<smem>>
    %298 = vector.broadcast %297 : f32 to vector<2x1x262xf32>
    %299 = arith.mulf %298, %47 : vector<2x1x262xf32>
    %c11 = arith.constant 11 : index
    %300 = memref.load %arg6[%c11] : memref<98xf32, #tpu.memory_space<smem>>
    %301 = vector.broadcast %300 : f32 to vector<2x1x262xf32>
    %302 = arith.mulf %301, %48 : vector<2x1x262xf32>
    %c18 = arith.constant 18 : index
    %303 = memref.load %arg6[%c18] : memref<98xf32, #tpu.memory_space<smem>>
    %304 = vector.broadcast %303 : f32 to vector<2x1x262xf32>
    %305 = arith.mulf %304, %49 : vector<2x1x262xf32>
    %c25 = arith.constant 25 : index
    %306 = memref.load %arg6[%c25] : memref<98xf32, #tpu.memory_space<smem>>
    %307 = vector.broadcast %306 : f32 to vector<2x1x262xf32>
    %308 = arith.mulf %307, %50 : vector<2x1x262xf32>
    %c32 = arith.constant 32 : index
    %309 = memref.load %arg6[%c32] : memref<98xf32, #tpu.memory_space<smem>>
    %310 = vector.broadcast %309 : f32 to vector<2x1x262xf32>
    %311 = arith.mulf %310, %51 : vector<2x1x262xf32>
    %c39 = arith.constant 39 : index
    %312 = memref.load %arg6[%c39] : memref<98xf32, #tpu.memory_space<smem>>
    %313 = vector.broadcast %312 : f32 to vector<2x1x262xf32>
    %314 = arith.mulf %313, %52 : vector<2x1x262xf32>
    %c46 = arith.constant 46 : index
    %315 = memref.load %arg6[%c46] : memref<98xf32, #tpu.memory_space<smem>>
    %316 = vector.broadcast %315 : f32 to vector<2x1x262xf32>
    %317 = arith.mulf %316, %53 : vector<2x1x262xf32>
    %318 = arith.addf %299, %302 : vector<2x1x262xf32>
    %319 = arith.addf %305, %308 : vector<2x1x262xf32>
    %320 = arith.addf %311, %314 : vector<2x1x262xf32>
    %321 = arith.addf %318, %319 : vector<2x1x262xf32>
    %322 = arith.addf %320, %317 : vector<2x1x262xf32>
    %323 = arith.addf %321, %322 : vector<2x1x262xf32>
    %c53 = arith.constant 53 : index
    %324 = memref.load %arg6[%c53] : memref<98xf32, #tpu.memory_space<smem>>
    %325 = vector.broadcast %324 : f32 to vector<2x1x262xf32>
    %326 = arith.mulf %325, %54 : vector<2x1x262xf32>
    %c60 = arith.constant 60 : index
    %327 = memref.load %arg6[%c60] : memref<98xf32, #tpu.memory_space<smem>>
    %328 = vector.broadcast %327 : f32 to vector<2x1x262xf32>
    %329 = arith.mulf %328, %55 : vector<2x1x262xf32>
    %c67 = arith.constant 67 : index
    %330 = memref.load %arg6[%c67] : memref<98xf32, #tpu.memory_space<smem>>
    %331 = vector.broadcast %330 : f32 to vector<2x1x262xf32>
    %332 = arith.mulf %331, %56 : vector<2x1x262xf32>
    %c74 = arith.constant 74 : index
    %333 = memref.load %arg6[%c74] : memref<98xf32, #tpu.memory_space<smem>>
    %334 = vector.broadcast %333 : f32 to vector<2x1x262xf32>
    %335 = arith.mulf %334, %57 : vector<2x1x262xf32>
    %c81 = arith.constant 81 : index
    %336 = memref.load %arg6[%c81] : memref<98xf32, #tpu.memory_space<smem>>
    %337 = vector.broadcast %336 : f32 to vector<2x1x262xf32>
    %338 = arith.mulf %337, %58 : vector<2x1x262xf32>
    %c88 = arith.constant 88 : index
    %339 = memref.load %arg6[%c88] : memref<98xf32, #tpu.memory_space<smem>>
    %340 = vector.broadcast %339 : f32 to vector<2x1x262xf32>
    %341 = arith.mulf %340, %59 : vector<2x1x262xf32>
    %c95 = arith.constant 95 : index
    %342 = memref.load %arg6[%c95] : memref<98xf32, #tpu.memory_space<smem>>
    %343 = vector.broadcast %342 : f32 to vector<2x1x262xf32>
    %344 = arith.mulf %343, %60 : vector<2x1x262xf32>
    %345 = arith.addf %326, %329 : vector<2x1x262xf32>
    %346 = arith.addf %332, %335 : vector<2x1x262xf32>
    %347 = arith.addf %338, %341 : vector<2x1x262xf32>
    %348 = arith.addf %345, %346 : vector<2x1x262xf32>
    %349 = arith.addf %347, %344 : vector<2x1x262xf32>
    %350 = arith.addf %348, %349 : vector<2x1x262xf32>
    %351 = arith.addf %323, %350 : vector<2x1x262xf32>
    %352 = vector.extract_strided_slice %351 {offsets = [0, 0, 4], sizes = [2, 1, 256], strides = [1, 1, 1]} : vector<2x1x262xf32> to vector<2x1x256xf32>
    %c4_28 = arith.constant 4 : index
    %c0_29 = arith.constant 0 : index
    %353 = vector.load %arg8[%c4_28, %c0_29] : memref<7x256xf32, #tpu.memory_space<vmem>>, vector<1x256xf32>
    %354 = vector.shape_cast %353 : vector<1x256xf32> to vector<1x1x256xf32>
    %355 = vector.broadcast %354 : vector<1x1x256xf32> to vector<2x1x256xf32>
    %356 = arith.mulf %352, %355 : vector<2x1x256xf32>
    %c5 = arith.constant 5 : index
    %357 = memref.load %arg6[%c5] : memref<98xf32, #tpu.memory_space<smem>>
    %358 = vector.broadcast %357 : f32 to vector<2x1x262xf32>
    %359 = arith.mulf %358, %47 : vector<2x1x262xf32>
    %c12 = arith.constant 12 : index
    %360 = memref.load %arg6[%c12] : memref<98xf32, #tpu.memory_space<smem>>
    %361 = vector.broadcast %360 : f32 to vector<2x1x262xf32>
    %362 = arith.mulf %361, %48 : vector<2x1x262xf32>
    %c19 = arith.constant 19 : index
    %363 = memref.load %arg6[%c19] : memref<98xf32, #tpu.memory_space<smem>>
    %364 = vector.broadcast %363 : f32 to vector<2x1x262xf32>
    %365 = arith.mulf %364, %49 : vector<2x1x262xf32>
    %c26 = arith.constant 26 : index
    %366 = memref.load %arg6[%c26] : memref<98xf32, #tpu.memory_space<smem>>
    %367 = vector.broadcast %366 : f32 to vector<2x1x262xf32>
    %368 = arith.mulf %367, %50 : vector<2x1x262xf32>
    %c33 = arith.constant 33 : index
    %369 = memref.load %arg6[%c33] : memref<98xf32, #tpu.memory_space<smem>>
    %370 = vector.broadcast %369 : f32 to vector<2x1x262xf32>
    %371 = arith.mulf %370, %51 : vector<2x1x262xf32>
    %c40 = arith.constant 40 : index
    %372 = memref.load %arg6[%c40] : memref<98xf32, #tpu.memory_space<smem>>
    %373 = vector.broadcast %372 : f32 to vector<2x1x262xf32>
    %374 = arith.mulf %373, %52 : vector<2x1x262xf32>
    %c47 = arith.constant 47 : index
    %375 = memref.load %arg6[%c47] : memref<98xf32, #tpu.memory_space<smem>>
    %376 = vector.broadcast %375 : f32 to vector<2x1x262xf32>
    %377 = arith.mulf %376, %53 : vector<2x1x262xf32>
    %378 = arith.addf %359, %362 : vector<2x1x262xf32>
    %379 = arith.addf %365, %368 : vector<2x1x262xf32>
    %380 = arith.addf %371, %374 : vector<2x1x262xf32>
    %381 = arith.addf %378, %379 : vector<2x1x262xf32>
    %382 = arith.addf %380, %377 : vector<2x1x262xf32>
    %383 = arith.addf %381, %382 : vector<2x1x262xf32>
    %c54 = arith.constant 54 : index
    %384 = memref.load %arg6[%c54] : memref<98xf32, #tpu.memory_space<smem>>
    %385 = vector.broadcast %384 : f32 to vector<2x1x262xf32>
    %386 = arith.mulf %385, %54 : vector<2x1x262xf32>
    %c61 = arith.constant 61 : index
    %387 = memref.load %arg6[%c61] : memref<98xf32, #tpu.memory_space<smem>>
    %388 = vector.broadcast %387 : f32 to vector<2x1x262xf32>
    %389 = arith.mulf %388, %55 : vector<2x1x262xf32>
    %c68 = arith.constant 68 : index
    %390 = memref.load %arg6[%c68] : memref<98xf32, #tpu.memory_space<smem>>
    %391 = vector.broadcast %390 : f32 to vector<2x1x262xf32>
    %392 = arith.mulf %391, %56 : vector<2x1x262xf32>
    %c75 = arith.constant 75 : index
    %393 = memref.load %arg6[%c75] : memref<98xf32, #tpu.memory_space<smem>>
    %394 = vector.broadcast %393 : f32 to vector<2x1x262xf32>
    %395 = arith.mulf %394, %57 : vector<2x1x262xf32>
    %c82 = arith.constant 82 : index
    %396 = memref.load %arg6[%c82] : memref<98xf32, #tpu.memory_space<smem>>
    %397 = vector.broadcast %396 : f32 to vector<2x1x262xf32>
    %398 = arith.mulf %397, %58 : vector<2x1x262xf32>
    %c89 = arith.constant 89 : index
    %399 = memref.load %arg6[%c89] : memref<98xf32, #tpu.memory_space<smem>>
    %400 = vector.broadcast %399 : f32 to vector<2x1x262xf32>
    %401 = arith.mulf %400, %59 : vector<2x1x262xf32>
    %c96 = arith.constant 96 : index
    %402 = memref.load %arg6[%c96] : memref<98xf32, #tpu.memory_space<smem>>
    %403 = vector.broadcast %402 : f32 to vector<2x1x262xf32>
    %404 = arith.mulf %403, %60 : vector<2x1x262xf32>
    %405 = arith.addf %386, %389 : vector<2x1x262xf32>
    %406 = arith.addf %392, %395 : vector<2x1x262xf32>
    %407 = arith.addf %398, %401 : vector<2x1x262xf32>
    %408 = arith.addf %405, %406 : vector<2x1x262xf32>
    %409 = arith.addf %407, %404 : vector<2x1x262xf32>
    %410 = arith.addf %408, %409 : vector<2x1x262xf32>
    %411 = arith.addf %383, %410 : vector<2x1x262xf32>
    %412 = vector.extract_strided_slice %411 {offsets = [0, 0, 5], sizes = [2, 1, 256], strides = [1, 1, 1]} : vector<2x1x262xf32> to vector<2x1x256xf32>
    %c5_30 = arith.constant 5 : index
    %c0_31 = arith.constant 0 : index
    %413 = vector.load %arg8[%c5_30, %c0_31] : memref<7x256xf32, #tpu.memory_space<vmem>>, vector<1x256xf32>
    %414 = vector.shape_cast %413 : vector<1x256xf32> to vector<1x1x256xf32>
    %415 = vector.broadcast %414 : vector<1x1x256xf32> to vector<2x1x256xf32>
    %416 = arith.mulf %412, %415 : vector<2x1x256xf32>
    %c6 = arith.constant 6 : index
    %417 = memref.load %arg6[%c6] : memref<98xf32, #tpu.memory_space<smem>>
    %418 = vector.broadcast %417 : f32 to vector<2x1x262xf32>
    %419 = arith.mulf %418, %47 : vector<2x1x262xf32>
    %c13 = arith.constant 13 : index
    %420 = memref.load %arg6[%c13] : memref<98xf32, #tpu.memory_space<smem>>
    %421 = vector.broadcast %420 : f32 to vector<2x1x262xf32>
    %422 = arith.mulf %421, %48 : vector<2x1x262xf32>
    %c20 = arith.constant 20 : index
    %423 = memref.load %arg6[%c20] : memref<98xf32, #tpu.memory_space<smem>>
    %424 = vector.broadcast %423 : f32 to vector<2x1x262xf32>
    %425 = arith.mulf %424, %49 : vector<2x1x262xf32>
    %c27 = arith.constant 27 : index
    %426 = memref.load %arg6[%c27] : memref<98xf32, #tpu.memory_space<smem>>
    %427 = vector.broadcast %426 : f32 to vector<2x1x262xf32>
    %428 = arith.mulf %427, %50 : vector<2x1x262xf32>
    %c34 = arith.constant 34 : index
    %429 = memref.load %arg6[%c34] : memref<98xf32, #tpu.memory_space<smem>>
    %430 = vector.broadcast %429 : f32 to vector<2x1x262xf32>
    %431 = arith.mulf %430, %51 : vector<2x1x262xf32>
    %c41 = arith.constant 41 : index
    %432 = memref.load %arg6[%c41] : memref<98xf32, #tpu.memory_space<smem>>
    %433 = vector.broadcast %432 : f32 to vector<2x1x262xf32>
    %434 = arith.mulf %433, %52 : vector<2x1x262xf32>
    %c48 = arith.constant 48 : index
    %435 = memref.load %arg6[%c48] : memref<98xf32, #tpu.memory_space<smem>>
    %436 = vector.broadcast %435 : f32 to vector<2x1x262xf32>
    %437 = arith.mulf %436, %53 : vector<2x1x262xf32>
    %438 = arith.addf %419, %422 : vector<2x1x262xf32>
    %439 = arith.addf %425, %428 : vector<2x1x262xf32>
    %440 = arith.addf %431, %434 : vector<2x1x262xf32>
    %441 = arith.addf %438, %439 : vector<2x1x262xf32>
    %442 = arith.addf %440, %437 : vector<2x1x262xf32>
    %443 = arith.addf %441, %442 : vector<2x1x262xf32>
    %c55 = arith.constant 55 : index
    %444 = memref.load %arg6[%c55] : memref<98xf32, #tpu.memory_space<smem>>
    %445 = vector.broadcast %444 : f32 to vector<2x1x262xf32>
    %446 = arith.mulf %445, %54 : vector<2x1x262xf32>
    %c62 = arith.constant 62 : index
    %447 = memref.load %arg6[%c62] : memref<98xf32, #tpu.memory_space<smem>>
    %448 = vector.broadcast %447 : f32 to vector<2x1x262xf32>
    %449 = arith.mulf %448, %55 : vector<2x1x262xf32>
    %c69 = arith.constant 69 : index
    %450 = memref.load %arg6[%c69] : memref<98xf32, #tpu.memory_space<smem>>
    %451 = vector.broadcast %450 : f32 to vector<2x1x262xf32>
    %452 = arith.mulf %451, %56 : vector<2x1x262xf32>
    %c76 = arith.constant 76 : index
    %453 = memref.load %arg6[%c76] : memref<98xf32, #tpu.memory_space<smem>>
    %454 = vector.broadcast %453 : f32 to vector<2x1x262xf32>
    %455 = arith.mulf %454, %57 : vector<2x1x262xf32>
    %c83 = arith.constant 83 : index
    %456 = memref.load %arg6[%c83] : memref<98xf32, #tpu.memory_space<smem>>
    %457 = vector.broadcast %456 : f32 to vector<2x1x262xf32>
    %458 = arith.mulf %457, %58 : vector<2x1x262xf32>
    %c90 = arith.constant 90 : index
    %459 = memref.load %arg6[%c90] : memref<98xf32, #tpu.memory_space<smem>>
    %460 = vector.broadcast %459 : f32 to vector<2x1x262xf32>
    %461 = arith.mulf %460, %59 : vector<2x1x262xf32>
    %c97 = arith.constant 97 : index
    %462 = memref.load %arg6[%c97] : memref<98xf32, #tpu.memory_space<smem>>
    %463 = vector.broadcast %462 : f32 to vector<2x1x262xf32>
    %464 = arith.mulf %463, %60 : vector<2x1x262xf32>
    %465 = arith.addf %446, %449 : vector<2x1x262xf32>
    %466 = arith.addf %452, %455 : vector<2x1x262xf32>
    %467 = arith.addf %458, %461 : vector<2x1x262xf32>
    %468 = arith.addf %465, %466 : vector<2x1x262xf32>
    %469 = arith.addf %467, %464 : vector<2x1x262xf32>
    %470 = arith.addf %468, %469 : vector<2x1x262xf32>
    %471 = arith.addf %443, %470 : vector<2x1x262xf32>
    %472 = vector.extract_strided_slice %471 {offsets = [0, 0, 6], sizes = [2, 1, 256], strides = [1, 1, 1]} : vector<2x1x262xf32> to vector<2x1x256xf32>
    %c6_32 = arith.constant 6 : index
    %c0_33 = arith.constant 0 : index
    %473 = vector.load %arg8[%c6_32, %c0_33] : memref<7x256xf32, #tpu.memory_space<vmem>>, vector<1x256xf32>
    %474 = vector.shape_cast %473 : vector<1x256xf32> to vector<1x1x256xf32>
    %475 = vector.broadcast %474 : vector<1x1x256xf32> to vector<2x1x256xf32>
    %476 = arith.mulf %472, %475 : vector<2x1x256xf32>
    %477 = arith.addf %120, %180 : vector<2x1x256xf32>
    %478 = arith.addf %240, %296 : vector<2x1x256xf32>
    %479 = arith.addf %356, %416 : vector<2x1x256xf32>
    %480 = arith.addf %477, %478 : vector<2x1x256xf32>
    %481 = arith.addf %479, %476 : vector<2x1x256xf32>
    %482 = arith.addf %480, %481 : vector<2x1x256xf32>
    %c0_34 = arith.constant 0 : index
    %483 = memref.load %arg7[%c0_34] : memref<1xf32, #tpu.memory_space<smem>>
    %484 = vector.broadcast %483 : f32 to vector<2x1x256xf32>
    %485 = arith.addf %482, %484 : vector<2x1x256xf32>
    %cst_35 = arith.constant 5.000000e-01 : f32
    %486 = vector.broadcast %cst_35 : f32 to vector<2x1x256xf32>
    %487 = arith.mulf %486, %485 : vector<2x1x256xf32>
    %488 = math.tanh %487 : vector<2x1x256xf32>
    %cst_36 = arith.constant 5.000000e-01 : f32
    %489 = vector.broadcast %cst_36 : f32 to vector<2x1x256xf32>
    %490 = arith.mulf %489, %488 : vector<2x1x256xf32>
    %cst_37 = arith.constant 5.000000e-01 : f32
    %491 = vector.broadcast %cst_37 : f32 to vector<2x1x256xf32>
    %492 = arith.addf %490, %491 : vector<2x1x256xf32>
    %493 = vector.broadcast %492 : vector<2x1x256xf32> to vector<2x32x256xf32>
    %494 = arith.mulf %37, %493 : vector<2x32x256xf32>
    %c0_38 = arith.constant 0 : index
    %c0_39 = arith.constant 0 : index
    %c0_40 = arith.constant 0 : index
    %495 = vector.load %arg9[%c0_38, %c0_39, %c0_40] : memref<2x32x256xf32, #tpu.memory_space<vmem>>, vector<2x32x256xf32>
    tpu.vector_store %arg9[%c0_38, %c0_39, %c0_40], %494 {strides = array<i32>} : memref<2x32x256xf32, #tpu.memory_space<vmem>>, vector<2x32x256xf32>,
    return
  }
  func.func @transform_0(%arg0: i32) -> (i32, i32, i32) {
    %c0_i32 = arith.constant 0 : i32
    %c0_i32_0 = arith.constant 0 : i32
    %c0_i32_1 = arith.constant 0 : i32
    return %arg0, %c0_i32, %c0_i32_0 : i32, i32, i32
  }
  func.func @transform_1(%arg0: i32) -> (i32, i32) {
    %c0_i32 = arith.constant 0 : i32
    %c0_i32_0 = arith.constant 0 : i32
    %c0_i32_1 = arith.constant 0 : i32
    return %c0_i32, %c0_i32_0 : i32, i32
  }
  func.func @transform_2(%arg0: i32) -> (i32, i32) {
    %c0_i32 = arith.constant 0 : i32
    %c0_i32_0 = arith.constant 0 : i32
    %c0_i32_1 = arith.constant 0 : i32
    return %c0_i32, %c0_i32_0 : i32, i32
  }
  func.func @transform_3(%arg0: i32) -> (i32, i32) {
    %c0_i32 = arith.constant 0 : i32
    %c0_i32_0 = arith.constant 0 : i32
    %c0_i32_1 = arith.constant 0 : i32
    return %c0_i32, %c0_i32_0 : i32, i32
  }
  func.func @transform_4(%arg0: i32) -> (i32, i32) {
    %c0_i32 = arith.constant 0 : i32
    %c0_i32_0 = arith.constant 0 : i32
    %c0_i32_1 = arith.constant 0 : i32
    return %c0_i32, %c0_i32_0 : i32, i32
  }
  func.func @transform_5(%arg0: i32) -> i32 {
    %c0_i32 = arith.constant 0 : i32
    %c0_i32_0 = arith.constant 0 : i32
    return %c0_i32 : i32
  }
  func.func @transform_6(%arg0: i32) -> i32 {
    %c0_i32 = arith.constant 0 : i32
    %c0_i32_0 = arith.constant 0 : i32
    return %c0_i32 : i32
  }
  func.func @transform_7(%arg0: i32) -> (i32, i32) {
    %c0_i32 = arith.constant 0 : i32
    %c0_i32_0 = arith.constant 0 : i32
    %c0_i32_1 = arith.constant 0 : i32
    return %c0_i32, %c0_i32_0 : i32, i32
  }
  func.func @transform_8(%arg0: i32) -> (i32, i32, i32) {
    %c0_i32 = arith.constant 0 : i32
    %c0_i32_0 = arith.constant 0 : i32
    %c0_i32_1 = arith.constant 0 : i32
    return %arg0, %c0_i32, %c0_i32_0 : i32, i32, i32
  }
}

</mosaic_0001>

<llo_original>
// kernel: tpu_custom_call.1
$region0: #{tpu_custom_call.1}
  #allocation0 [shape = 'u32[]', space=smem, size = 0x4, offset = 0x4, fixed_abs, tag = 'smem constant byte address 0x4 - core index']
  #allocation1 [shape = 'u32[144,128]{1,0:T(1,128)}', space=vmem, size = 0x12000, scoped, tag = 'internal scratch']
  #allocation2 [shape = 'f32[1]{0:T(128)S(6)}', space=smem, size = 0x200, scoped, tag = 'scoped memory for tpu_custom_call.1']
  %s0 = inlined_call_operand.hbm [shape: f32[2,32,256], index: 0, kind: input, shape index: {}]
  %s1 = inlined_call_operand.vmem [shape: f32[32,2], index: 1, kind: input, shape index: {}]
  %s2 = inlined_call_operand.vmem [shape: f32[1,2], index: 2, kind: input, shape index: {}]
  %s3 = inlined_call_operand.vmem [shape: f32[32,2], index: 3, kind: input, shape index: {}]
  %s4 = inlined_call_operand.vmem [shape: f32[32,1], index: 4, kind: input, shape index: {}]
  %s5 = inlined_call_operand.vmem [shape: f32[98], index: 5, kind: input, shape index: {}]
  %s6 = inlined_call_operand.<no memory space> [shape: f32[1], index: 6, kind: input, shape index: {}]
  %s7 = inlined_call_operand.vmem [shape: f32[7,256], index: 7, kind: input, shape index: {}]
  %s8 = inlined_call_operand.hbm [shape: f32[2,32,256], index: 8, kind: output, shape index: {}]
  %s9 = sld [smem:[#allocation0]]
  $region50: #{tpu_custom_call.1} parent=0
    _
  %s11 = ssub.s32 1, %s9
  %s12 = scalar_select 0, %s11, %s9
  %13 = sst [smem:[#allocation2]] %s6
  $region1: #{tpu_custom_call.1} parent=0
    #allocation3 [shape = 'u8[65536]{0}', space=vmem, size = 0x10000, scoped, tag = 'input window, operand 0, single buffered']
    #allocation4 [shape = 's32[1]{0}', space=sflag, size = 0x4, scoped, tag = 'scoped memory for tpu_custom_call.1']
    #allocation5 [shape = 's32[1]{0}', space=sflag, size = 0x4, scoped, tag = 'scoped memory for tpu_custom_call.1']
    #allocation6 [shape = 's32[1]{0}', space=sflag, size = 0x4, scoped, tag = 'scoped memory for tpu_custom_call.1']
    #allocation7 [shape = 'u8[512]{0}', space=smem, size = 0x200, scoped, tag = 'input window, operand 5, single buffered']
    #allocation8 [shape = 'u8[65536]{0}', space=vmem, size = 0x10000, scoped, tag = 'output window, operand 0, single buffered']
    %14 = vsyncpa [#allocation4], 0
    %15 = vsyncpa [#allocation6], 0
    %16 = vsyncpa [#allocation5], 0
    // Predicated region
    $region2: #{tpu_custom_call.1} parent=1 // pred_check
      _
    $region3: #{tpu_custom_call.1} parent=1 // pred_check_branch
      %18 = sbr.rel (0) target = $region5
    $region4: #{tpu_custom_call.1} parent=1 // pred_region
      %s20 = ssub.s32 2048, 2048
      %21 = vsyncadd [#allocation4], %s20
      %s22 = sshll.u32 [#allocation3], 4
      %s23 = int_to_ptr.vmem [resolvable:$true] %s22
      %28 = dma.hbm_to_vmem [thread:$0]  %s0, 2048, %s23, [#allocation4], 256, 256, 16
    $region5: #{tpu_custom_call.1} parent=1 // pred_fallthru
      _
    // Predicated region
    $region6: #{tpu_custom_call.1} parent=1 // pred_check
      _
    $region7: #{tpu_custom_call.1} parent=1 // pred_check_branch
      %30 = sbr.rel (0) target = $region9
    $region8: #{tpu_custom_call.1} parent=1 // pred_region
      _
    $region9: #{tpu_custom_call.1} parent=1 // pred_fallthru
      _
    // Predicated region
    $region10: #{tpu_custom_call.1} parent=1 // pred_check
      _
    $region11: #{tpu_custom_call.1} parent=1 // pred_check_branch
      %32 = sbr.rel (0) target = $region13
    $region12: #{tpu_custom_call.1} parent=1 // pred_region
      _
    $region13: #{tpu_custom_call.1} parent=1 // pred_fallthru
      _
    // Predicated region
    $region14: #{tpu_custom_call.1} parent=1 // pred_check
      _
    $region15: #{tpu_custom_call.1} parent=1 // pred_check_branch
      %34 = sbr.rel (0) target = $region17
    $region16: #{tpu_custom_call.1} parent=1 // pred_region
      _
    $region17: #{tpu_custom_call.1} parent=1 // pred_fallthru
      _
    // Predicated region
    $region18: #{tpu_custom_call.1} parent=1 // pred_check
      _
    $region19: #{tpu_custom_call.1} parent=1 // pred_check_branch
      %36 = sbr.rel (0) target = $region21
    $region20: #{tpu_custom_call.1} parent=1 // pred_region
      _
    $region21: #{tpu_custom_call.1} parent=1 // pred_fallthru
      _
    // Predicated region
    $region22: #{tpu_custom_call.1} parent=1 // pred_check
      _
    $region23: #{tpu_custom_call.1} parent=1 // pred_check_branch
      %38 = sbr.rel (0) target = $region25
    $region24: #{tpu_custom_call.1} parent=1 // pred_region
      %s40 = ssub.s32 16, 16
      %41 = vsyncadd [#allocation6], %s40
      %s43 = sshll.u32 %s5, 4
      %s44 = int_to_ptr.vmem [resolvable:$true] %s43
      %46 = dma.vmem_to_smem %s44, 16, [#allocation7], [#allocation6]
    $region25: #{tpu_custom_call.1} parent=1 // pred_fallthru
      _
    // Predicated region
    $region26: #{tpu_custom_call.1} parent=1 // pred_check
      _
    $region27: #{tpu_custom_call.1} parent=1 // pred_check_branch
      %48 = sbr.rel (0) target = $region29
    $region28: #{tpu_custom_call.1} parent=1 // pred_region
      _
    $region29: #{tpu_custom_call.1} parent=1 // pred_fallthru
      _
    // Predicated region
    $region30: #{tpu_custom_call.1} parent=1 // pred_check
      _
    $region31: #{tpu_custom_call.1} parent=1 // pred_check_branch
      %50 = sbr.rel (0) target = $region33
    $region32: #{tpu_custom_call.1} parent=1 // pred_region
      _
    $region33: #{tpu_custom_call.1} parent=1 // pred_fallthru
      _
    // Predicated region
    $region34: #{tpu_custom_call.1} parent=1 // pred_check
      _
    $region35: #{tpu_custom_call.1} parent=1 // pred_check_branch
      %52 = sbr.rel (0) target = $region37
    $region36: #{tpu_custom_call.1} parent=1 // pred_region
      %53 = dma.done [#allocation4], 2048
    $region37: #{tpu_custom_call.1} parent=1 // pred_fallthru
      _
    // Predicated region
    $region38: #{tpu_custom_call.1} parent=1 // pred_check
      _
    $region39: #{tpu_custom_call.1} parent=1 // pred_check_branch
      %55 = sbr.rel (0) target = $region41
    $region40: #{tpu_custom_call.1} parent=1 // pred_region
      %56 = dma.done [#allocation6], 16
    $region41: #{tpu_custom_call.1} parent=1 // pred_fallthru
      _
    %57 = sfence
    %v58 = vld [vmem:[#allocation3] sm:$0xff]
    %v59 = vld [vmem:[#allocation3 + $0x8] sm:$0xff]
    %v60 = vld [vmem:[#allocation3 + $0x10] sm:$0xff]
    %v61 = vld [vmem:[#allocation3 + $0x18] sm:$0xff]
    %v62 = vld [vmem:[#allocation3 + $0x20] sm:$0xff]
    %v63 = vld [vmem:[#allocation3 + $0x28] sm:$0xff]
    %v64 = vld [vmem:[#allocation3 + $0x30] sm:$0xff]
    %v65 = vld [vmem:[#allocation3 + $0x38] sm:$0xff]
    %v66 = vld [vmem:[#allocation3 + $0x40] sm:$0xff]
    %v67 = vld [vmem:[#allocation3 + $0x48] sm:$0xff]
    %v68 = vld [vmem:[#allocation3 + $0x50] sm:$0xff]
    %v69 = vld [vmem:[#allocation3 + $0x58] sm:$0xff]
    %v70 = vld [vmem:[#allocation3 + $0x60] sm:$0xff]
    %v71 = vld [vmem:[#allocation3 + $0x68] sm:$0xff]
    %v72 = vld [vmem:[#allocation3 + $0x70] sm:$0xff]
    %v73 = vld [vmem:[#allocation3 + $0x78] sm:$0xff]
    %v74 = vadd.f32 %v58, %v59
    %75 = vadd.xlane.f32.xlu0 %v74
    %v76 = vpop.xlane.xlu0 %75
    %v77 = vadd.f32 %v60, %v61
    %78 = vadd.xlane.f32.xlu0 %v77
    %v79 = vpop.xlane.xlu0 %78
    %v80 = vadd.f32 %v62, %v63
    %81 = vadd.xlane.f32.xlu0 %v80
    %v82 = vpop.xlane.xlu0 %81
    %v83 = vadd.f32 %v64, %v65
    %84 = vadd.xlane.f32.xlu0 %v83
    %v85 = vpop.xlane.xlu0 %84
    %v86 = vadd.f32 %v66, %v67
    %87 = vadd.xlane.f32.xlu0 %v86
    %v88 = vpop.xlane.xlu0 %87
    %v89 = vadd.f32 %v68, %v69
    %90 = vadd.xlane.f32.xlu0 %v89
    %v91 = vpop.xlane.xlu0 %90
    %v92 = vadd.f32 %v70, %v71
    %93 = vadd.xlane.f32.xlu0 %v92
    %v94 = vpop.xlane.xlu0 %93
    %v95 = vadd.f32 %v72, %v73
    %96 = vadd.xlane.f32.xlu0 %v95
    %v97 = vpop.xlane.xlu0 %96
    %v98 = vmul.f32 %v76, 0.00390625
    %v99 = vmul.f32 %v79, 0.00390625
    %v100 = vmul.f32 %v82, 0.00390625
    %v101 = vmul.f32 %v85, 0.00390625
    %v102 = vmul.f32 %v88, 0.00390625
    %v103 = vmul.f32 %v91, 0.00390625
    %v104 = vmul.f32 %v94, 0.00390625
    %v105 = vmul.f32 %v97, 0.00390625
    %v106 = vld [vmem:[%s1] sm:$0xff]
    %v107 = vld [vmem:[%s1 + $0x8] sm:$0xff]
    %v108 = vld [vmem:[%s1 + $0x10] sm:$0xff]
    %v109 = vld [vmem:[%s1 + $0x18] sm:$0xff]
    %v110 = vmul.f32 %v98, %v106
    %v111 = vmul.f32 %v99, %v107
    %v112 = vmul.f32 %v100, %v108
    %v113 = vmul.f32 %v101, %v109
    %v114 = vmul.f32 %v102, %v106
    %v115 = vmul.f32 %v103, %v107
    %v116 = vmul.f32 %v104, %v108
    %v117 = vmul.f32 %v105, %v109
    %vm118 = vcmask 15360
    %v119 = vsel %vm118, %v110, 0.0
    %v120 = vsel %vm118, %v111, 0.0
    %v121 = vadd.f32 %v119, %v120
    %v122 = vsel %vm118, %v112, 0.0
    %v123 = vadd.f32 %v121, %v122
    %v124 = vsel %vm118, %v113, 0.0
    %v125 = vadd.f32 %v123, %v124
    %v126 = vrot.slane %v125, 4
    %v127 = vadd.f32 %v125, %v126
    %v128 = vrot.slane %v127, 2
    %v129 = vadd.f32 %v127, %v128
    %v130 = vrot.slane %v129, 1
    %v131 = vadd.f32 %v129, %v130
    %v132 = vsel %vm118, %v114, 0.0
    %v133 = vsel %vm118, %v115, 0.0
    %v134 = vadd.f32 %v132, %v133
    %v135 = vsel %vm118, %v116, 0.0
    %v136 = vadd.f32 %v134, %v135
    %v137 = vsel %vm118, %v117, 0.0
    %v138 = vadd.f32 %v136, %v137
    %v139 = vrot.slane %v138, 4
    %v140 = vadd.f32 %v138, %v139
    %v141 = vrot.slane %v140, 2
    %v142 = vadd.f32 %v140, %v141
    %v143 = vrot.slane %v142, 1
    %v144 = vadd.f32 %v142, %v143
    %v145 = vld [vmem:[%s2] sm:$0x1]
    %v146 = vadd.f32 %v131, %v145
    %v147 = vadd.f32 %v144, %v145
    %v148 = vmax.f32 %v146, 0.0
    %v149 = vmax.f32 %v147, 0.0
    %v150 = vld [vmem:[%s3] sm:$0xff]
    %v151 = vld [vmem:[%s3 + $0x8] sm:$0xff]
    %v152 = vld [vmem:[%s3 + $0x10] sm:$0xff]
    %v153 = vld [vmem:[%s3 + $0x18] sm:$0xff]
    %v154 = vlaneseq
    %v155 = vshrl.u32 %v154, 7
    %v156 = vsub.s32 0, %v155
    %v157 = vrot.slane %v148, %v156
    %v158 = vlaneseq
    %v159 = vshrl.u32 %v158, 7
    %v160 = vsub.s32 0, %v159
    %v161 = vrot.slane %v149, %v160
    %v162 = vmul.f32 %v157, %v150
    %v163 = vmul.f32 %v157, %v151
    %v164 = vmul.f32 %v157, %v152
    %v165 = vmul.f32 %v157, %v153
    %v166 = vmul.f32 %v161, %v150
    %v167 = vmul.f32 %v161, %v151
    %v168 = vmul.f32 %v161, %v152
    %v169 = vmul.f32 %v161, %v153
    %v170 = vsel %vm118, %v162, 0.0
    %171 = vadd.xlane.f32.xlu0 %v170
    %v172 = vpop.xlane.xlu0 %171
    %v173 = vsel %vm118, %v163, 0.0
    %174 = vadd.xlane.f32.xlu0 %v173
    %v175 = vpop.xlane.xlu0 %174
    %v176 = vsel %vm118, %v164, 0.0
    %177 = vadd.xlane.f32.xlu0 %v176
    %v178 = vpop.xlane.xlu0 %177
    %v179 = vsel %vm118, %v165, 0.0
    %180 = vadd.xlane.f32.xlu0 %v179
    %v181 = vpop.xlane.xlu0 %180
    %v182 = vsel %vm118, %v166, 0.0
    %183 = vadd.xlane.f32.xlu0 %v182
    %v184 = vpop.xlane.xlu0 %183
    %v185 = vsel %vm118, %v167, 0.0
    %186 = vadd.xlane.f32.xlu0 %v185
    %v187 = vpop.xlane.xlu0 %186
    %v188 = vsel %vm118, %v168, 0.0
    %189 = vadd.xlane.f32.xlu0 %v188
    %v190 = vpop.xlane.xlu0 %189
    %v191 = vsel %vm118, %v169, 0.0
    %192 = vadd.xlane.f32.xlu0 %v191
    %v193 = vpop.xlane.xlu0 %192
    %v194 = vld [vmem:[%s4] sm:$0xff]
    %v195 = vld [vmem:[%s4 + $0x8] sm:$0xff]
    %v196 = vld [vmem:[%s4 + $0x10] sm:$0xff]
    %v197 = vld [vmem:[%s4 + $0x18] sm:$0xff]
    %v198 = vadd.f32 %v172, %v194
    %v199 = vadd.f32 %v175, %v195
    %v200 = vadd.f32 %v178, %v196
    %v201 = vadd.f32 %v181, %v197
    %v202 = vadd.f32 %v184, %v194
    %v203 = vadd.f32 %v187, %v195
    %v204 = vadd.f32 %v190, %v196
    %v205 = vadd.f32 %v193, %v197
    %v206 = vmul.f32 %v198, 0.5
    %v207 = vmul.f32 %v199, 0.5
    %v208 = vmul.f32 %v200, 0.5
    %v209 = vmul.f32 %v201, 0.5
    %v210 = vmul.f32 %v202, 0.5
    %v211 = vmul.f32 %v203, 0.5
    %v212 = vmul.f32 %v204, 0.5
    %v213 = vmul.f32 %v205, 0.5
    %v214 = vtanh.pop %v206
    %v215 = vtanh.pop %v207
    %v216 = vtanh.pop %v208
    %v217 = vtanh.pop %v209
    %v218 = vtanh.pop %v210
    %v219 = vtanh.pop %v211
    %v220 = vtanh.pop %v212
    %v221 = vtanh.pop %v213
    %v222 = vmul.f32 %v214, 0.5
    %v223 = vmul.f32 %v215, 0.5
    %v224 = vmul.f32 %v216, 0.5
    %v225 = vmul.f32 %v217, 0.5
    %v226 = vmul.f32 %v218, 0.5
    %v227 = vmul.f32 %v219, 0.5
    %v228 = vmul.f32 %v220, 0.5
    %v229 = vmul.f32 %v221, 0.5
    %v230 = vadd.f32 %v222, 0.5
    %v231 = vadd.f32 %v223, 0.5
    %v232 = vadd.f32 %v224, 0.5
    %v233 = vadd.f32 %v225, 0.5
    %v234 = vadd.f32 %v226, 0.5
    %v235 = vadd.f32 %v227, 0.5
    %v236 = vadd.f32 %v228, 0.5
    %v237 = vadd.f32 %v229, 0.5
    %239 = vset.pattern.permute.xlu0 0
    %240 = vperm.xlu0 %239, %v230
    %v241 = vpop.permute.xlu0 %240
    %244 = vset.pattern.permute.xlu0 0
    %245 = vperm.xlu0 %244, %v231
    %v246 = vpop.permute.xlu0 %245
    %249 = vset.pattern.permute.xlu0 0
    %250 = vperm.xlu0 %249, %v232
    %v251 = vpop.permute.xlu0 %250
    %254 = vset.pattern.permute.xlu0 0
    %255 = vperm.xlu0 %254, %v233
    %v256 = vpop.permute.xlu0 %255
    %259 = vset.pattern.permute.xlu0 0
    %260 = vperm.xlu0 %259, %v234
    %v261 = vpop.permute.xlu0 %260
    %264 = vset.pattern.permute.xlu0 0
    %265 = vperm.xlu0 %264, %v235
    %v266 = vpop.permute.xlu0 %265
    %269 = vset.pattern.permute.xlu0 0
    %270 = vperm.xlu0 %269, %v236
    %v271 = vpop.permute.xlu0 %270
    %274 = vset.pattern.permute.xlu0 0
    %275 = vperm.xlu0 %274, %v237
    %v276 = vpop.permute.xlu0 %275
    %v278 = vmul.f32 %v58, %v241
    %v279 = vmul.f32 %v59, %v241
    %v280 = vmul.f32 %v60, %v246
    %v281 = vmul.f32 %v61, %v246
    %v282 = vmul.f32 %v62, %v251
    %v283 = vmul.f32 %v63, %v251
    %v284 = vmul.f32 %v64, %v256
    %v285 = vmul.f32 %v65, %v256
    %v286 = vmul.f32 %v66, %v261
    %v287 = vmul.f32 %v67, %v261
    %v288 = vmul.f32 %v68, %v266
    %v289 = vmul.f32 %v69, %v266
    %v290 = vmul.f32 %v70, %v271
    %v291 = vmul.f32 %v71, %v271
    %v292 = vmul.f32 %v72, %v276
    %v293 = vmul.f32 %v73, %v276
    %v294 = vadd.f32 %v278, %v280
    %v295 = vadd.f32 %v294, %v282
    %v296 = vadd.f32 %v295, %v284
    %v297 = vrot.slane %v296, 4
    %v298 = vadd.f32 %v296, %v297
    %v299 = vrot.slane %v298, 2
    %v300 = vadd.f32 %v298, %v299
    %v301 = vrot.slane %v300, 1
    %v302 = vadd.f32 %v300, %v301
    %v303 = vadd.f32 %v279, %v281
    %v304 = vadd.f32 %v303, %v283
    %v305 = vadd.f32 %v304, %v285
    %v306 = vrot.slane %v305, 4
    %v307 = vadd.f32 %v305, %v306
    %v308 = vrot.slane %v307, 2
    %v309 = vadd.f32 %v307, %v308
    %v310 = vrot.slane %v309, 1
    %v311 = vadd.f32 %v309, %v310
    %v312 = vadd.f32 %v286, %v288
    %v313 = vadd.f32 %v312, %v290
    %v314 = vadd.f32 %v313, %v292
    %v315 = vrot.slane %v314, 4
    %v316 = vadd.f32 %v314, %v315
    %v317 = vrot.slane %v316, 2
    %v318 = vadd.f32 %v316, %v317
    %v319 = vrot.slane %v318, 1
    %v320 = vadd.f32 %v318, %v319
    %v321 = vadd.f32 %v287, %v289
    %v322 = vadd.f32 %v321, %v291
    %v323 = vadd.f32 %v322, %v293
    %v324 = vrot.slane %v323, 4
    %v325 = vadd.f32 %v323, %v324
    %v326 = vrot.slane %v325, 2
    %v327 = vadd.f32 %v325, %v326
    %v328 = vrot.slane %v327, 1
    %v329 = vadd.f32 %v327, %v328
    %v330 = vmul.f32 %v302, 0.03125
    %v331 = vmul.f32 %v311, 0.03125
    %v332 = vmul.f32 %v320, 0.03125
    %v333 = vmul.f32 %v329, 0.03125
    %v334 = vmax.f32 %v278, %v280
    %v335 = vmax.f32 %v334, %v282
    %v336 = vmax.f32 %v335, %v284
    %v337 = vrot.slane %v336, 4
    %v338 = vmax.f32 %v336, %v337
    %v339 = vrot.slane %v338, 2
    %v340 = vmax.f32 %v338, %v339
    %v341 = vrot.slane %v340, 1
    %v342 = vmax.f32 %v340, %v341
    %v343 = vmax.f32 %v279, %v281
    %v344 = vmax.f32 %v343, %v283
    %v345 = vmax.f32 %v344, %v285
    %v346 = vrot.slane %v345, 4
    %v347 = vmax.f32 %v345, %v346
    %v348 = vrot.slane %v347, 2
    %v349 = vmax.f32 %v347, %v348
    %v350 = vrot.slane %v349, 1
    %v351 = vmax.f32 %v349, %v350
    %v352 = vmax.f32 %v286, %v288
    %v353 = vmax.f32 %v352, %v290
    %v354 = vmax.f32 %v353, %v292
    %v355 = vrot.slane %v354, 4
    %v356 = vmax.f32 %v354, %v355
    %v357 = vrot.slane %v356, 2
    %v358 = vmax.f32 %v356, %v357
    %v359 = vrot.slane %v358, 1
    %v360 = vmax.f32 %v358, %v359
    %v361 = vmax.f32 %v287, %v289
    %v362 = vmax.f32 %v361, %v291
    %v363 = vmax.f32 %v362, %v293
    %v364 = vrot.slane %v363, 4
    %v365 = vmax.f32 %v363, %v364
    %v366 = vrot.slane %v365, 2
    %v367 = vmax.f32 %v365, %v366
    %v368 = vrot.slane %v367, 1
    %v369 = vmax.f32 %v367, %v368
    %374 = vrot.lane.b32.xlu0 %v330, 51
    %v375 = vpop.permute.xlu0 %374
    %376 = vrot.lane.b32.xlu0 %v331, 51
    %v377 = vpop.permute.xlu0 %376
    %378 = vrot.lane.b32.xlu0 %v332, 51
    %v379 = vpop.permute.xlu0 %378
    %380 = vrot.lane.b32.xlu0 %v333, 51
    %v381 = vpop.permute.xlu0 %380
    %vm382 = vcmask 416768
    %v383 = vsel %vm382, %v375, %v377
    %v384 = vsel %vm382, %v379, %v381
    %v391 = vsel %vm382, 0.0, %v375
    %v392 = vsel %vm382, 0.0, %v379
    %v393 = vsel %vm382, %v377, 0.0
    %v394 = vsel %vm382, %v381, 0.0
    %399 = vrot.lane.b32.xlu0 %v342, 51
    %v400 = vpop.permute.xlu0 %399
    %401 = vrot.lane.b32.xlu0 %v351, 51
    %v402 = vpop.permute.xlu0 %401
    %403 = vrot.lane.b32.xlu0 %v360, 51
    %v404 = vpop.permute.xlu0 %403
    %405 = vrot.lane.b32.xlu0 %v369, 51
    %v406 = vpop.permute.xlu0 %405
    %v407 = vsel %vm382, %v400, %v402
    %v408 = vsel %vm382, %v404, %v406
    %v415 = vsel %vm382, 0.0, %v400
    %v416 = vsel %vm382, 0.0, %v404
    %v417 = vsel %vm382, %v402, 0.0
    %v418 = vsel %vm382, %v406, 0.0
    %s419 = sld [smem:[#allocation7]]
    %v420 = vstv %s419
    %v421 = vmul.f32 %v420, %v391
    %v422 = vmul.f32 %v420, %v383
    %v423 = vmul.f32 %v420, %v392
    %v424 = vmul.f32 %v420, %v384
    %s425 = sld [smem:[#allocation7 + $0x7]]
    %v426 = vstv %s425
    %v427 = vmul.f32 %v426, %v391
    %v428 = vmul.f32 %v426, %v383
    %v429 = vmul.f32 %v426, %v393
    %v430 = vmul.f32 %v426, %v392
    %v431 = vmul.f32 %v426, %v384
    %v432 = vmul.f32 %v426, %v394
    %s433 = sld [smem:[#allocation7 + $0xe]]
    %v434 = vstv %s433
    %v435 = vmul.f32 %v434, %v391
    %v436 = vmul.f32 %v434, %v383
    %v437 = vmul.f32 %v434, %v393
    %v438 = vmul.f32 %v434, %v392
    %v439 = vmul.f32 %v434, %v384
    %v440 = vmul.f32 %v434, %v394
    %s441 = sld [smem:[#allocation7 + $0x15]]
    %v442 = vstv %s441
    %v443 = vmul.f32 %v442, %v391
    %v444 = vmul.f32 %v442, %v383
    %v445 = vmul.f32 %v442, %v393
    %v446 = vmul.f32 %v442, %v392
    %v447 = vmul.f32 %v442, %v384
    %v448 = vmul.f32 %v442, %v394
    %s449 = sld [smem:[#allocation7 + $0x1c]]
    %v450 = vstv %s449
    %v451 = vmul.f32 %v450, %v391
    %v452 = vmul.f32 %v450, %v383
    %v453 = vmul.f32 %v450, %v393
    %v454 = vmul.f32 %v450, %v392
    %v455 = vmul.f32 %v450, %v384
    %v456 = vmul.f32 %v450, %v394
    %s457 = sld [smem:[#allocation7 + $0x23]]
    %v458 = vstv %s457
    %v459 = vmul.f32 %v458, %v391
    %v460 = vmul.f32 %v458, %v383
    %v461 = vmul.f32 %v458, %v393
    %v462 = vmul.f32 %v458, %v392
    %v463 = vmul.f32 %v458, %v384
    %v464 = vmul.f32 %v458, %v394
    %s465 = sld [smem:[#allocation7 + $0x2a]]
    %v466 = vstv %s465
    %v467 = vmul.f32 %v466, %v391
    %v468 = vmul.f32 %v466, %v383
    %v469 = vmul.f32 %v466, %v393
    %v470 = vmul.f32 %v466, %v392
    %v471 = vmul.f32 %v466, %v384
    %v472 = vmul.f32 %v466, %v394
    %479 = vrot.lane.b32.xlu0 %v427, 112
    %v480 = vpop.permute.xlu0 %479
    %481 = vrot.lane.b32.xlu0 %v428, 112
    %v482 = vpop.permute.xlu0 %481
    %483 = vrot.lane.b32.xlu0 %v429, 112
    %v484 = vpop.permute.xlu0 %483
    %485 = vrot.lane.b32.xlu0 %v430, 112
    %v486 = vpop.permute.xlu0 %485
    %487 = vrot.lane.b32.xlu0 %v431, 112
    %v488 = vpop.permute.xlu0 %487
    %489 = vrot.lane.b32.xlu0 %v432, 112
    %v490 = vpop.permute.xlu0 %489
    %vm491 = vcmask 916480
    %v492 = vsel %vm491, %v480, %v482
    %v493 = vsel %vm491, %v482, %v484
    %v494 = vsel %vm491, %v486, %v488
    %v495 = vsel %vm491, %v488, %v490
    %v500 = vadd.f32 %v421, %v492
    %v501 = vadd.f32 %v422, %v493
    %v502 = vadd.f32 %v423, %v494
    %v503 = vadd.f32 %v424, %v495
    %510 = vrot.lane.b32.xlu0 %v443, 112
    %v511 = vpop.permute.xlu0 %510
    %512 = vrot.lane.b32.xlu0 %v444, 112
    %v513 = vpop.permute.xlu0 %512
    %514 = vrot.lane.b32.xlu0 %v445, 112
    %v515 = vpop.permute.xlu0 %514
    %516 = vrot.lane.b32.xlu0 %v446, 112
    %v517 = vpop.permute.xlu0 %516
    %518 = vrot.lane.b32.xlu0 %v447, 112
    %v519 = vpop.permute.xlu0 %518
    %520 = vrot.lane.b32.xlu0 %v448, 112
    %v521 = vpop.permute.xlu0 %520
    %v522 = vsel %vm491, %v511, %v513
    %v523 = vsel %vm491, %v513, %v515
    %v524 = vsel %vm491, %v517, %v519
    %v525 = vsel %vm491, %v519, %v521
    %v532 = vadd.f32 %v435, %v522
    %v533 = vadd.f32 %v436, %v523
    %v534 = vadd.f32 %v437, %v515
    %v535 = vadd.f32 %v438, %v524
    %v536 = vadd.f32 %v439, %v525
    %v537 = vadd.f32 %v440, %v521
    %544 = vrot.lane.b32.xlu0 %v459, 112
    %v545 = vpop.permute.xlu0 %544
    %546 = vrot.lane.b32.xlu0 %v460, 112
    %v547 = vpop.permute.xlu0 %546
    %548 = vrot.lane.b32.xlu0 %v461, 112
    %v549 = vpop.permute.xlu0 %548
    %550 = vrot.lane.b32.xlu0 %v462, 112
    %v551 = vpop.permute.xlu0 %550
    %552 = vrot.lane.b32.xlu0 %v463, 112
    %v553 = vpop.permute.xlu0 %552
    %554 = vrot.lane.b32.xlu0 %v464, 112
    %v555 = vpop.permute.xlu0 %554
    %v556 = vsel %vm491, %v545, %v547
    %v557 = vsel %vm491, %v547, %v549
    %v558 = vsel %vm491, %v551, %v553
    %v559 = vsel %vm491, %v553, %v555
    %v566 = vadd.f32 %v451, %v556
    %v567 = vadd.f32 %v452, %v557
    %v568 = vadd.f32 %v453, %v549
    %v569 = vadd.f32 %v454, %v558
    %v570 = vadd.f32 %v455, %v559
    %v571 = vadd.f32 %v456, %v555
    %578 = vrot.lane.b32.xlu0 %v532, 96
    %v579 = vpop.permute.xlu0 %578
    %580 = vrot.lane.b32.xlu0 %v533, 96
    %v581 = vpop.permute.xlu0 %580
    %582 = vrot.lane.b32.xlu0 %v534, 96
    %v583 = vpop.permute.xlu0 %582
    %584 = vrot.lane.b32.xlu0 %v535, 96
    %v585 = vpop.permute.xlu0 %584
    %586 = vrot.lane.b32.xlu0 %v536, 96
    %v587 = vpop.permute.xlu0 %586
    %588 = vrot.lane.b32.xlu0 %v537, 96
    %v589 = vpop.permute.xlu0 %588
    %vm590 = vcmask 785408
    %v591 = vsel %vm590, %v579, %v581
    %v592 = vsel %vm590, %v581, %v583
    %v593 = vsel %vm590, %v585, %v587
    %v594 = vsel %vm590, %v587, %v589
    %v599 = vadd.f32 %v500, %v591
    %v600 = vadd.f32 %v501, %v592
    %v601 = vadd.f32 %v502, %v593
    %v602 = vadd.f32 %v503, %v594
    %609 = vrot.lane.b32.xlu0 %v467, 96
    %v610 = vpop.permute.xlu0 %609
    %611 = vrot.lane.b32.xlu0 %v468, 96
    %v612 = vpop.permute.xlu0 %611
    %613 = vrot.lane.b32.xlu0 %v469, 96
    %v614 = vpop.permute.xlu0 %613
    %615 = vrot.lane.b32.xlu0 %v470, 96
    %v616 = vpop.permute.xlu0 %615
    %617 = vrot.lane.b32.xlu0 %v471, 96
    %v618 = vpop.permute.xlu0 %617
    %619 = vrot.lane.b32.xlu0 %v472, 96
    %v620 = vpop.permute.xlu0 %619
    %v621 = vsel %vm590, %v610, %v612
    %v622 = vsel %vm590, %v612, %v614
    %v623 = vsel %vm590, %v616, %v618
    %v624 = vsel %vm590, %v618, %v620
    %v631 = vadd.f32 %v566, %v621
    %v632 = vadd.f32 %v567, %v622
    %v633 = vadd.f32 %v568, %v614
    %v634 = vadd.f32 %v569, %v623
    %v635 = vadd.f32 %v570, %v624
    %v636 = vadd.f32 %v571, %v620
    %643 = vrot.lane.b32.xlu0 %v631, 64
    %v644 = vpop.permute.xlu0 %643
    %645 = vrot.lane.b32.xlu0 %v632, 64
    %v646 = vpop.permute.xlu0 %645
    %647 = vrot.lane.b32.xlu0 %v633, 64
    %v648 = vpop.permute.xlu0 %647
    %649 = vrot.lane.b32.xlu0 %v634, 64
    %v650 = vpop.permute.xlu0 %649
    %651 = vrot.lane.b32.xlu0 %v635, 64
    %v652 = vpop.permute.xlu0 %651
    %653 = vrot.lane.b32.xlu0 %v636, 64
    %v654 = vpop.permute.xlu0 %653
    %vm655 = vcmask 523264
    %v656 = vsel %vm655, %v644, %v646
    %v657 = vsel %vm655, %v646, %v648
    %v658 = vsel %vm655, %v650, %v652
    %v659 = vsel %vm655, %v652, %v654
    %v664 = vadd.f32 %v599, %v656
    %v665 = vadd.f32 %v600, %v657
    %v666 = vadd.f32 %v601, %v658
    %v667 = vadd.f32 %v602, %v659
    %s668 = sld [smem:[#allocation7 + $0x31]]
    %v669 = vstv %s668
    %v670 = vmul.f32 %v669, %v415
    %v671 = vmul.f32 %v669, %v407
    %v672 = vmul.f32 %v669, %v416
    %v673 = vmul.f32 %v669, %v408
    %s674 = sld [smem:[#allocation7 + $0x38]]
    %v675 = vstv %s674
    %v676 = vmul.f32 %v675, %v415
    %v677 = vmul.f32 %v675, %v407
    %v678 = vmul.f32 %v675, %v417
    %v679 = vmul.f32 %v675, %v416
    %v680 = vmul.f32 %v675, %v408
    %v681 = vmul.f32 %v675, %v418
    %s682 = sld [smem:[#allocation7 + $0x3f]]
    %v683 = vstv %s682
    %v684 = vmul.f32 %v683, %v415
    %v685 = vmul.f32 %v683, %v407
    %v686 = vmul.f32 %v683, %v417
    %v687 = vmul.f32 %v683, %v416
    %v688 = vmul.f32 %v683, %v408
    %v689 = vmul.f32 %v683, %v418
    %s690 = sld [smem:[#allocation7 + $0x46]]
    %v691 = vstv %s690
    %v692 = vmul.f32 %v691, %v415
    %v693 = vmul.f32 %v691, %v407
    %v694 = vmul.f32 %v691, %v417
    %v695 = vmul.f32 %v691, %v416
    %v696 = vmul.f32 %v691, %v408
    %v697 = vmul.f32 %v691, %v418
    %s698 = sld [smem:[#allocation7 + $0x4d]]
    %v699 = vstv %s698
    %v700 = vmul.f32 %v699, %v415
    %v701 = vmul.f32 %v699, %v407
    %v702 = vmul.f32 %v699, %v417
    %v703 = vmul.f32 %v699, %v416
    %v704 = vmul.f32 %v699, %v408
    %v705 = vmul.f32 %v699, %v418
    %s706 = sld [smem:[#allocation7 + $0x54]]
    %v707 = vstv %s706
    %v708 = vmul.f32 %v707, %v415
    %v709 = vmul.f32 %v707, %v407
    %v710 = vmul.f32 %v707, %v417
    %v711 = vmul.f32 %v707, %v416
    %v712 = vmul.f32 %v707, %v408
    %v713 = vmul.f32 %v707, %v418
    %s714 = sld [smem:[#allocation7 + $0x5b]]
    %v715 = vstv %s714
    %v716 = vmul.f32 %v715, %v415
    %v717 = vmul.f32 %v715, %v407
    %v718 = vmul.f32 %v715, %v417
    %v719 = vmul.f32 %v715, %v416
    %v720 = vmul.f32 %v715, %v408
    %v721 = vmul.f32 %v715, %v418
    %728 = vrot.lane.b32.xlu0 %v676, 112
    %v729 = vpop.permute.xlu0 %728
    %730 = vrot.lane.b32.xlu0 %v677, 112
    %v731 = vpop.permute.xlu0 %730
    %732 = vrot.lane.b32.xlu0 %v678, 112
    %v733 = vpop.permute.xlu0 %732
    %734 = vrot.lane.b32.xlu0 %v679, 112
    %v735 = vpop.permute.xlu0 %734
    %736 = vrot.lane.b32.xlu0 %v680, 112
    %v737 = vpop.permute.xlu0 %736
    %738 = vrot.lane.b32.xlu0 %v681, 112
    %v739 = vpop.permute.xlu0 %738
    %v740 = vsel %vm491, %v729, %v731
    %v741 = vsel %vm491, %v731, %v733
    %v742 = vsel %vm491, %v735, %v737
    %v743 = vsel %vm491, %v737, %v739
    %v748 = vadd.f32 %v670, %v740
    %v749 = vadd.f32 %v671, %v741
    %v750 = vadd.f32 %v672, %v742
    %v751 = vadd.f32 %v673, %v743
    %758 = vrot.lane.b32.xlu0 %v692, 112
    %v759 = vpop.permute.xlu0 %758
    %760 = vrot.lane.b32.xlu0 %v693, 112
    %v761 = vpop.permute.xlu0 %760
    %762 = vrot.lane.b32.xlu0 %v694, 112
    %v763 = vpop.permute.xlu0 %762
    %764 = vrot.lane.b32.xlu0 %v695, 112
    %v765 = vpop.permute.xlu0 %764
    %766 = vrot.lane.b32.xlu0 %v696, 112
    %v767 = vpop.permute.xlu0 %766
    %768 = vrot.lane.b32.xlu0 %v697, 112
    %v769 = vpop.permute.xlu0 %768
    %v770 = vsel %vm491, %v759, %v761
    %v771 = vsel %vm491, %v761, %v763
    %v772 = vsel %vm491, %v765, %v767
    %v773 = vsel %vm491, %v767, %v769
    %v780 = vadd.f32 %v684, %v770
    %v781 = vadd.f32 %v685, %v771
    %v782 = vadd.f32 %v686, %v763
    %v783 = vadd.f32 %v687, %v772
    %v784 = vadd.f32 %v688, %v773
    %v785 = vadd.f32 %v689, %v769
    %792 = vrot.lane.b32.xlu0 %v708, 112
    %v793 = vpop.permute.xlu0 %792
    %794 = vrot.lane.b32.xlu0 %v709, 112
    %v795 = vpop.permute.xlu0 %794
    %796 = vrot.lane.b32.xlu0 %v710, 112
    %v797 = vpop.permute.xlu0 %796
    %798 = vrot.lane.b32.xlu0 %v711, 112
    %v799 = vpop.permute.xlu0 %798
    %800 = vrot.lane.b32.xlu0 %v712, 112
    %v801 = vpop.permute.xlu0 %800
    %802 = vrot.lane.b32.xlu0 %v713, 112
    %v803 = vpop.permute.xlu0 %802
    %v804 = vsel %vm491, %v793, %v795
    %v805 = vsel %vm491, %v795, %v797
    %v806 = vsel %vm491, %v799, %v801
    %v807 = vsel %vm491, %v801, %v803
    %v814 = vadd.f32 %v700, %v804
    %v815 = vadd.f32 %v701, %v805
    %v816 = vadd.f32 %v702, %v797
    %v817 = vadd.f32 %v703, %v806
    %v818 = vadd.f32 %v704, %v807
    %v819 = vadd.f32 %v705, %v803
    %826 = vrot.lane.b32.xlu0 %v780, 96
    %v827 = vpop.permute.xlu0 %826
    %828 = vrot.lane.b32.xlu0 %v781, 96
    %v829 = vpop.permute.xlu0 %828
    %830 = vrot.lane.b32.xlu0 %v782, 96
    %v831 = vpop.permute.xlu0 %830
    %832 = vrot.lane.b32.xlu0 %v783, 96
    %v833 = vpop.permute.xlu0 %832
    %834 = vrot.lane.b32.xlu0 %v784, 96
    %v835 = vpop.permute.xlu0 %834
    %836 = vrot.lane.b32.xlu0 %v785, 96
    %v837 = vpop.permute.xlu0 %836
    %v838 = vsel %vm590, %v827, %v829
    %v839 = vsel %vm590, %v829, %v831
    %v840 = vsel %vm590, %v833, %v835
    %v841 = vsel %vm590, %v835, %v837
    %v846 = vadd.f32 %v748, %v838
    %v847 = vadd.f32 %v749, %v839
    %v848 = vadd.f32 %v750, %v840
    %v849 = vadd.f32 %v751, %v841
    %856 = vrot.lane.b32.xlu0 %v716, 96
    %v857 = vpop.permute.xlu0 %856
    %858 = vrot.lane.b32.xlu0 %v717, 96
    %v859 = vpop.permute.xlu0 %858
    %860 = vrot.lane.b32.xlu0 %v718, 96
    %v861 = vpop.permute.xlu0 %860
    %862 = vrot.lane.b32.xlu0 %v719, 96
    %v863 = vpop.permute.xlu0 %862
    %864 = vrot.lane.b32.xlu0 %v720, 96
    %v865 = vpop.permute.xlu0 %864
    %866 = vrot.lane.b32.xlu0 %v721, 96
    %v867 = vpop.permute.xlu0 %866
    %v868 = vsel %vm590, %v857, %v859
    %v869 = vsel %vm590, %v859, %v861
    %v870 = vsel %vm590, %v863, %v865
    %v871 = vsel %vm590, %v865, %v867
    %v878 = vadd.f32 %v814, %v868
    %v879 = vadd.f32 %v815, %v869
    %v880 = vadd.f32 %v816, %v861
    %v881 = vadd.f32 %v817, %v870
    %v882 = vadd.f32 %v818, %v871
    %v883 = vadd.f32 %v819, %v867
    %890 = vrot.lane.b32.xlu0 %v878, 64
    %v891 = vpop.permute.xlu0 %890
    %892 = vrot.lane.b32.xlu0 %v879, 64
    %v893 = vpop.permute.xlu0 %892
    %894 = vrot.lane.b32.xlu0 %v880, 64
    %v895 = vpop.permute.xlu0 %894
    %896 = vrot.lane.b32.xlu0 %v881, 64
    %v897 = vpop.permute.xlu0 %896
    %898 = vrot.lane.b32.xlu0 %v882, 64
    %v899 = vpop.permute.xlu0 %898
    %900 = vrot.lane.b32.xlu0 %v883, 64
    %v901 = vpop.permute.xlu0 %900
    %v902 = vsel %vm655, %v891, %v893
    %v903 = vsel %vm655, %v893, %v895
    %v904 = vsel %vm655, %v897, %v899
    %v905 = vsel %vm655, %v899, %v901
    %v910 = vadd.f32 %v846, %v902
    %v911 = vadd.f32 %v847, %v903
    %v912 = vadd.f32 %v848, %v904
    %v913 = vadd.f32 %v849, %v905
    %v914 = vadd.f32 %v664, %v910
    %v915 = vadd.f32 %v665, %v911
    %v916 = vadd.f32 %v666, %v912
    %v917 = vadd.f32 %v667, %v913
    %v918 = vld [vmem:[%s7] ss:$8 sm:$0x3]
    %v920 = vlaneseq
    %v921 = vshrl.u32 %v920, 7
    %v922 = vsub.s32 0, %v921
    %v923 = vrot.slane %v918, %v922
    %v924 = vlaneseq
    %v925 = vshrl.u32 %v924, 7
    %v926 = vsub.s32 1, %v925
    %v927 = vrot.slane %v918, %v926
    %v930 = vmul.f32 %v914, %v923
    %v931 = vmul.f32 %v915, %v927
    %v932 = vmul.f32 %v916, %v923
    %v933 = vmul.f32 %v917, %v927
    %s934 = sld [smem:[#allocation7 + $0x1]]
    %v935 = vstv %s934
    %v936 = vmul.f32 %v935, %v391
    %v937 = vmul.f32 %v935, %v383
    %v938 = vmul.f32 %v935, %v393
    %v939 = vmul.f32 %v935, %v392
    %v940 = vmul.f32 %v935, %v384
    %v941 = vmul.f32 %v935, %v394
    %s942 = sld [smem:[#allocation7 + $0x8]]
    %v943 = vstv %s942
    %v944 = vmul.f32 %v943, %v391
    %v945 = vmul.f32 %v943, %v383
    %v946 = vmul.f32 %v943, %v393
    %v947 = vmul.f32 %v943, %v392
    %v948 = vmul.f32 %v943, %v384
    %v949 = vmul.f32 %v943, %v394
    %s950 = sld [smem:[#allocation7 + $0xf]]
    %v951 = vstv %s950
    %v952 = vmul.f32 %v951, %v391
    %v953 = vmul.f32 %v951, %v383
    %v954 = vmul.f32 %v951, %v393
    %v955 = vmul.f32 %v951, %v392
    %v956 = vmul.f32 %v951, %v384
    %v957 = vmul.f32 %v951, %v394
    %s958 = sld [smem:[#allocation7 + $0x16]]
    %v959 = vstv %s958
    %v960 = vmul.f32 %v959, %v391
    %v961 = vmul.f32 %v959, %v383
    %v962 = vmul.f32 %v959, %v393
    %v963 = vmul.f32 %v959, %v392
    %v964 = vmul.f32 %v959, %v384
    %v965 = vmul.f32 %v959, %v394
    %s966 = sld [smem:[#allocation7 + $0x1d]]
    %v967 = vstv %s966
    %v968 = vmul.f32 %v967, %v391
    %v969 = vmul.f32 %v967, %v383
    %v970 = vmul.f32 %v967, %v393
    %v971 = vmul.f32 %v967, %v392
    %v972 = vmul.f32 %v967, %v384
    %v973 = vmul.f32 %v967, %v394
    %s974 = sld [smem:[#allocation7 + $0x24]]
    %v975 = vstv %s974
    %v976 = vmul.f32 %v975, %v391
    %v977 = vmul.f32 %v975, %v383
    %v978 = vmul.f32 %v975, %v393
    %v979 = vmul.f32 %v975, %v392
    %v980 = vmul.f32 %v975, %v384
    %v981 = vmul.f32 %v975, %v394
    %s982 = sld [smem:[#allocation7 + $0x2b]]
    %v983 = vstv %s982
    %v984 = vmul.f32 %v983, %v391
    %v985 = vmul.f32 %v983, %v383
    %v986 = vmul.f32 %v983, %v393
    %v987 = vmul.f32 %v983, %v392
    %v988 = vmul.f32 %v983, %v384
    %v989 = vmul.f32 %v983, %v394
    %996 = vrot.lane.b32.xlu0 %v944, 112
    %v997 = vpop.permute.xlu0 %996
    %998 = vrot.lane.b32.xlu0 %v945, 112
    %v999 = vpop.permute.xlu0 %998
    %1000 = vrot.lane.b32.xlu0 %v946, 112
    %v1001 = vpop.permute.xlu0 %1000
    %1002 = vrot.lane.b32.xlu0 %v947, 112
    %v1003 = vpop.permute.xlu0 %1002
    %1004 = vrot.lane.b32.xlu0 %v948, 112
    %v1005 = vpop.permute.xlu0 %1004
    %1006 = vrot.lane.b32.xlu0 %v949, 112
    %v1007 = vpop.permute.xlu0 %1006
    %v1008 = vsel %vm491, %v997, %v999
    %v1009 = vsel %vm491, %v999, %v1001
    %v1010 = vsel %vm491, %v1003, %v1005
    %v1011 = vsel %vm491, %v1005, %v1007
    %v1018 = vadd.f32 %v936, %v1008
    %v1019 = vadd.f32 %v937, %v1009
    %v1020 = vadd.f32 %v938, %v1001
    %v1021 = vadd.f32 %v939, %v1010
    %v1022 = vadd.f32 %v940, %v1011
    %v1023 = vadd.f32 %v941, %v1007
    %1030 = vrot.lane.b32.xlu0 %v960, 112
    %v1031 = vpop.permute.xlu0 %1030
    %1032 = vrot.lane.b32.xlu0 %v961, 112
    %v1033 = vpop.permute.xlu0 %1032
    %1034 = vrot.lane.b32.xlu0 %v962, 112
    %v1035 = vpop.permute.xlu0 %1034
    %1036 = vrot.lane.b32.xlu0 %v963, 112
    %v1037 = vpop.permute.xlu0 %1036
    %1038 = vrot.lane.b32.xlu0 %v964, 112
    %v1039 = vpop.permute.xlu0 %1038
    %1040 = vrot.lane.b32.xlu0 %v965, 112
    %v1041 = vpop.permute.xlu0 %1040
    %v1042 = vsel %vm491, %v1031, %v1033
    %v1043 = vsel %vm491, %v1033, %v1035
    %v1044 = vsel %vm491, %v1037, %v1039
    %v1045 = vsel %vm491, %v1039, %v1041
    %v1052 = vadd.f32 %v952, %v1042
    %v1053 = vadd.f32 %v953, %v1043
    %v1054 = vadd.f32 %v954, %v1035
    %v1055 = vadd.f32 %v955, %v1044
    %v1056 = vadd.f32 %v956, %v1045
    %v1057 = vadd.f32 %v957, %v1041
    %1064 = vrot.lane.b32.xlu0 %v976, 112
    %v1065 = vpop.permute.xlu0 %1064
    %1066 = vrot.lane.b32.xlu0 %v977, 112
    %v1067 = vpop.permute.xlu0 %1066
    %1068 = vrot.lane.b32.xlu0 %v978, 112
    %v1069 = vpop.permute.xlu0 %1068
    %1070 = vrot.lane.b32.xlu0 %v979, 112
    %v1071 = vpop.permute.xlu0 %1070
    %1072 = vrot.lane.b32.xlu0 %v980, 112
    %v1073 = vpop.permute.xlu0 %1072
    %1074 = vrot.lane.b32.xlu0 %v981, 112
    %v1075 = vpop.permute.xlu0 %1074
    %v1076 = vsel %vm491, %v1065, %v1067
    %v1077 = vsel %vm491, %v1067, %v1069
    %v1078 = vsel %vm491, %v1071, %v1073
    %v1079 = vsel %vm491, %v1073, %v1075
    %v1086 = vadd.f32 %v968, %v1076
    %v1087 = vadd.f32 %v969, %v1077
    %v1088 = vadd.f32 %v970, %v1069
    %v1089 = vadd.f32 %v971, %v1078
    %v1090 = vadd.f32 %v972, %v1079
    %v1091 = vadd.f32 %v973, %v1075
    %1098 = vrot.lane.b32.xlu0 %v1052, 96
    %v1099 = vpop.permute.xlu0 %1098
    %1100 = vrot.lane.b32.xlu0 %v1053, 96
    %v1101 = vpop.permute.xlu0 %1100
    %1102 = vrot.lane.b32.xlu0 %v1054, 96
    %v1103 = vpop.permute.xlu0 %1102
    %1104 = vrot.lane.b32.xlu0 %v1055, 96
    %v1105 = vpop.permute.xlu0 %1104
    %1106 = vrot.lane.b32.xlu0 %v1056, 96
    %v1107 = vpop.permute.xlu0 %1106
    %1108 = vrot.lane.b32.xlu0 %v1057, 96
    %v1109 = vpop.permute.xlu0 %1108
    %v1110 = vsel %vm590, %v1099, %v1101
    %v1111 = vsel %vm590, %v1101, %v1103
    %v1112 = vsel %vm590, %v1105, %v1107
    %v1113 = vsel %vm590, %v1107, %v1109
    %v1120 = vadd.f32 %v1018, %v1110
    %v1121 = vadd.f32 %v1019, %v1111
    %v1122 = vadd.f32 %v1020, %v1103
    %v1123 = vadd.f32 %v1021, %v1112
    %v1124 = vadd.f32 %v1022, %v1113
    %v1125 = vadd.f32 %v1023, %v1109
    %1132 = vrot.lane.b32.xlu0 %v984, 96
    %v1133 = vpop.permute.xlu0 %1132
    %1134 = vrot.lane.b32.xlu0 %v985, 96
    %v1135 = vpop.permute.xlu0 %1134
    %1136 = vrot.lane.b32.xlu0 %v986, 96
    %v1137 = vpop.permute.xlu0 %1136
    %1138 = vrot.lane.b32.xlu0 %v987, 96
    %v1139 = vpop.permute.xlu0 %1138
    %1140 = vrot.lane.b32.xlu0 %v988, 96
    %v1141 = vpop.permute.xlu0 %1140
    %1142 = vrot.lane.b32.xlu0 %v989, 96
    %v1143 = vpop.permute.xlu0 %1142
    %v1144 = vsel %vm590, %v1133, %v1135
    %v1145 = vsel %vm590, %v1135, %v1137
    %v1146 = vsel %vm590, %v1139, %v1141
    %v1147 = vsel %vm590, %v1141, %v1143
    %v1154 = vadd.f32 %v1086, %v1144
    %v1155 = vadd.f32 %v1087, %v1145
    %v1156 = vadd.f32 %v1088, %v1137
    %v1157 = vadd.f32 %v1089, %v1146
    %v1158 = vadd.f32 %v1090, %v1147
    %v1159 = vadd.f32 %v1091, %v1143
    %1166 = vrot.lane.b32.xlu0 %v1154, 64
    %v1167 = vpop.permute.xlu0 %1166
    %1168 = vrot.lane.b32.xlu0 %v1155, 64
    %v1169 = vpop.permute.xlu0 %1168
    %1170 = vrot.lane.b32.xlu0 %v1156, 64
    %v1171 = vpop.permute.xlu0 %1170
    %1172 = vrot.lane.b32.xlu0 %v1157, 64
    %v1173 = vpop.permute.xlu0 %1172
    %1174 = vrot.lane.b32.xlu0 %v1158, 64
    %v1175 = vpop.permute.xlu0 %1174
    %1176 = vrot.lane.b32.xlu0 %v1159, 64
    %v1177 = vpop.permute.xlu0 %1176
    %v1178 = vsel %vm655, %v1167, %v1169
    %v1179 = vsel %vm655, %v1169, %v1171
    %v1180 = vsel %vm655, %v1173, %v1175
    %v1181 = vsel %vm655, %v1175, %v1177
    %v1188 = vadd.f32 %v1120, %v1178
    %v1189 = vadd.f32 %v1121, %v1179
    %v1190 = vadd.f32 %v1122, %v1171
    %v1191 = vadd.f32 %v1123, %v1180
    %v1192 = vadd.f32 %v1124, %v1181
    %v1193 = vadd.f32 %v1125, %v1177
    %s1194 = sld [smem:[#allocation7 + $0x32]]
    %v1195 = vstv %s1194
    %v1196 = vmul.f32 %v1195, %v415
    %v1197 = vmul.f32 %v1195, %v407
    %v1198 = vmul.f32 %v1195, %v417
    %v1199 = vmul.f32 %v1195, %v416
    %v1200 = vmul.f32 %v1195, %v408
    %v1201 = vmul.f32 %v1195, %v418
    %s1202 = sld [smem:[#allocation7 + $0x39]]
    %v1203 = vstv %s1202
    %v1204 = vmul.f32 %v1203, %v415
    %v1205 = vmul.f32 %v1203, %v407
    %v1206 = vmul.f32 %v1203, %v417
    %v1207 = vmul.f32 %v1203, %v416
    %v1208 = vmul.f32 %v1203, %v408
    %v1209 = vmul.f32 %v1203, %v418
    %s1210 = sld [smem:[#allocation7 + $0x40]]
    %v1211 = vstv %s1210
    %v1212 = vmul.f32 %v1211, %v415
    %v1213 = vmul.f32 %v1211, %v407
    %v1214 = vmul.f32 %v1211, %v417
    %v1215 = vmul.f32 %v1211, %v416
    %v1216 = vmul.f32 %v1211, %v408
    %v1217 = vmul.f32 %v1211, %v418
    %s1218 = sld [smem:[#allocation7 + $0x47]]
    %v1219 = vstv %s1218
    %v1220 = vmul.f32 %v1219, %v415
    %v1221 = vmul.f32 %v1219, %v407
    %v1222 = vmul.f32 %v1219, %v417
    %v1223 = vmul.f32 %v1219, %v416
    %v1224 = vmul.f32 %v1219, %v408
    %v1225 = vmul.f32 %v1219, %v418
    %s1226 = sld [smem:[#allocation7 + $0x4e]]
    %v1227 = vstv %s1226
    %v1228 = vmul.f32 %v1227, %v415
    %v1229 = vmul.f32 %v1227, %v407
    %v1230 = vmul.f32 %v1227, %v417
    %v1231 = vmul.f32 %v1227, %v416
    %v1232 = vmul.f32 %v1227, %v408
    %v1233 = vmul.f32 %v1227, %v418
    %s1234 = sld [smem:[#allocation7 + $0x55]]
    %v1235 = vstv %s1234
    %v1236 = vmul.f32 %v1235, %v415
    %v1237 = vmul.f32 %v1235, %v407
    %v1238 = vmul.f32 %v1235, %v417
    %v1239 = vmul.f32 %v1235, %v416
    %v1240 = vmul.f32 %v1235, %v408
    %v1241 = vmul.f32 %v1235, %v418
    %s1242 = sld [smem:[#allocation7 + $0x5c]]
    %v1243 = vstv %s1242
    %v1244 = vmul.f32 %v1243, %v415
    %v1245 = vmul.f32 %v1243, %v407
    %v1246 = vmul.f32 %v1243, %v417
    %v1247 = vmul.f32 %v1243, %v416
    %v1248 = vmul.f32 %v1243, %v408
    %v1249 = vmul.f32 %v1243, %v418
    %1256 = vrot.lane.b32.xlu0 %v1204, 112
    %v1257 = vpop.permute.xlu0 %1256
    %1258 = vrot.lane.b32.xlu0 %v1205, 112
    %v1259 = vpop.permute.xlu0 %1258
    %1260 = vrot.lane.b32.xlu0 %v1206, 112
    %v1261 = vpop.permute.xlu0 %1260
    %1262 = vrot.lane.b32.xlu0 %v1207, 112
    %v1263 = vpop.permute.xlu0 %1262
    %1264 = vrot.lane.b32.xlu0 %v1208, 112
    %v1265 = vpop.permute.xlu0 %1264
    %1266 = vrot.lane.b32.xlu0 %v1209, 112
    %v1267 = vpop.permute.xlu0 %1266
    %v1268 = vsel %vm491, %v1257, %v1259
    %v1269 = vsel %vm491, %v1259, %v1261
    %v1270 = vsel %vm491, %v1263, %v1265
    %v1271 = vsel %vm491, %v1265, %v1267
    %v1278 = vadd.f32 %v1196, %v1268
    %v1279 = vadd.f32 %v1197, %v1269
    %v1280 = vadd.f32 %v1198, %v1261
    %v1281 = vadd.f32 %v1199, %v1270
    %v1282 = vadd.f32 %v1200, %v1271
    %v1283 = vadd.f32 %v1201, %v1267
    %1290 = vrot.lane.b32.xlu0 %v1220, 112
    %v1291 = vpop.permute.xlu0 %1290
    %1292 = vrot.lane.b32.xlu0 %v1221, 112
    %v1293 = vpop.permute.xlu0 %1292
    %1294 = vrot.lane.b32.xlu0 %v1222, 112
    %v1295 = vpop.permute.xlu0 %1294
    %1296 = vrot.lane.b32.xlu0 %v1223, 112
    %v1297 = vpop.permute.xlu0 %1296
    %1298 = vrot.lane.b32.xlu0 %v1224, 112
    %v1299 = vpop.permute.xlu0 %1298
    %1300 = vrot.lane.b32.xlu0 %v1225, 112
    %v1301 = vpop.permute.xlu0 %1300
    %v1302 = vsel %vm491, %v1291, %v1293
    %v1303 = vsel %vm491, %v1293, %v1295
    %v1304 = vsel %vm491, %v1297, %v1299
    %v1305 = vsel %vm491, %v1299, %v1301
    %v1312 = vadd.f32 %v1212, %v1302
    %v1313 = vadd.f32 %v1213, %v1303
    %v1314 = vadd.f32 %v1214, %v1295
    %v1315 = vadd.f32 %v1215, %v1304
    %v1316 = vadd.f32 %v1216, %v1305
    %v1317 = vadd.f32 %v1217, %v1301
    %1324 = vrot.lane.b32.xlu0 %v1236, 112
    %v1325 = vpop.permute.xlu0 %1324
    %1326 = vrot.lane.b32.xlu0 %v1237, 112
    %v1327 = vpop.permute.xlu0 %1326
    %1328 = vrot.lane.b32.xlu0 %v1238, 112
    %v1329 = vpop.permute.xlu0 %1328
    %1330 = vrot.lane.b32.xlu0 %v1239, 112
    %v1331 = vpop.permute.xlu0 %1330
    %1332 = vrot.lane.b32.xlu0 %v1240, 112
    %v1333 = vpop.permute.xlu0 %1332
    %1334 = vrot.lane.b32.xlu0 %v1241, 112
    %v1335 = vpop.permute.xlu0 %1334
    %v1336 = vsel %vm491, %v1325, %v1327
    %v1337 = vsel %vm491, %v1327, %v1329
    %v1338 = vsel %vm491, %v1331, %v1333
    %v1339 = vsel %vm491, %v1333, %v1335
    %v1346 = vadd.f32 %v1228, %v1336
    %v1347 = vadd.f32 %v1229, %v1337
    %v1348 = vadd.f32 %v1230, %v1329
    %v1349 = vadd.f32 %v1231, %v1338
    %v1350 = vadd.f32 %v1232, %v1339
    %v1351 = vadd.f32 %v1233, %v1335
    %1358 = vrot.lane.b32.xlu0 %v1312, 96
    %v1359 = vpop.permute.xlu0 %1358
    %1360 = vrot.lane.b32.xlu0 %v1313, 96
    %v1361 = vpop.permute.xlu0 %1360
    %1362 = vrot.lane.b32.xlu0 %v1314, 96
    %v1363 = vpop.permute.xlu0 %1362
    %1364 = vrot.lane.b32.xlu0 %v1315, 96
    %v1365 = vpop.permute.xlu0 %1364
    %1366 = vrot.lane.b32.xlu0 %v1316, 96
    %v1367 = vpop.permute.xlu0 %1366
    %1368 = vrot.lane.b32.xlu0 %v1317, 96
    %v1369 = vpop.permute.xlu0 %1368
    %v1370 = vsel %vm590, %v1359, %v1361
    %v1371 = vsel %vm590, %v1361, %v1363
    %v1372 = vsel %vm590, %v1365, %v1367
    %v1373 = vsel %vm590, %v1367, %v1369
    %v1380 = vadd.f32 %v1278, %v1370
    %v1381 = vadd.f32 %v1279, %v1371
    %v1382 = vadd.f32 %v1280, %v1363
    %v1383 = vadd.f32 %v1281, %v1372
    %v1384 = vadd.f32 %v1282, %v1373
    %v1385 = vadd.f32 %v1283, %v1369
    %1392 = vrot.lane.b32.xlu0 %v1244, 96
    %v1393 = vpop.permute.xlu0 %1392
    %1394 = vrot.lane.b32.xlu0 %v1245, 96
    %v1395 = vpop.permute.xlu0 %1394
    %1396 = vrot.lane.b32.xlu0 %v1246, 96
    %v1397 = vpop.permute.xlu0 %1396
    %1398 = vrot.lane.b32.xlu0 %v1247, 96
    %v1399 = vpop.permute.xlu0 %1398
    %1400 = vrot.lane.b32.xlu0 %v1248, 96
    %v1401 = vpop.permute.xlu0 %1400
    %1402 = vrot.lane.b32.xlu0 %v1249, 96
    %v1403 = vpop.permute.xlu0 %1402
    %v1404 = vsel %vm590, %v1393, %v1395
    %v1405 = vsel %vm590, %v1395, %v1397
    %v1406 = vsel %vm590, %v1399, %v1401
    %v1407 = vsel %vm590, %v1401, %v1403
    %v1414 = vadd.f32 %v1346, %v1404
    %v1415 = vadd.f32 %v1347, %v1405
    %v1416 = vadd.f32 %v1348, %v1397
    %v1417 = vadd.f32 %v1349, %v1406
    %v1418 = vadd.f32 %v1350, %v1407
    %v1419 = vadd.f32 %v1351, %v1403
    %1426 = vrot.lane.b32.xlu0 %v1414, 64
    %v1427 = vpop.permute.xlu0 %1426
    %1428 = vrot.lane.b32.xlu0 %v1415, 64
    %v1429 = vpop.permute.xlu0 %1428
    %1430 = vrot.lane.b32.xlu0 %v1416, 64
    %v1431 = vpop.permute.xlu0 %1430
    %1432 = vrot.lane.b32.xlu0 %v1417, 64
    %v1433 = vpop.permute.xlu0 %1432
    %1434 = vrot.lane.b32.xlu0 %v1418, 64
    %v1435 = vpop.permute.xlu0 %1434
    %1436 = vrot.lane.b32.xlu0 %v1419, 64
    %v1437 = vpop.permute.xlu0 %1436
    %v1438 = vsel %vm655, %v1427, %v1429
    %v1439 = vsel %vm655, %v1429, %v1431
    %v1440 = vsel %vm655, %v1433, %v1435
    %v1441 = vsel %vm655, %v1435, %v1437
    %v1448 = vadd.f32 %v1380, %v1438
    %v1449 = vadd.f32 %v1381, %v1439
    %v1450 = vadd.f32 %v1382, %v1431
    %v1451 = vadd.f32 %v1383, %v1440
    %v1452 = vadd.f32 %v1384, %v1441
    %v1453 = vadd.f32 %v1385, %v1437
    %v1454 = vadd.f32 %v1188, %v1448
    %v1455 = vadd.f32 %v1189, %v1449
    %v1456 = vadd.f32 %v1190, %v1450
    %v1457 = vadd.f32 %v1191, %v1451
    %v1458 = vadd.f32 %v1192, %v1452
    %v1459 = vadd.f32 %v1193, %v1453
    %s1460 = scalar_lea.vmem %s7, 1
    %v1461 = vld [vmem:[%s1460] ss:$8 sm:$0x3]
    %v1463 = vlaneseq
    %v1464 = vshrl.u32 %v1463, 7
    %v1465 = vsub.s32 0, %v1464
    %v1466 = vrot.slane %v1461, %v1465
    %v1467 = vlaneseq
    %v1468 = vshrl.u32 %v1467, 7
    %v1469 = vsub.s32 1, %v1468
    %v1470 = vrot.slane %v1461, %v1469
    %1471 = vrot.lane.b32.xlu0 %v1466, 1
    %v1472 = vpop.permute.xlu0 %1471
    %1473 = vrot.lane.b32.xlu0 %v1470, 1
    %v1474 = vpop.permute.xlu0 %1473
    %vm1475 = vcmask 7168
    %v1476 = vsel %vm1475, %v1472, %v1474
    %v1480 = vmul.f32 %v1454, %v1472
    %v1481 = vmul.f32 %v1455, %v1476
    %v1482 = vmul.f32 %v1456, %v1474
    %v1483 = vmul.f32 %v1457, %v1472
    %v1484 = vmul.f32 %v1458, %v1476
    %v1485 = vmul.f32 %v1459, %v1474
    %s1486 = sld [smem:[#allocation7 + $0x2]]
    %v1487 = vstv %s1486
    %v1488 = vmul.f32 %v1487, %v391
    %v1489 = vmul.f32 %v1487, %v383
    %v1490 = vmul.f32 %v1487, %v393
    %v1491 = vmul.f32 %v1487, %v392
    %v1492 = vmul.f32 %v1487, %v384
    %v1493 = vmul.f32 %v1487, %v394
    %s1494 = sld [smem:[#allocation7 + $0x9]]
    %v1495 = vstv %s1494
    %v1496 = vmul.f32 %v1495, %v391
    %v1497 = vmul.f32 %v1495, %v383
    %v1498 = vmul.f32 %v1495, %v393
    %v1499 = vmul.f32 %v1495, %v392
    %v1500 = vmul.f32 %v1495, %v384
    %v1501 = vmul.f32 %v1495, %v394
    %s1502 = sld [smem:[#allocation7 + $0x10]]
    %v1503 = vstv %s1502
    %v1504 = vmul.f32 %v1503, %v391
    %v1505 = vmul.f32 %v1503, %v383
    %v1506 = vmul.f32 %v1503, %v393
    %v1507 = vmul.f32 %v1503, %v392
    %v1508 = vmul.f32 %v1503, %v384
    %v1509 = vmul.f32 %v1503, %v394
    %s1510 = sld [smem:[#allocation7 + $0x17]]
    %v1511 = vstv %s1510
    %v1512 = vmul.f32 %v1511, %v391
    %v1513 = vmul.f32 %v1511, %v383
    %v1514 = vmul.f32 %v1511, %v393
    %v1515 = vmul.f32 %v1511, %v392
    %v1516 = vmul.f32 %v1511, %v384
    %v1517 = vmul.f32 %v1511, %v394
    %s1518 = sld [smem:[#allocation7 + $0x1e]]
    %v1519 = vstv %s1518
    %v1520 = vmul.f32 %v1519, %v391
    %v1521 = vmul.f32 %v1519, %v383
    %v1522 = vmul.f32 %v1519, %v393
    %v1523 = vmul.f32 %v1519, %v392
    %v1524 = vmul.f32 %v1519, %v384
    %v1525 = vmul.f32 %v1519, %v394
    %s1526 = sld [smem:[#allocation7 + $0x25]]
    %v1527 = vstv %s1526
    %v1528 = vmul.f32 %v1527, %v391
    %v1529 = vmul.f32 %v1527, %v383
    %v1530 = vmul.f32 %v1527, %v393
    %v1531 = vmul.f32 %v1527, %v392
    %v1532 = vmul.f32 %v1527, %v384
    %v1533 = vmul.f32 %v1527, %v394
    %s1534 = sld [smem:[#allocation7 + $0x2c]]
    %v1535 = vstv %s1534
    %v1536 = vmul.f32 %v1535, %v391
    %v1537 = vmul.f32 %v1535, %v383
    %v1538 = vmul.f32 %v1535, %v393
    %v1539 = vmul.f32 %v1535, %v392
    %v1540 = vmul.f32 %v1535, %v384
    %v1541 = vmul.f32 %v1535, %v394
    %1548 = vrot.lane.b32.xlu0 %v1496, 112
    %v1549 = vpop.permute.xlu0 %1548
    %1550 = vrot.lane.b32.xlu0 %v1497, 112
    %v1551 = vpop.permute.xlu0 %1550
    %1552 = vrot.lane.b32.xlu0 %v1498, 112
    %v1553 = vpop.permute.xlu0 %1552
    %1554 = vrot.lane.b32.xlu0 %v1499, 112
    %v1555 = vpop.permute.xlu0 %1554
    %1556 = vrot.lane.b32.xlu0 %v1500, 112
    %v1557 = vpop.permute.xlu0 %1556
    %1558 = vrot.lane.b32.xlu0 %v1501, 112
    %v1559 = vpop.permute.xlu0 %1558
    %v1560 = vsel %vm491, %v1549, %v1551
    %v1561 = vsel %vm491, %v1551, %v1553
    %v1562 = vsel %vm491, %v1555, %v1557
    %v1563 = vsel %vm491, %v1557, %v1559
    %v1570 = vadd.f32 %v1488, %v1560
    %v1571 = vadd.f32 %v1489, %v1561
    %v1572 = vadd.f32 %v1490, %v1553
    %v1573 = vadd.f32 %v1491, %v1562
    %v1574 = vadd.f32 %v1492, %v1563
    %v1575 = vadd.f32 %v1493, %v1559
    %1582 = vrot.lane.b32.xlu0 %v1512, 112
    %v1583 = vpop.permute.xlu0 %1582
    %1584 = vrot.lane.b32.xlu0 %v1513, 112
    %v1585 = vpop.permute.xlu0 %1584
    %1586 = vrot.lane.b32.xlu0 %v1514, 112
    %v1587 = vpop.permute.xlu0 %1586
    %1588 = vrot.lane.b32.xlu0 %v1515, 112
    %v1589 = vpop.permute.xlu0 %1588
    %1590 = vrot.lane.b32.xlu0 %v1516, 112
    %v1591 = vpop.permute.xlu0 %1590
    %1592 = vrot.lane.b32.xlu0 %v1517, 112
    %v1593 = vpop.permute.xlu0 %1592
    %v1594 = vsel %vm491, %v1583, %v1585
    %v1595 = vsel %vm491, %v1585, %v1587
    %v1596 = vsel %vm491, %v1589, %v1591
    %v1597 = vsel %vm491, %v1591, %v1593
    %v1604 = vadd.f32 %v1504, %v1594
    %v1605 = vadd.f32 %v1505, %v1595
    %v1606 = vadd.f32 %v1506, %v1587
    %v1607 = vadd.f32 %v1507, %v1596
    %v1608 = vadd.f32 %v1508, %v1597
    %v1609 = vadd.f32 %v1509, %v1593
    %1616 = vrot.lane.b32.xlu0 %v1528, 112
    %v1617 = vpop.permute.xlu0 %1616
    %1618 = vrot.lane.b32.xlu0 %v1529, 112
    %v1619 = vpop.permute.xlu0 %1618
    %1620 = vrot.lane.b32.xlu0 %v1530, 112
    %v1621 = vpop.permute.xlu0 %1620
    %1622 = vrot.lane.b32.xlu0 %v1531, 112
    %v1623 = vpop.permute.xlu0 %1622
    %1624 = vrot.lane.b32.xlu0 %v1532, 112
    %v1625 = vpop.permute.xlu0 %1624
    %1626 = vrot.lane.b32.xlu0 %v1533, 112
    %v1627 = vpop.permute.xlu0 %1626
    %v1628 = vsel %vm491, %v1617, %v1619
    %v1629 = vsel %vm491, %v1619, %v1621
    %v1630 = vsel %vm491, %v1623, %v1625
    %v1631 = vsel %vm491, %v1625, %v1627
    %v1638 = vadd.f32 %v1520, %v1628
    %v1639 = vadd.f32 %v1521, %v1629
    %v1640 = vadd.f32 %v1522, %v1621
    %v1641 = vadd.f32 %v1523, %v1630
    %v1642 = vadd.f32 %v1524, %v1631
    %v1643 = vadd.f32 %v1525, %v1627
    %1650 = vrot.lane.b32.xlu0 %v1604, 96
    %v1651 = vpop.permute.xlu0 %1650
    %1652 = vrot.lane.b32.xlu0 %v1605, 96
    %v1653 = vpop.permute.xlu0 %1652
    %1654 = vrot.lane.b32.xlu0 %v1606, 96
    %v1655 = vpop.permute.xlu0 %1654
    %1656 = vrot.lane.b32.xlu0 %v1607, 96
    %v1657 = vpop.permute.xlu0 %1656
    %1658 = vrot.lane.b32.xlu0 %v1608, 96
    %v1659 = vpop.permute.xlu0 %1658
    %1660 = vrot.lane.b32.xlu0 %v1609, 96
    %v1661 = vpop.permute.xlu0 %1660
    %v1662 = vsel %vm590, %v1651, %v1653
    %v1663 = vsel %vm590, %v1653, %v1655
    %v1664 = vsel %vm590, %v1657, %v1659
    %v1665 = vsel %vm590, %v1659, %v1661
    %v1672 = vadd.f32 %v1570, %v1662
    %v1673 = vadd.f32 %v1571, %v1663
    %v1674 = vadd.f32 %v1572, %v1655
    %v1675 = vadd.f32 %v1573, %v1664
    %v1676 = vadd.f32 %v1574, %v1665
    %v1677 = vadd.f32 %v1575, %v1661
    %1684 = vrot.lane.b32.xlu0 %v1536, 96
    %v1685 = vpop.permute.xlu0 %1684
    %1686 = vrot.lane.b32.xlu0 %v1537, 96
    %v1687 = vpop.permute.xlu0 %1686
    %1688 = vrot.lane.b32.xlu0 %v1538, 96
    %v1689 = vpop.permute.xlu0 %1688
    %1690 = vrot.lane.b32.xlu0 %v1539, 96
    %v1691 = vpop.permute.xlu0 %1690
    %1692 = vrot.lane.b32.xlu0 %v1540, 96
    %v1693 = vpop.permute.xlu0 %1692
    %1694 = vrot.lane.b32.xlu0 %v1541, 96
    %v1695 = vpop.permute.xlu0 %1694
    %v1696 = vsel %vm590, %v1685, %v1687
    %v1697 = vsel %vm590, %v1687, %v1689
    %v1698 = vsel %vm590, %v1691, %v1693
    %v1699 = vsel %vm590, %v1693, %v1695
    %v1706 = vadd.f32 %v1638, %v1696
    %v1707 = vadd.f32 %v1639, %v1697
    %v1708 = vadd.f32 %v1640, %v1689
    %v1709 = vadd.f32 %v1641, %v1698
    %v1710 = vadd.f32 %v1642, %v1699
    %v1711 = vadd.f32 %v1643, %v1695
    %1718 = vrot.lane.b32.xlu0 %v1706, 64
    %v1719 = vpop.permute.xlu0 %1718
    %1720 = vrot.lane.b32.xlu0 %v1707, 64
    %v1721 = vpop.permute.xlu0 %1720
    %1722 = vrot.lane.b32.xlu0 %v1708, 64
    %v1723 = vpop.permute.xlu0 %1722
    %1724 = vrot.lane.b32.xlu0 %v1709, 64
    %v1725 = vpop.permute.xlu0 %1724
    %1726 = vrot.lane.b32.xlu0 %v1710, 64
    %v1727 = vpop.permute.xlu0 %1726
    %1728 = vrot.lane.b32.xlu0 %v1711, 64
    %v1729 = vpop.permute.xlu0 %1728
    %v1730 = vsel %vm655, %v1719, %v1721
    %v1731 = vsel %vm655, %v1721, %v1723
    %v1732 = vsel %vm655, %v1725, %v1727
    %v1733 = vsel %vm655, %v1727, %v1729
    %v1740 = vadd.f32 %v1672, %v1730
    %v1741 = vadd.f32 %v1673, %v1731
    %v1742 = vadd.f32 %v1674, %v1723
    %v1743 = vadd.f32 %v1675, %v1732
    %v1744 = vadd.f32 %v1676, %v1733
    %v1745 = vadd.f32 %v1677, %v1729
    %s1746 = sld [smem:[#allocation7 + $0x33]]
    %v1747 = vstv %s1746
    %v1748 = vmul.f32 %v1747, %v415
    %v1749 = vmul.f32 %v1747, %v407
    %v1750 = vmul.f32 %v1747, %v417
    %v1751 = vmul.f32 %v1747, %v416
    %v1752 = vmul.f32 %v1747, %v408
    %v1753 = vmul.f32 %v1747, %v418
    %s1754 = sld [smem:[#allocation7 + $0x3a]]
    %v1755 = vstv %s1754
    %v1756 = vmul.f32 %v1755, %v415
    %v1757 = vmul.f32 %v1755, %v407
    %v1758 = vmul.f32 %v1755, %v417
    %v1759 = vmul.f32 %v1755, %v416
    %v1760 = vmul.f32 %v1755, %v408
    %v1761 = vmul.f32 %v1755, %v418
    %s1762 = sld [smem:[#allocation7 + $0x41]]
    %v1763 = vstv %s1762
    %v1764 = vmul.f32 %v1763, %v415
    %v1765 = vmul.f32 %v1763, %v407
    %v1766 = vmul.f32 %v1763, %v417
    %v1767 = vmul.f32 %v1763, %v416
    %v1768 = vmul.f32 %v1763, %v408
    %v1769 = vmul.f32 %v1763, %v418
    %s1770 = sld [smem:[#allocation7 + $0x48]]
    %v1771 = vstv %s1770
    %v1772 = vmul.f32 %v1771, %v415
    %v1773 = vmul.f32 %v1771, %v407
    %v1774 = vmul.f32 %v1771, %v417
    %v1775 = vmul.f32 %v1771, %v416
    %v1776 = vmul.f32 %v1771, %v408
    %v1777 = vmul.f32 %v1771, %v418
    %s1778 = sld [smem:[#allocation7 + $0x4f]]
    %v1779 = vstv %s1778
    %v1780 = vmul.f32 %v1779, %v415
    %v1781 = vmul.f32 %v1779, %v407
    %v1782 = vmul.f32 %v1779, %v417
    %v1783 = vmul.f32 %v1779, %v416
    %v1784 = vmul.f32 %v1779, %v408
    %v1785 = vmul.f32 %v1779, %v418
    %s1786 = sld [smem:[#allocation7 + $0x56]]
    %v1787 = vstv %s1786
    %v1788 = vmul.f32 %v1787, %v415
    %v1789 = vmul.f32 %v1787, %v407
    %v1790 = vmul.f32 %v1787, %v417
    %v1791 = vmul.f32 %v1787, %v416
    %v1792 = vmul.f32 %v1787, %v408
    %v1793 = vmul.f32 %v1787, %v418
    %s1794 = sld [smem:[#allocation7 + $0x5d]]
    %v1795 = vstv %s1794
    %v1796 = vmul.f32 %v1795, %v415
    %v1797 = vmul.f32 %v1795, %v407
    %v1798 = vmul.f32 %v1795, %v417
    %v1799 = vmul.f32 %v1795, %v416
    %v1800 = vmul.f32 %v1795, %v408
    %v1801 = vmul.f32 %v1795, %v418
    %1808 = vrot.lane.b32.xlu0 %v1756, 112
    %v1809 = vpop.permute.xlu0 %1808
    %1810 = vrot.lane.b32.xlu0 %v1757, 112
    %v1811 = vpop.permute.xlu0 %1810
    %1812 = vrot.lane.b32.xlu0 %v1758, 112
    %v1813 = vpop.permute.xlu0 %1812
    %1814 = vrot.lane.b32.xlu0 %v1759, 112
    %v1815 = vpop.permute.xlu0 %1814
    %1816 = vrot.lane.b32.xlu0 %v1760, 112
    %v1817 = vpop.permute.xlu0 %1816
    %1818 = vrot.lane.b32.xlu0 %v1761, 112
    %v1819 = vpop.permute.xlu0 %1818
    %v1820 = vsel %vm491, %v1809, %v1811
    %v1821 = vsel %vm491, %v1811, %v1813
    %v1822 = vsel %vm491, %v1815, %v1817
    %v1823 = vsel %vm491, %v1817, %v1819
    %v1830 = vadd.f32 %v1748, %v1820
    %v1831 = vadd.f32 %v1749, %v1821
    %v1832 = vadd.f32 %v1750, %v1813
    %v1833 = vadd.f32 %v1751, %v1822
    %v1834 = vadd.f32 %v1752, %v1823
    %v1835 = vadd.f32 %v1753, %v1819
    %1842 = vrot.lane.b32.xlu0 %v1772, 112
    %v1843 = vpop.permute.xlu0 %1842
    %1844 = vrot.lane.b32.xlu0 %v1773, 112
    %v1845 = vpop.permute.xlu0 %1844
    %1846 = vrot.lane.b32.xlu0 %v1774, 112
    %v1847 = vpop.permute.xlu0 %1846
    %1848 = vrot.lane.b32.xlu0 %v1775, 112
    %v1849 = vpop.permute.xlu0 %1848
    %1850 = vrot.lane.b32.xlu0 %v1776, 112
    %v1851 = vpop.permute.xlu0 %1850
    %1852 = vrot.lane.b32.xlu0 %v1777, 112
    %v1853 = vpop.permute.xlu0 %1852
    %v1854 = vsel %vm491, %v1843, %v1845
    %v1855 = vsel %vm491, %v1845, %v1847
    %v1856 = vsel %vm491, %v1849, %v1851
    %v1857 = vsel %vm491, %v1851, %v1853
    %v1864 = vadd.f32 %v1764, %v1854
    %v1865 = vadd.f32 %v1765, %v1855
    %v1866 = vadd.f32 %v1766, %v1847
    %v1867 = vadd.f32 %v1767, %v1856
    %v1868 = vadd.f32 %v1768, %v1857
    %v1869 = vadd.f32 %v1769, %v1853
    %1876 = vrot.lane.b32.xlu0 %v1788, 112
    %v1877 = vpop.permute.xlu0 %1876
    %1878 = vrot.lane.b32.xlu0 %v1789, 112
    %v1879 = vpop.permute.xlu0 %1878
    %1880 = vrot.lane.b32.xlu0 %v1790, 112
    %v1881 = vpop.permute.xlu0 %1880
    %1882 = vrot.lane.b32.xlu0 %v1791, 112
    %v1883 = vpop.permute.xlu0 %1882
    %1884 = vrot.lane.b32.xlu0 %v1792, 112
    %v1885 = vpop.permute.xlu0 %1884
    %1886 = vrot.lane.b32.xlu0 %v1793, 112
    %v1887 = vpop.permute.xlu0 %1886
    %v1888 = vsel %vm491, %v1877, %v1879
    %v1889 = vsel %vm491, %v1879, %v1881
    %v1890 = vsel %vm491, %v1883, %v1885
    %v1891 = vsel %vm491, %v1885, %v1887
    %v1898 = vadd.f32 %v1780, %v1888
    %v1899 = vadd.f32 %v1781, %v1889
    %v1900 = vadd.f32 %v1782, %v1881
    %v1901 = vadd.f32 %v1783, %v1890
    %v1902 = vadd.f32 %v1784, %v1891
    %v1903 = vadd.f32 %v1785, %v1887
    %1910 = vrot.lane.b32.xlu0 %v1864, 96
    %v1911 = vpop.permute.xlu0 %1910
    %1912 = vrot.lane.b32.xlu0 %v1865, 96
    %v1913 = vpop.permute.xlu0 %1912
    %1914 = vrot.lane.b32.xlu0 %v1866, 96
    %v1915 = vpop.permute.xlu0 %1914
    %1916 = vrot.lane.b32.xlu0 %v1867, 96
    %v1917 = vpop.permute.xlu0 %1916
    %1918 = vrot.lane.b32.xlu0 %v1868, 96
    %v1919 = vpop.permute.xlu0 %1918
    %1920 = vrot.lane.b32.xlu0 %v1869, 96
    %v1921 = vpop.permute.xlu0 %1920
    %v1922 = vsel %vm590, %v1911, %v1913
    %v1923 = vsel %vm590, %v1913, %v1915
    %v1924 = vsel %vm590, %v1917, %v1919
    %v1925 = vsel %vm590, %v1919, %v1921
    %v1932 = vadd.f32 %v1830, %v1922
    %v1933 = vadd.f32 %v1831, %v1923
    %v1934 = vadd.f32 %v1832, %v1915
    %v1935 = vadd.f32 %v1833, %v1924
    %v1936 = vadd.f32 %v1834, %v1925
    %v1937 = vadd.f32 %v1835, %v1921
    %1944 = vrot.lane.b32.xlu0 %v1796, 96
    %v1945 = vpop.permute.xlu0 %1944
    %1946 = vrot.lane.b32.xlu0 %v1797, 96
    %v1947 = vpop.permute.xlu0 %1946
    %1948 = vrot.lane.b32.xlu0 %v1798, 96
    %v1949 = vpop.permute.xlu0 %1948
    %1950 = vrot.lane.b32.xlu0 %v1799, 96
    %v1951 = vpop.permute.xlu0 %1950
    %1952 = vrot.lane.b32.xlu0 %v1800, 96
    %v1953 = vpop.permute.xlu0 %1952
    %1954 = vrot.lane.b32.xlu0 %v1801, 96
    %v1955 = vpop.permute.xlu0 %1954
    %v1956 = vsel %vm590, %v1945, %v1947
    %v1957 = vsel %vm590, %v1947, %v1949
    %v1958 = vsel %vm590, %v1951, %v1953
    %v1959 = vsel %vm590, %v1953, %v1955
    %v1966 = vadd.f32 %v1898, %v1956
    %v1967 = vadd.f32 %v1899, %v1957
    %v1968 = vadd.f32 %v1900, %v1949
    %v1969 = vadd.f32 %v1901, %v1958
    %v1970 = vadd.f32 %v1902, %v1959
    %v1971 = vadd.f32 %v1903, %v1955
    %1978 = vrot.lane.b32.xlu0 %v1966, 64
    %v1979 = vpop.permute.xlu0 %1978
    %1980 = vrot.lane.b32.xlu0 %v1967, 64
    %v1981 = vpop.permute.xlu0 %1980
    %1982 = vrot.lane.b32.xlu0 %v1968, 64
    %v1983 = vpop.permute.xlu0 %1982
    %1984 = vrot.lane.b32.xlu0 %v1969, 64
    %v1985 = vpop.permute.xlu0 %1984
    %1986 = vrot.lane.b32.xlu0 %v1970, 64
    %v1987 = vpop.permute.xlu0 %1986
    %1988 = vrot.lane.b32.xlu0 %v1971, 64
    %v1989 = vpop.permute.xlu0 %1988
    %v1990 = vsel %vm655, %v1979, %v1981
    %v1991 = vsel %vm655, %v1981, %v1983
    %v1992 = vsel %vm655, %v1985, %v1987
    %v1993 = vsel %vm655, %v1987, %v1989
    %v2000 = vadd.f32 %v1932, %v1990
    %v2001 = vadd.f32 %v1933, %v1991
    %v2002 = vadd.f32 %v1934, %v1983
    %v2003 = vadd.f32 %v1935, %v1992
    %v2004 = vadd.f32 %v1936, %v1993
    %v2005 = vadd.f32 %v1937, %v1989
    %v2006 = vadd.f32 %v1740, %v2000
    %v2007 = vadd.f32 %v1741, %v2001
    %v2008 = vadd.f32 %v1742, %v2002
    %v2009 = vadd.f32 %v1743, %v2003
    %v2010 = vadd.f32 %v1744, %v2004
    %v2011 = vadd.f32 %v1745, %v2005
    %s2012 = scalar_lea.vmem %s7, 2
    %v2013 = vld [vmem:[%s2012] ss:$8 sm:$0x3]
    %v2015 = vlaneseq
    %v2016 = vshrl.u32 %v2015, 7
    %v2017 = vsub.s32 0, %v2016
    %v2018 = vrot.slane %v2013, %v2017
    %v2019 = vlaneseq
    %v2020 = vshrl.u32 %v2019, 7
    %v2021 = vsub.s32 1, %v2020
    %v2022 = vrot.slane %v2013, %v2021
    %2023 = vrot.lane.b32.xlu0 %v2018, 2
    %v2024 = vpop.permute.xlu0 %2023
    %2025 = vrot.lane.b32.xlu0 %v2022, 2
    %v2026 = vpop.permute.xlu0 %2025
    %v2027 = vsel %vm118, %v2024, %v2026
    %v2031 = vmul.f32 %v2006, %v2024
    %v2032 = vmul.f32 %v2007, %v2027
    %v2033 = vmul.f32 %v2008, %v2026
    %v2034 = vmul.f32 %v2009, %v2024
    %v2035 = vmul.f32 %v2010, %v2027
    %v2036 = vmul.f32 %v2011, %v2026
    %s2037 = sld [smem:[#allocation7 + $0x3]]
    %v2038 = vstv %s2037
    %v2039 = vmul.f32 %v2038, %v391
    %v2040 = vmul.f32 %v2038, %v383
    %v2041 = vmul.f32 %v2038, %v393
    %v2042 = vmul.f32 %v2038, %v392
    %v2043 = vmul.f32 %v2038, %v384
    %v2044 = vmul.f32 %v2038, %v394
    %s2045 = sld [smem:[#allocation7 + $0xa]]
    %v2046 = vstv %s2045
    %v2047 = vmul.f32 %v2046, %v391
    %v2048 = vmul.f32 %v2046, %v383
    %v2049 = vmul.f32 %v2046, %v393
    %v2050 = vmul.f32 %v2046, %v392
    %v2051 = vmul.f32 %v2046, %v384
    %v2052 = vmul.f32 %v2046, %v394
    %s2053 = sld [smem:[#allocation7 + $0x11]]
    %v2054 = vstv %s2053
    %v2055 = vmul.f32 %v2054, %v391
    %v2056 = vmul.f32 %v2054, %v383
    %v2057 = vmul.f32 %v2054, %v393
    %v2058 = vmul.f32 %v2054, %v392
    %v2059 = vmul.f32 %v2054, %v384
    %v2060 = vmul.f32 %v2054, %v394
    %s2061 = sld [smem:[#allocation7 + $0x18]]
    %v2062 = vstv %s2061
    %v2063 = vmul.f32 %v2062, %v391
    %v2064 = vmul.f32 %v2062, %v383
    %v2065 = vmul.f32 %v2062, %v393
    %v2066 = vmul.f32 %v2062, %v392
    %v2067 = vmul.f32 %v2062, %v384
    %v2068 = vmul.f32 %v2062, %v394
    %s2069 = sld [smem:[#allocation7 + $0x1f]]
    %v2070 = vstv %s2069
    %v2071 = vmul.f32 %v2070, %v391
    %v2072 = vmul.f32 %v2070, %v383
    %v2073 = vmul.f32 %v2070, %v393
    %v2074 = vmul.f32 %v2070, %v392
    %v2075 = vmul.f32 %v2070, %v384
    %v2076 = vmul.f32 %v2070, %v394
    %s2077 = sld [smem:[#allocation7 + $0x26]]
    %v2078 = vstv %s2077
    %v2079 = vmul.f32 %v2078, %v391
    %v2080 = vmul.f32 %v2078, %v383
    %v2081 = vmul.f32 %v2078, %v393
    %v2082 = vmul.f32 %v2078, %v392
    %v2083 = vmul.f32 %v2078, %v384
    %v2084 = vmul.f32 %v2078, %v394
    %s2085 = sld [smem:[#allocation7 + $0x2d]]
    %v2086 = vstv %s2085
    %v2087 = vmul.f32 %v2086, %v391
    %v2088 = vmul.f32 %v2086, %v383
    %v2089 = vmul.f32 %v2086, %v393
    %v2090 = vmul.f32 %v2086, %v392
    %v2091 = vmul.f32 %v2086, %v384
    %v2092 = vmul.f32 %v2086, %v394
    %2099 = vrot.lane.b32.xlu0 %v2047, 112
    %v2100 = vpop.permute.xlu0 %2099
    %2101 = vrot.lane.b32.xlu0 %v2048, 112
    %v2102 = vpop.permute.xlu0 %2101
    %2103 = vrot.lane.b32.xlu0 %v2049, 112
    %v2104 = vpop.permute.xlu0 %2103
    %2105 = vrot.lane.b32.xlu0 %v2050, 112
    %v2106 = vpop.permute.xlu0 %2105
    %2107 = vrot.lane.b32.xlu0 %v2051, 112
    %v2108 = vpop.permute.xlu0 %2107
    %2109 = vrot.lane.b32.xlu0 %v2052, 112
    %v2110 = vpop.permute.xlu0 %2109
    %v2111 = vsel %vm491, %v2100, %v2102
    %v2112 = vsel %vm491, %v2102, %v2104
    %v2113 = vsel %vm491, %v2106, %v2108
    %v2114 = vsel %vm491, %v2108, %v2110
    %v2121 = vadd.f32 %v2039, %v2111
    %v2122 = vadd.f32 %v2040, %v2112
    %v2123 = vadd.f32 %v2041, %v2104
    %v2124 = vadd.f32 %v2042, %v2113
    %v2125 = vadd.f32 %v2043, %v2114
    %v2126 = vadd.f32 %v2044, %v2110
    %2133 = vrot.lane.b32.xlu0 %v2063, 112
    %v2134 = vpop.permute.xlu0 %2133
    %2135 = vrot.lane.b32.xlu0 %v2064, 112
    %v2136 = vpop.permute.xlu0 %2135
    %2137 = vrot.lane.b32.xlu0 %v2065, 112
    %v2138 = vpop.permute.xlu0 %2137
    %2139 = vrot.lane.b32.xlu0 %v2066, 112
    %v2140 = vpop.permute.xlu0 %2139
    %2141 = vrot.lane.b32.xlu0 %v2067, 112
    %v2142 = vpop.permute.xlu0 %2141
    %2143 = vrot.lane.b32.xlu0 %v2068, 112
    %v2144 = vpop.permute.xlu0 %2143
    %v2145 = vsel %vm491, %v2134, %v2136
    %v2146 = vsel %vm491, %v2136, %v2138
    %v2147 = vsel %vm491, %v2140, %v2142
    %v2148 = vsel %vm491, %v2142, %v2144
    %v2155 = vadd.f32 %v2055, %v2145
    %v2156 = vadd.f32 %v2056, %v2146
    %v2157 = vadd.f32 %v2057, %v2138
    %v2158 = vadd.f32 %v2058, %v2147
    %v2159 = vadd.f32 %v2059, %v2148
    %v2160 = vadd.f32 %v2060, %v2144
    %2167 = vrot.lane.b32.xlu0 %v2079, 112
    %v2168 = vpop.permute.xlu0 %2167
    %2169 = vrot.lane.b32.xlu0 %v2080, 112
    %v2170 = vpop.permute.xlu0 %2169
    %2171 = vrot.lane.b32.xlu0 %v2081, 112
    %v2172 = vpop.permute.xlu0 %2171
    %2173 = vrot.lane.b32.xlu0 %v2082, 112
    %v2174 = vpop.permute.xlu0 %2173
    %2175 = vrot.lane.b32.xlu0 %v2083, 112
    %v2176 = vpop.permute.xlu0 %2175
    %2177 = vrot.lane.b32.xlu0 %v2084, 112
    %v2178 = vpop.permute.xlu0 %2177
    %v2179 = vsel %vm491, %v2168, %v2170
    %v2180 = vsel %vm491, %v2170, %v2172
    %v2181 = vsel %vm491, %v2174, %v2176
    %v2182 = vsel %vm491, %v2176, %v2178
    %v2189 = vadd.f32 %v2071, %v2179
    %v2190 = vadd.f32 %v2072, %v2180
    %v2191 = vadd.f32 %v2073, %v2172
    %v2192 = vadd.f32 %v2074, %v2181
    %v2193 = vadd.f32 %v2075, %v2182
    %v2194 = vadd.f32 %v2076, %v2178
    %2201 = vrot.lane.b32.xlu0 %v2155, 96
    %v2202 = vpop.permute.xlu0 %2201
    %2203 = vrot.lane.b32.xlu0 %v2156, 96
    %v2204 = vpop.permute.xlu0 %2203
    %2205 = vrot.lane.b32.xlu0 %v2157, 96
    %v2206 = vpop.permute.xlu0 %2205
    %2207 = vrot.lane.b32.xlu0 %v2158, 96
    %v2208 = vpop.permute.xlu0 %2207
    %2209 = vrot.lane.b32.xlu0 %v2159, 96
    %v2210 = vpop.permute.xlu0 %2209
    %2211 = vrot.lane.b32.xlu0 %v2160, 96
    %v2212 = vpop.permute.xlu0 %2211
    %v2213 = vsel %vm590, %v2202, %v2204
    %v2214 = vsel %vm590, %v2204, %v2206
    %v2215 = vsel %vm590, %v2208, %v2210
    %v2216 = vsel %vm590, %v2210, %v2212
    %v2223 = vadd.f32 %v2121, %v2213
    %v2224 = vadd.f32 %v2122, %v2214
    %v2225 = vadd.f32 %v2123, %v2206
    %v2226 = vadd.f32 %v2124, %v2215
    %v2227 = vadd.f32 %v2125, %v2216
    %v2228 = vadd.f32 %v2126, %v2212
    %2235 = vrot.lane.b32.xlu0 %v2087, 96
    %v2236 = vpop.permute.xlu0 %2235
    %2237 = vrot.lane.b32.xlu0 %v2088, 96
    %v2238 = vpop.permute.xlu0 %2237
    %2239 = vrot.lane.b32.xlu0 %v2089, 96
    %v2240 = vpop.permute.xlu0 %2239
    %2241 = vrot.lane.b32.xlu0 %v2090, 96
    %v2242 = vpop.permute.xlu0 %2241
    %2243 = vrot.lane.b32.xlu0 %v2091, 96
    %v2244 = vpop.permute.xlu0 %2243
    %2245 = vrot.lane.b32.xlu0 %v2092, 96
    %v2246 = vpop.permute.xlu0 %2245
    %v2247 = vsel %vm590, %v2236, %v2238
    %v2248 = vsel %vm590, %v2238, %v2240
    %v2249 = vsel %vm590, %v2242, %v2244
    %v2250 = vsel %vm590, %v2244, %v2246
    %v2257 = vadd.f32 %v2189, %v2247
    %v2258 = vadd.f32 %v2190, %v2248
    %v2259 = vadd.f32 %v2191, %v2240
    %v2260 = vadd.f32 %v2192, %v2249
    %v2261 = vadd.f32 %v2193, %v2250
    %v2262 = vadd.f32 %v2194, %v2246
    %2269 = vrot.lane.b32.xlu0 %v2257, 64
    %v2270 = vpop.permute.xlu0 %2269
    %2271 = vrot.lane.b32.xlu0 %v2258, 64
    %v2272 = vpop.permute.xlu0 %2271
    %2273 = vrot.lane.b32.xlu0 %v2259, 64
    %v2274 = vpop.permute.xlu0 %2273
    %2275 = vrot.lane.b32.xlu0 %v2260, 64
    %v2276 = vpop.permute.xlu0 %2275
    %2277 = vrot.lane.b32.xlu0 %v2261, 64
    %v2278 = vpop.permute.xlu0 %2277
    %2279 = vrot.lane.b32.xlu0 %v2262, 64
    %v2280 = vpop.permute.xlu0 %2279
    %v2281 = vsel %vm655, %v2270, %v2272
    %v2282 = vsel %vm655, %v2272, %v2274
    %v2283 = vsel %vm655, %v2276, %v2278
    %v2284 = vsel %vm655, %v2278, %v2280
    %v2291 = vadd.f32 %v2223, %v2281
    %v2292 = vadd.f32 %v2224, %v2282
    %v2293 = vadd.f32 %v2225, %v2274
    %v2294 = vadd.f32 %v2226, %v2283
    %v2295 = vadd.f32 %v2227, %v2284
    %v2296 = vadd.f32 %v2228, %v2280
    %s2297 = sld [smem:[#allocation7 + $0x34]]
    %v2298 = vstv %s2297
    %v2299 = vmul.f32 %v2298, %v415
    %v2300 = vmul.f32 %v2298, %v407
    %v2301 = vmul.f32 %v2298, %v417
    %v2302 = vmul.f32 %v2298, %v416
    %v2303 = vmul.f32 %v2298, %v408
    %v2304 = vmul.f32 %v2298, %v418
    %s2305 = sld [smem:[#allocation7 + $0x3b]]
    %v2306 = vstv %s2305
    %v2307 = vmul.f32 %v2306, %v415
    %v2308 = vmul.f32 %v2306, %v407
    %v2309 = vmul.f32 %v2306, %v417
    %v2310 = vmul.f32 %v2306, %v416
    %v2311 = vmul.f32 %v2306, %v408
    %v2312 = vmul.f32 %v2306, %v418
    %s2313 = sld [smem:[#allocation7 + $0x42]]
    %v2314 = vstv %s2313
    %v2315 = vmul.f32 %v2314, %v415
    %v2316 = vmul.f32 %v2314, %v407
    %v2317 = vmul.f32 %v2314, %v417
    %v2318 = vmul.f32 %v2314, %v416
    %v2319 = vmul.f32 %v2314, %v408
    %v2320 = vmul.f32 %v2314, %v418
    %s2321 = sld [smem:[#allocation7 + $0x49]]
    %v2322 = vstv %s2321
    %v2323 = vmul.f32 %v2322, %v415
    %v2324 = vmul.f32 %v2322, %v407
    %v2325 = vmul.f32 %v2322, %v417
    %v2326 = vmul.f32 %v2322, %v416
    %v2327 = vmul.f32 %v2322, %v408
    %v2328 = vmul.f32 %v2322, %v418
    %s2329 = sld [smem:[#allocation7 + $0x50]]
    %v2330 = vstv %s2329
    %v2331 = vmul.f32 %v2330, %v415
    %v2332 = vmul.f32 %v2330, %v407
    %v2333 = vmul.f32 %v2330, %v417
    %v2334 = vmul.f32 %v2330, %v416
    %v2335 = vmul.f32 %v2330, %v408
    %v2336 = vmul.f32 %v2330, %v418
    %s2337 = sld [smem:[#allocation7 + $0x57]]
    %v2338 = vstv %s2337
    %v2339 = vmul.f32 %v2338, %v415
    %v2340 = vmul.f32 %v2338, %v407
    %v2341 = vmul.f32 %v2338, %v417
    %v2342 = vmul.f32 %v2338, %v416
    %v2343 = vmul.f32 %v2338, %v408
    %v2344 = vmul.f32 %v2338, %v418
    %s2345 = sld [smem:[#allocation7 + $0x5e]]
    %v2346 = vstv %s2345
    %v2347 = vmul.f32 %v2346, %v415
    %v2348 = vmul.f32 %v2346, %v407
    %v2349 = vmul.f32 %v2346, %v417
    %v2350 = vmul.f32 %v2346, %v416
    %v2351 = vmul.f32 %v2346, %v408
    %v2352 = vmul.f32 %v2346, %v418
    %2359 = vrot.lane.b32.xlu0 %v2307, 112
    %v2360 = vpop.permute.xlu0 %2359
    %2361 = vrot.lane.b32.xlu0 %v2308, 112
    %v2362 = vpop.permute.xlu0 %2361
    %2363 = vrot.lane.b32.xlu0 %v2309, 112
    %v2364 = vpop.permute.xlu0 %2363
    %2365 = vrot.lane.b32.xlu0 %v2310, 112
    %v2366 = vpop.permute.xlu0 %2365
    %2367 = vrot.lane.b32.xlu0 %v2311, 112
    %v2368 = vpop.permute.xlu0 %2367
    %2369 = vrot.lane.b32.xlu0 %v2312, 112
    %v2370 = vpop.permute.xlu0 %2369
    %v2371 = vsel %vm491, %v2360, %v2362
    %v2372 = vsel %vm491, %v2362, %v2364
    %v2373 = vsel %vm491, %v2366, %v2368
    %v2374 = vsel %vm491, %v2368, %v2370
    %v2381 = vadd.f32 %v2299, %v2371
    %v2382 = vadd.f32 %v2300, %v2372
    %v2383 = vadd.f32 %v2301, %v2364
    %v2384 = vadd.f32 %v2302, %v2373
    %v2385 = vadd.f32 %v2303, %v2374
    %v2386 = vadd.f32 %v2304, %v2370
    %2393 = vrot.lane.b32.xlu0 %v2323, 112
    %v2394 = vpop.permute.xlu0 %2393
    %2395 = vrot.lane.b32.xlu0 %v2324, 112
    %v2396 = vpop.permute.xlu0 %2395
    %2397 = vrot.lane.b32.xlu0 %v2325, 112
    %v2398 = vpop.permute.xlu0 %2397
    %2399 = vrot.lane.b32.xlu0 %v2326, 112
    %v2400 = vpop.permute.xlu0 %2399
    %2401 = vrot.lane.b32.xlu0 %v2327, 112
    %v2402 = vpop.permute.xlu0 %2401
    %2403 = vrot.lane.b32.xlu0 %v2328, 112
    %v2404 = vpop.permute.xlu0 %2403
    %v2405 = vsel %vm491, %v2394, %v2396
    %v2406 = vsel %vm491, %v2396, %v2398
    %v2407 = vsel %vm491, %v2400, %v2402
    %v2408 = vsel %vm491, %v2402, %v2404
    %v2415 = vadd.f32 %v2315, %v2405
    %v2416 = vadd.f32 %v2316, %v2406
    %v2417 = vadd.f32 %v2317, %v2398
    %v2418 = vadd.f32 %v2318, %v2407
    %v2419 = vadd.f32 %v2319, %v2408
    %v2420 = vadd.f32 %v2320, %v2404
    %2427 = vrot.lane.b32.xlu0 %v2339, 112
    %v2428 = vpop.permute.xlu0 %2427
    %2429 = vrot.lane.b32.xlu0 %v2340, 112
    %v2430 = vpop.permute.xlu0 %2429
    %2431 = vrot.lane.b32.xlu0 %v2341, 112
    %v2432 = vpop.permute.xlu0 %2431
    %2433 = vrot.lane.b32.xlu0 %v2342, 112
    %v2434 = vpop.permute.xlu0 %2433
    %2435 = vrot.lane.b32.xlu0 %v2343, 112
    %v2436 = vpop.permute.xlu0 %2435
    %2437 = vrot.lane.b32.xlu0 %v2344, 112
    %v2438 = vpop.permute.xlu0 %2437
    %v2439 = vsel %vm491, %v2428, %v2430
    %v2440 = vsel %vm491, %v2430, %v2432
    %v2441 = vsel %vm491, %v2434, %v2436
    %v2442 = vsel %vm491, %v2436, %v2438
    %v2449 = vadd.f32 %v2331, %v2439
    %v2450 = vadd.f32 %v2332, %v2440
    %v2451 = vadd.f32 %v2333, %v2432
    %v2452 = vadd.f32 %v2334, %v2441
    %v2453 = vadd.f32 %v2335, %v2442
    %v2454 = vadd.f32 %v2336, %v2438
    %2461 = vrot.lane.b32.xlu0 %v2415, 96
    %v2462 = vpop.permute.xlu0 %2461
    %2463 = vrot.lane.b32.xlu0 %v2416, 96
    %v2464 = vpop.permute.xlu0 %2463
    %2465 = vrot.lane.b32.xlu0 %v2417, 96
    %v2466 = vpop.permute.xlu0 %2465
    %2467 = vrot.lane.b32.xlu0 %v2418, 96
    %v2468 = vpop.permute.xlu0 %2467
    %2469 = vrot.lane.b32.xlu0 %v2419, 96
    %v2470 = vpop.permute.xlu0 %2469
    %2471 = vrot.lane.b32.xlu0 %v2420, 96
    %v2472 = vpop.permute.xlu0 %2471
    %v2473 = vsel %vm590, %v2462, %v2464
    %v2474 = vsel %vm590, %v2464, %v2466
    %v2475 = vsel %vm590, %v2468, %v2470
    %v2476 = vsel %vm590, %v2470, %v2472
    %v2483 = vadd.f32 %v2381, %v2473
    %v2484 = vadd.f32 %v2382, %v2474
    %v2485 = vadd.f32 %v2383, %v2466
    %v2486 = vadd.f32 %v2384, %v2475
    %v2487 = vadd.f32 %v2385, %v2476
    %v2488 = vadd.f32 %v2386, %v2472
    %2495 = vrot.lane.b32.xlu0 %v2347, 96
    %v2496 = vpop.permute.xlu0 %2495
    %2497 = vrot.lane.b32.xlu0 %v2348, 96
    %v2498 = vpop.permute.xlu0 %2497
    %2499 = vrot.lane.b32.xlu0 %v2349, 96
    %v2500 = vpop.permute.xlu0 %2499
    %2501 = vrot.lane.b32.xlu0 %v2350, 96
    %v2502 = vpop.permute.xlu0 %2501
    %2503 = vrot.lane.b32.xlu0 %v2351, 96
    %v2504 = vpop.permute.xlu0 %2503
    %2505 = vrot.lane.b32.xlu0 %v2352, 96
    %v2506 = vpop.permute.xlu0 %2505
    %v2507 = vsel %vm590, %v2496, %v2498
    %v2508 = vsel %vm590, %v2498, %v2500
    %v2509 = vsel %vm590, %v2502, %v2504
    %v2510 = vsel %vm590, %v2504, %v2506
    %v2517 = vadd.f32 %v2449, %v2507
    %v2518 = vadd.f32 %v2450, %v2508
    %v2519 = vadd.f32 %v2451, %v2500
    %v2520 = vadd.f32 %v2452, %v2509
    %v2521 = vadd.f32 %v2453, %v2510
    %v2522 = vadd.f32 %v2454, %v2506
    %2529 = vrot.lane.b32.xlu0 %v2517, 64
    %v2530 = vpop.permute.xlu0 %2529
    %2531 = vrot.lane.b32.xlu0 %v2518, 64
    %v2532 = vpop.permute.xlu0 %2531
    %2533 = vrot.lane.b32.xlu0 %v2519, 64
    %v2534 = vpop.permute.xlu0 %2533
    %2535 = vrot.lane.b32.xlu0 %v2520, 64
    %v2536 = vpop.permute.xlu0 %2535
    %2537 = vrot.lane.b32.xlu0 %v2521, 64
    %v2538 = vpop.permute.xlu0 %2537
    %2539 = vrot.lane.b32.xlu0 %v2522, 64
    %v2540 = vpop.permute.xlu0 %2539
    %v2541 = vsel %vm655, %v2530, %v2532
    %v2542 = vsel %vm655, %v2532, %v2534
    %v2543 = vsel %vm655, %v2536, %v2538
    %v2544 = vsel %vm655, %v2538, %v2540
    %v2551 = vadd.f32 %v2483, %v2541
    %v2552 = vadd.f32 %v2484, %v2542
    %v2553 = vadd.f32 %v2485, %v2534
    %v2554 = vadd.f32 %v2486, %v2543
    %v2555 = vadd.f32 %v2487, %v2544
    %v2556 = vadd.f32 %v2488, %v2540
    %v2557 = vadd.f32 %v2291, %v2551
    %v2558 = vadd.f32 %v2292, %v2552
    %v2559 = vadd.f32 %v2293, %v2553
    %v2560 = vadd.f32 %v2294, %v2554
    %v2561 = vadd.f32 %v2295, %v2555
    %v2562 = vadd.f32 %v2296, %v2556
    %s2563 = sld [smem:[#allocation7 + $0x4]]
    %v2564 = vstv %s2563
    %v2565 = vmul.f32 %v2564, %v391
    %v2566 = vmul.f32 %v2564, %v383
    %v2567 = vmul.f32 %v2564, %v393
    %v2568 = vmul.f32 %v2564, %v392
    %v2569 = vmul.f32 %v2564, %v384
    %v2570 = vmul.f32 %v2564, %v394
    %s2571 = sld [smem:[#allocation7 + $0xb]]
    %v2572 = vstv %s2571
    %v2573 = vmul.f32 %v2572, %v391
    %v2574 = vmul.f32 %v2572, %v383
    %v2575 = vmul.f32 %v2572, %v393
    %v2576 = vmul.f32 %v2572, %v392
    %v2577 = vmul.f32 %v2572, %v384
    %v2578 = vmul.f32 %v2572, %v394
    %s2579 = sld [smem:[#allocation7 + $0x12]]
    %v2580 = vstv %s2579
    %v2581 = vmul.f32 %v2580, %v391
    %v2582 = vmul.f32 %v2580, %v383
    %v2583 = vmul.f32 %v2580, %v393
    %v2584 = vmul.f32 %v2580, %v392
    %v2585 = vmul.f32 %v2580, %v384
    %v2586 = vmul.f32 %v2580, %v394
    %s2587 = sld [smem:[#allocation7 + $0x19]]
    %v2588 = vstv %s2587
    %v2589 = vmul.f32 %v2588, %v391
    %v2590 = vmul.f32 %v2588, %v383
    %v2591 = vmul.f32 %v2588, %v393
    %v2592 = vmul.f32 %v2588, %v392
    %v2593 = vmul.f32 %v2588, %v384
    %v2594 = vmul.f32 %v2588, %v394
    %s2595 = sld [smem:[#allocation7 + $0x20]]
    %v2596 = vstv %s2595
    %v2597 = vmul.f32 %v2596, %v391
    %v2598 = vmul.f32 %v2596, %v383
    %v2599 = vmul.f32 %v2596, %v393
    %v2600 = vmul.f32 %v2596, %v392
    %v2601 = vmul.f32 %v2596, %v384
    %v2602 = vmul.f32 %v2596, %v394
    %s2603 = sld [smem:[#allocation7 + $0x27]]
    %v2604 = vstv %s2603
    %v2605 = vmul.f32 %v2604, %v391
    %v2606 = vmul.f32 %v2604, %v383
    %v2607 = vmul.f32 %v2604, %v393
    %v2608 = vmul.f32 %v2604, %v392
    %v2609 = vmul.f32 %v2604, %v384
    %v2610 = vmul.f32 %v2604, %v394
    %s2611 = sld [smem:[#allocation7 + $0x2e]]
    %v2612 = vstv %s2611
    %v2613 = vmul.f32 %v2612, %v391
    %v2614 = vmul.f32 %v2612, %v383
    %v2615 = vmul.f32 %v2612, %v393
    %v2616 = vmul.f32 %v2612, %v392
    %v2617 = vmul.f32 %v2612, %v384
    %v2618 = vmul.f32 %v2612, %v394
    %2625 = vrot.lane.b32.xlu0 %v2573, 112
    %v2626 = vpop.permute.xlu0 %2625
    %2627 = vrot.lane.b32.xlu0 %v2574, 112
    %v2628 = vpop.permute.xlu0 %2627
    %2629 = vrot.lane.b32.xlu0 %v2575, 112
    %v2630 = vpop.permute.xlu0 %2629
    %2631 = vrot.lane.b32.xlu0 %v2576, 112
    %v2632 = vpop.permute.xlu0 %2631
    %2633 = vrot.lane.b32.xlu0 %v2577, 112
    %v2634 = vpop.permute.xlu0 %2633
    %2635 = vrot.lane.b32.xlu0 %v2578, 112
    %v2636 = vpop.permute.xlu0 %2635
    %v2637 = vsel %vm491, %v2626, %v2628
    %v2638 = vsel %vm491, %v2628, %v2630
    %v2639 = vsel %vm491, %v2632, %v2634
    %v2640 = vsel %vm491, %v2634, %v2636
    %v2647 = vadd.f32 %v2565, %v2637
    %v2648 = vadd.f32 %v2566, %v2638
    %v2649 = vadd.f32 %v2567, %v2630
    %v2650 = vadd.f32 %v2568, %v2639
    %v2651 = vadd.f32 %v2569, %v2640
    %v2652 = vadd.f32 %v2570, %v2636
    %2659 = vrot.lane.b32.xlu0 %v2589, 112
    %v2660 = vpop.permute.xlu0 %2659
    %2661 = vrot.lane.b32.xlu0 %v2590, 112
    %v2662 = vpop.permute.xlu0 %2661
    %2663 = vrot.lane.b32.xlu0 %v2591, 112
    %v2664 = vpop.permute.xlu0 %2663
    %2665 = vrot.lane.b32.xlu0 %v2592, 112
    %v2666 = vpop.permute.xlu0 %2665
    %2667 = vrot.lane.b32.xlu0 %v2593, 112
    %v2668 = vpop.permute.xlu0 %2667
    %2669 = vrot.lane.b32.xlu0 %v2594, 112
    %v2670 = vpop.permute.xlu0 %2669
    %v2671 = vsel %vm491, %v2660, %v2662
    %v2672 = vsel %vm491, %v2662, %v2664
    %v2673 = vsel %vm491, %v2666, %v2668
    %v2674 = vsel %vm491, %v2668, %v2670
    %v2681 = vadd.f32 %v2581, %v2671
    %v2682 = vadd.f32 %v2582, %v2672
    %v2683 = vadd.f32 %v2583, %v2664
    %v2684 = vadd.f32 %v2584, %v2673
    %v2685 = vadd.f32 %v2585, %v2674
    %v2686 = vadd.f32 %v2586, %v2670
    %2693 = vrot.lane.b32.xlu0 %v2605, 112
    %v2694 = vpop.permute.xlu0 %2693
    %2695 = vrot.lane.b32.xlu0 %v2606, 112
    %v2696 = vpop.permute.xlu0 %2695
    %2697 = vrot.lane.b32.xlu0 %v2607, 112
    %v2698 = vpop.permute.xlu0 %2697
    %2699 = vrot.lane.b32.xlu0 %v2608, 112
    %v2700 = vpop.permute.xlu0 %2699
    %2701 = vrot.lane.b32.xlu0 %v2609, 112
    %v2702 = vpop.permute.xlu0 %2701
    %2703 = vrot.lane.b32.xlu0 %v2610, 112
    %v2704 = vpop.permute.xlu0 %2703
    %v2705 = vsel %vm491, %v2694, %v2696
    %v2706 = vsel %vm491, %v2696, %v2698
    %v2707 = vsel %vm491, %v2700, %v2702
    %v2708 = vsel %vm491, %v2702, %v2704
    %v2715 = vadd.f32 %v2597, %v2705
    %v2716 = vadd.f32 %v2598, %v2706
    %v2717 = vadd.f32 %v2599, %v2698
    %v2718 = vadd.f32 %v2600, %v2707
    %v2719 = vadd.f32 %v2601, %v2708
    %v2720 = vadd.f32 %v2602, %v2704
    %2727 = vrot.lane.b32.xlu0 %v2681, 96
    %v2728 = vpop.permute.xlu0 %2727
    %2729 = vrot.lane.b32.xlu0 %v2682, 96
    %v2730 = vpop.permute.xlu0 %2729
    %2731 = vrot.lane.b32.xlu0 %v2683, 96
    %v2732 = vpop.permute.xlu0 %2731
    %2733 = vrot.lane.b32.xlu0 %v2684, 96
    %v2734 = vpop.permute.xlu0 %2733
    %2735 = vrot.lane.b32.xlu0 %v2685, 96
    %v2736 = vpop.permute.xlu0 %2735
    %2737 = vrot.lane.b32.xlu0 %v2686, 96
    %v2738 = vpop.permute.xlu0 %2737
    %v2739 = vsel %vm590, %v2728, %v2730
    %v2740 = vsel %vm590, %v2730, %v2732
    %v2741 = vsel %vm590, %v2734, %v2736
    %v2742 = vsel %vm590, %v2736, %v2738
    %v2749 = vadd.f32 %v2647, %v2739
    %v2750 = vadd.f32 %v2648, %v2740
    %v2751 = vadd.f32 %v2649, %v2732
    %v2752 = vadd.f32 %v2650, %v2741
    %v2753 = vadd.f32 %v2651, %v2742
    %v2754 = vadd.f32 %v2652, %v2738
    %2761 = vrot.lane.b32.xlu0 %v2613, 96
    %v2762 = vpop.permute.xlu0 %2761
    %2763 = vrot.lane.b32.xlu0 %v2614, 96
    %v2764 = vpop.permute.xlu0 %2763
    %2765 = vrot.lane.b32.xlu0 %v2615, 96
    %v2766 = vpop.permute.xlu0 %2765
    %2767 = vrot.lane.b32.xlu0 %v2616, 96
    %v2768 = vpop.permute.xlu0 %2767
    %2769 = vrot.lane.b32.xlu0 %v2617, 96
    %v2770 = vpop.permute.xlu0 %2769
    %2771 = vrot.lane.b32.xlu0 %v2618, 96
    %v2772 = vpop.permute.xlu0 %2771
    %v2773 = vsel %vm590, %v2762, %v2764
    %v2774 = vsel %vm590, %v2764, %v2766
    %v2775 = vsel %vm590, %v2768, %v2770
    %v2776 = vsel %vm590, %v2770, %v2772
    %v2783 = vadd.f32 %v2715, %v2773
    %v2784 = vadd.f32 %v2716, %v2774
    %v2785 = vadd.f32 %v2717, %v2766
    %v2786 = vadd.f32 %v2718, %v2775
    %v2787 = vadd.f32 %v2719, %v2776
    %v2788 = vadd.f32 %v2720, %v2772
    %2795 = vrot.lane.b32.xlu0 %v2783, 64
    %v2796 = vpop.permute.xlu0 %2795
    %2797 = vrot.lane.b32.xlu0 %v2784, 64
    %v2798 = vpop.permute.xlu0 %2797
    %2799 = vrot.lane.b32.xlu0 %v2785, 64
    %v2800 = vpop.permute.xlu0 %2799
    %2801 = vrot.lane.b32.xlu0 %v2786, 64
    %v2802 = vpop.permute.xlu0 %2801
    %2803 = vrot.lane.b32.xlu0 %v2787, 64
    %v2804 = vpop.permute.xlu0 %2803
    %2805 = vrot.lane.b32.xlu0 %v2788, 64
    %v2806 = vpop.permute.xlu0 %2805
    %v2807 = vsel %vm655, %v2796, %v2798
    %v2808 = vsel %vm655, %v2798, %v2800
    %v2809 = vsel %vm655, %v2802, %v2804
    %v2810 = vsel %vm655, %v2804, %v2806
    %v2817 = vadd.f32 %v2749, %v2807
    %v2818 = vadd.f32 %v2750, %v2808
    %v2819 = vadd.f32 %v2751, %v2800
    %v2820 = vadd.f32 %v2752, %v2809
    %v2821 = vadd.f32 %v2753, %v2810
    %v2822 = vadd.f32 %v2754, %v2806
    %s2823 = sld [smem:[#allocation7 + $0x35]]
    %v2824 = vstv %s2823
    %v2825 = vmul.f32 %v2824, %v415
    %v2826 = vmul.f32 %v2824, %v407
    %v2827 = vmul.f32 %v2824, %v417
    %v2828 = vmul.f32 %v2824, %v416
    %v2829 = vmul.f32 %v2824, %v408
    %v2830 = vmul.f32 %v2824, %v418
    %s2831 = sld [smem:[#allocation7 + $0x3c]]
    %v2832 = vstv %s2831
    %v2833 = vmul.f32 %v2832, %v415
    %v2834 = vmul.f32 %v2832, %v407
    %v2835 = vmul.f32 %v2832, %v417
    %v2836 = vmul.f32 %v2832, %v416
    %v2837 = vmul.f32 %v2832, %v408
    %v2838 = vmul.f32 %v2832, %v418
    %s2839 = sld [smem:[#allocation7 + $0x43]]
    %v2840 = vstv %s2839
    %v2841 = vmul.f32 %v2840, %v415
    %v2842 = vmul.f32 %v2840, %v407
    %v2843 = vmul.f32 %v2840, %v417
    %v2844 = vmul.f32 %v2840, %v416
    %v2845 = vmul.f32 %v2840, %v408
    %v2846 = vmul.f32 %v2840, %v418
    %s2847 = sld [smem:[#allocation7 + $0x4a]]
    %v2848 = vstv %s2847
    %v2849 = vmul.f32 %v2848, %v415
    %v2850 = vmul.f32 %v2848, %v407
    %v2851 = vmul.f32 %v2848, %v417
    %v2852 = vmul.f32 %v2848, %v416
    %v2853 = vmul.f32 %v2848, %v408
    %v2854 = vmul.f32 %v2848, %v418
    %s2855 = sld [smem:[#allocation7 + $0x51]]
    %v2856 = vstv %s2855
    %v2857 = vmul.f32 %v2856, %v415
    %v2858 = vmul.f32 %v2856, %v407
    %v2859 = vmul.f32 %v2856, %v417
    %v2860 = vmul.f32 %v2856, %v416
    %v2861 = vmul.f32 %v2856, %v408
    %v2862 = vmul.f32 %v2856, %v418
    %s2863 = sld [smem:[#allocation7 + $0x58]]
    %v2864 = vstv %s2863
    %v2865 = vmul.f32 %v2864, %v415
    %v2866 = vmul.f32 %v2864, %v407
    %v2867 = vmul.f32 %v2864, %v417
    %v2868 = vmul.f32 %v2864, %v416
    %v2869 = vmul.f32 %v2864, %v408
    %v2870 = vmul.f32 %v2864, %v418
    %s2871 = sld [smem:[#allocation7 + $0x5f]]
    %v2872 = vstv %s2871
    %v2873 = vmul.f32 %v2872, %v415
    %v2874 = vmul.f32 %v2872, %v407
    %v2875 = vmul.f32 %v2872, %v417
    %v2876 = vmul.f32 %v2872, %v416
    %v2877 = vmul.f32 %v2872, %v408
    %v2878 = vmul.f32 %v2872, %v418
    %2885 = vrot.lane.b32.xlu0 %v2833, 112
    %v2886 = vpop.permute.xlu0 %2885
    %2887 = vrot.lane.b32.xlu0 %v2834, 112
    %v2888 = vpop.permute.xlu0 %2887
    %2889 = vrot.lane.b32.xlu0 %v2835, 112
    %v2890 = vpop.permute.xlu0 %2889
    %2891 = vrot.lane.b32.xlu0 %v2836, 112
    %v2892 = vpop.permute.xlu0 %2891
    %2893 = vrot.lane.b32.xlu0 %v2837, 112
    %v2894 = vpop.permute.xlu0 %2893
    %2895 = vrot.lane.b32.xlu0 %v2838, 112
    %v2896 = vpop.permute.xlu0 %2895
    %v2897 = vsel %vm491, %v2886, %v2888
    %v2898 = vsel %vm491, %v2888, %v2890
    %v2899 = vsel %vm491, %v2892, %v2894
    %v2900 = vsel %vm491, %v2894, %v2896
    %v2907 = vadd.f32 %v2825, %v2897
    %v2908 = vadd.f32 %v2826, %v2898
    %v2909 = vadd.f32 %v2827, %v2890
    %v2910 = vadd.f32 %v2828, %v2899
    %v2911 = vadd.f32 %v2829, %v2900
    %v2912 = vadd.f32 %v2830, %v2896
    %2919 = vrot.lane.b32.xlu0 %v2849, 112
    %v2920 = vpop.permute.xlu0 %2919
    %2921 = vrot.lane.b32.xlu0 %v2850, 112
    %v2922 = vpop.permute.xlu0 %2921
    %2923 = vrot.lane.b32.xlu0 %v2851, 112
    %v2924 = vpop.permute.xlu0 %2923
    %2925 = vrot.lane.b32.xlu0 %v2852, 112
    %v2926 = vpop.permute.xlu0 %2925
    %2927 = vrot.lane.b32.xlu0 %v2853, 112
    %v2928 = vpop.permute.xlu0 %2927
    %2929 = vrot.lane.b32.xlu0 %v2854, 112
    %v2930 = vpop.permute.xlu0 %2929
    %v2931 = vsel %vm491, %v2920, %v2922
    %v2932 = vsel %vm491, %v2922, %v2924
    %v2933 = vsel %vm491, %v2926, %v2928
    %v2934 = vsel %vm491, %v2928, %v2930
    %v2941 = vadd.f32 %v2841, %v2931
    %v2942 = vadd.f32 %v2842, %v2932
    %v2943 = vadd.f32 %v2843, %v2924
    %v2944 = vadd.f32 %v2844, %v2933
    %v2945 = vadd.f32 %v2845, %v2934
    %v2946 = vadd.f32 %v2846, %v2930
    %2953 = vrot.lane.b32.xlu0 %v2865, 112
    %v2954 = vpop.permute.xlu0 %2953
    %2955 = vrot.lane.b32.xlu0 %v2866, 112
    %v2956 = vpop.permute.xlu0 %2955
    %2957 = vrot.lane.b32.xlu0 %v2867, 112
    %v2958 = vpop.permute.xlu0 %2957
    %2959 = vrot.lane.b32.xlu0 %v2868, 112
    %v2960 = vpop.permute.xlu0 %2959
    %2961 = vrot.lane.b32.xlu0 %v2869, 112
    %v2962 = vpop.permute.xlu0 %2961
    %2963 = vrot.lane.b32.xlu0 %v2870, 112
    %v2964 = vpop.permute.xlu0 %2963
    %v2965 = vsel %vm491, %v2954, %v2956
    %v2966 = vsel %vm491, %v2956, %v2958
    %v2967 = vsel %vm491, %v2960, %v2962
    %v2968 = vsel %vm491, %v2962, %v2964
    %v2975 = vadd.f32 %v2857, %v2965
    %v2976 = vadd.f32 %v2858, %v2966
    %v2977 = vadd.f32 %v2859, %v2958
    %v2978 = vadd.f32 %v2860, %v2967
    %v2979 = vadd.f32 %v2861, %v2968
    %v2980 = vadd.f32 %v2862, %v2964
    %2987 = vrot.lane.b32.xlu0 %v2941, 96
    %v2988 = vpop.permute.xlu0 %2987
    %2989 = vrot.lane.b32.xlu0 %v2942, 96
    %v2990 = vpop.permute.xlu0 %2989
    %2991 = vrot.lane.b32.xlu0 %v2943, 96
    %v2992 = vpop.permute.xlu0 %2991
    %2993 = vrot.lane.b32.xlu0 %v2944, 96
    %v2994 = vpop.permute.xlu0 %2993
    %2995 = vrot.lane.b32.xlu0 %v2945, 96
    %v2996 = vpop.permute.xlu0 %2995
    %2997 = vrot.lane.b32.xlu0 %v2946, 96
    %v2998 = vpop.permute.xlu0 %2997
    %v2999 = vsel %vm590, %v2988, %v2990
    %v3000 = vsel %vm590, %v2990, %v2992
    %v3001 = vsel %vm590, %v2994, %v2996
    %v3002 = vsel %vm590, %v2996, %v2998
    %v3009 = vadd.f32 %v2907, %v2999
    %v3010 = vadd.f32 %v2908, %v3000
    %v3011 = vadd.f32 %v2909, %v2992
    %v3012 = vadd.f32 %v2910, %v3001
    %v3013 = vadd.f32 %v2911, %v3002
    %v3014 = vadd.f32 %v2912, %v2998
    %3021 = vrot.lane.b32.xlu0 %v2873, 96
    %v3022 = vpop.permute.xlu0 %3021
    %3023 = vrot.lane.b32.xlu0 %v2874, 96
    %v3024 = vpop.permute.xlu0 %3023
    %3025 = vrot.lane.b32.xlu0 %v2875, 96
    %v3026 = vpop.permute.xlu0 %3025
    %3027 = vrot.lane.b32.xlu0 %v2876, 96
    %v3028 = vpop.permute.xlu0 %3027
    %3029 = vrot.lane.b32.xlu0 %v2877, 96
    %v3030 = vpop.permute.xlu0 %3029
    %3031 = vrot.lane.b32.xlu0 %v2878, 96
    %v3032 = vpop.permute.xlu0 %3031
    %v3033 = vsel %vm590, %v3022, %v3024
    %v3034 = vsel %vm590, %v3024, %v3026
    %v3035 = vsel %vm590, %v3028, %v3030
    %v3036 = vsel %vm590, %v3030, %v3032
    %v3043 = vadd.f32 %v2975, %v3033
    %v3044 = vadd.f32 %v2976, %v3034
    %v3045 = vadd.f32 %v2977, %v3026
    %v3046 = vadd.f32 %v2978, %v3035
    %v3047 = vadd.f32 %v2979, %v3036
    %v3048 = vadd.f32 %v2980, %v3032
    %3055 = vrot.lane.b32.xlu0 %v3043, 64
    %v3056 = vpop.permute.xlu0 %3055
    %3057 = vrot.lane.b32.xlu0 %v3044, 64
    %v3058 = vpop.permute.xlu0 %3057
    %3059 = vrot.lane.b32.xlu0 %v3045, 64
    %v3060 = vpop.permute.xlu0 %3059
    %3061 = vrot.lane.b32.xlu0 %v3046, 64
    %v3062 = vpop.permute.xlu0 %3061
    %3063 = vrot.lane.b32.xlu0 %v3047, 64
    %v3064 = vpop.permute.xlu0 %3063
    %3065 = vrot.lane.b32.xlu0 %v3048, 64
    %v3066 = vpop.permute.xlu0 %3065
    %v3067 = vsel %vm655, %v3056, %v3058
    %v3068 = vsel %vm655, %v3058, %v3060
    %v3069 = vsel %vm655, %v3062, %v3064
    %v3070 = vsel %vm655, %v3064, %v3066
    %v3077 = vadd.f32 %v3009, %v3067
    %v3078 = vadd.f32 %v3010, %v3068
    %v3079 = vadd.f32 %v3011, %v3060
    %v3080 = vadd.f32 %v3012, %v3069
    %v3081 = vadd.f32 %v3013, %v3070
    %v3082 = vadd.f32 %v3014, %v3066
    %v3083 = vadd.f32 %v2817, %v3077
    %v3084 = vadd.f32 %v2818, %v3078
    %v3085 = vadd.f32 %v2819, %v3079
    %v3086 = vadd.f32 %v2820, %v3080
    %v3087 = vadd.f32 %v2821, %v3081
    %v3088 = vadd.f32 %v2822, %v3082
    %s3089 = scalar_lea.vmem %s7, 4
    %v3090 = vld [vmem:[%s3089] ss:$8 sm:$0x3]
    %v3092 = vlaneseq
    %v3093 = vshrl.u32 %v3092, 7
    %v3094 = vsub.s32 0, %v3093
    %v3095 = vrot.slane %v3090, %v3094
    %v3096 = vlaneseq
    %v3097 = vshrl.u32 %v3096, 7
    %v3098 = vsub.s32 1, %v3097
    %v3099 = vrot.slane %v3090, %v3098
    %3100 = vrot.lane.b32.xlu0 %v3095, 4
    %v3101 = vpop.permute.xlu0 %3100
    %3102 = vrot.lane.b32.xlu0 %v3099, 4
    %v3103 = vpop.permute.xlu0 %3102
    %vm3104 = vcmask 31744
    %v3105 = vsel %vm3104, %v3101, %v3103
    %v3109 = vmul.f32 %v3083, %v3101
    %v3110 = vmul.f32 %v3084, %v3105
    %v3111 = vmul.f32 %v3085, %v3103
    %v3112 = vmul.f32 %v3086, %v3101
    %v3113 = vmul.f32 %v3087, %v3105
    %v3114 = vmul.f32 %v3088, %v3103
    %s3115 = sld [smem:[#allocation7 + $0x5]]
    %v3116 = vstv %s3115
    %v3117 = vmul.f32 %v3116, %v391
    %v3118 = vmul.f32 %v3116, %v383
    %v3119 = vmul.f32 %v3116, %v393
    %v3120 = vmul.f32 %v3116, %v392
    %v3121 = vmul.f32 %v3116, %v384
    %v3122 = vmul.f32 %v3116, %v394
    %s3123 = sld [smem:[#allocation7 + $0xc]]
    %v3124 = vstv %s3123
    %v3125 = vmul.f32 %v3124, %v391
    %v3126 = vmul.f32 %v3124, %v383
    %v3127 = vmul.f32 %v3124, %v393
    %v3128 = vmul.f32 %v3124, %v392
    %v3129 = vmul.f32 %v3124, %v384
    %v3130 = vmul.f32 %v3124, %v394
    %s3131 = sld [smem:[#allocation7 + $0x13]]
    %v3132 = vstv %s3131
    %v3133 = vmul.f32 %v3132, %v391
    %v3134 = vmul.f32 %v3132, %v383
    %v3135 = vmul.f32 %v3132, %v393
    %v3136 = vmul.f32 %v3132, %v392
    %v3137 = vmul.f32 %v3132, %v384
    %v3138 = vmul.f32 %v3132, %v394
    %s3139 = sld [smem:[#allocation7 + $0x1a]]
    %v3140 = vstv %s3139
    %v3141 = vmul.f32 %v3140, %v391
    %v3142 = vmul.f32 %v3140, %v383
    %v3143 = vmul.f32 %v3140, %v393
    %v3144 = vmul.f32 %v3140, %v392
    %v3145 = vmul.f32 %v3140, %v384
    %v3146 = vmul.f32 %v3140, %v394
    %s3147 = sld [smem:[#allocation7 + $0x21]]
    %v3148 = vstv %s3147
    %v3149 = vmul.f32 %v3148, %v391
    %v3150 = vmul.f32 %v3148, %v383
    %v3151 = vmul.f32 %v3148, %v393
    %v3152 = vmul.f32 %v3148, %v392
    %v3153 = vmul.f32 %v3148, %v384
    %v3154 = vmul.f32 %v3148, %v394
    %s3155 = sld [smem:[#allocation7 + $0x28]]
    %v3156 = vstv %s3155
    %v3157 = vmul.f32 %v3156, %v391
    %v3158 = vmul.f32 %v3156, %v383
    %v3159 = vmul.f32 %v3156, %v393
    %v3160 = vmul.f32 %v3156, %v392
    %v3161 = vmul.f32 %v3156, %v384
    %v3162 = vmul.f32 %v3156, %v394
    %s3163 = sld [smem:[#allocation7 + $0x2f]]
    %v3164 = vstv %s3163
    %v3165 = vmul.f32 %v3164, %v391
    %v3166 = vmul.f32 %v3164, %v383
    %v3167 = vmul.f32 %v3164, %v393
    %v3168 = vmul.f32 %v3164, %v392
    %v3169 = vmul.f32 %v3164, %v384
    %v3170 = vmul.f32 %v3164, %v394
    %3177 = vrot.lane.b32.xlu0 %v3125, 112
    %v3178 = vpop.permute.xlu0 %3177
    %3179 = vrot.lane.b32.xlu0 %v3126, 112
    %v3180 = vpop.permute.xlu0 %3179
    %3181 = vrot.lane.b32.xlu0 %v3127, 112
    %v3182 = vpop.permute.xlu0 %3181
    %3183 = vrot.lane.b32.xlu0 %v3128, 112
    %v3184 = vpop.permute.xlu0 %3183
    %3185 = vrot.lane.b32.xlu0 %v3129, 112
    %v3186 = vpop.permute.xlu0 %3185
    %3187 = vrot.lane.b32.xlu0 %v3130, 112
    %v3188 = vpop.permute.xlu0 %3187
    %v3189 = vsel %vm491, %v3178, %v3180
    %v3190 = vsel %vm491, %v3180, %v3182
    %v3191 = vsel %vm491, %v3184, %v3186
    %v3192 = vsel %vm491, %v3186, %v3188
    %v3199 = vadd.f32 %v3117, %v3189
    %v3200 = vadd.f32 %v3118, %v3190
    %v3201 = vadd.f32 %v3119, %v3182
    %v3202 = vadd.f32 %v3120, %v3191
    %v3203 = vadd.f32 %v3121, %v3192
    %v3204 = vadd.f32 %v3122, %v3188
    %3211 = vrot.lane.b32.xlu0 %v3141, 112
    %v3212 = vpop.permute.xlu0 %3211
    %3213 = vrot.lane.b32.xlu0 %v3142, 112
    %v3214 = vpop.permute.xlu0 %3213
    %3215 = vrot.lane.b32.xlu0 %v3143, 112
    %v3216 = vpop.permute.xlu0 %3215
    %3217 = vrot.lane.b32.xlu0 %v3144, 112
    %v3218 = vpop.permute.xlu0 %3217
    %3219 = vrot.lane.b32.xlu0 %v3145, 112
    %v3220 = vpop.permute.xlu0 %3219
    %3221 = vrot.lane.b32.xlu0 %v3146, 112
    %v3222 = vpop.permute.xlu0 %3221
    %v3223 = vsel %vm491, %v3212, %v3214
    %v3224 = vsel %vm491, %v3214, %v3216
    %v3225 = vsel %vm491, %v3218, %v3220
    %v3226 = vsel %vm491, %v3220, %v3222
    %v3233 = vadd.f32 %v3133, %v3223
    %v3234 = vadd.f32 %v3134, %v3224
    %v3235 = vadd.f32 %v3135, %v3216
    %v3236 = vadd.f32 %v3136, %v3225
    %v3237 = vadd.f32 %v3137, %v3226
    %v3238 = vadd.f32 %v3138, %v3222
    %3245 = vrot.lane.b32.xlu0 %v3157, 112
    %v3246 = vpop.permute.xlu0 %3245
    %3247 = vrot.lane.b32.xlu0 %v3158, 112
    %v3248 = vpop.permute.xlu0 %3247
    %3249 = vrot.lane.b32.xlu0 %v3159, 112
    %v3250 = vpop.permute.xlu0 %3249
    %3251 = vrot.lane.b32.xlu0 %v3160, 112
    %v3252 = vpop.permute.xlu0 %3251
    %3253 = vrot.lane.b32.xlu0 %v3161, 112
    %v3254 = vpop.permute.xlu0 %3253
    %3255 = vrot.lane.b32.xlu0 %v3162, 112
    %v3256 = vpop.permute.xlu0 %3255
    %v3257 = vsel %vm491, %v3246, %v3248
    %v3258 = vsel %vm491, %v3248, %v3250
    %v3259 = vsel %vm491, %v3252, %v3254
    %v3260 = vsel %vm491, %v3254, %v3256
    %v3267 = vadd.f32 %v3149, %v3257
    %v3268 = vadd.f32 %v3150, %v3258
    %v3269 = vadd.f32 %v3151, %v3250
    %v3270 = vadd.f32 %v3152, %v3259
    %v3271 = vadd.f32 %v3153, %v3260
    %v3272 = vadd.f32 %v3154, %v3256
    %3279 = vrot.lane.b32.xlu0 %v3233, 96
    %v3280 = vpop.permute.xlu0 %3279
    %3281 = vrot.lane.b32.xlu0 %v3234, 96
    %v3282 = vpop.permute.xlu0 %3281
    %3283 = vrot.lane.b32.xlu0 %v3235, 96
    %v3284 = vpop.permute.xlu0 %3283
    %3285 = vrot.lane.b32.xlu0 %v3236, 96
    %v3286 = vpop.permute.xlu0 %3285
    %3287 = vrot.lane.b32.xlu0 %v3237, 96
    %v3288 = vpop.permute.xlu0 %3287
    %3289 = vrot.lane.b32.xlu0 %v3238, 96
    %v3290 = vpop.permute.xlu0 %3289
    %v3291 = vsel %vm590, %v3280, %v3282
    %v3292 = vsel %vm590, %v3282, %v3284
    %v3293 = vsel %vm590, %v3286, %v3288
    %v3294 = vsel %vm590, %v3288, %v3290
    %v3301 = vadd.f32 %v3199, %v3291
    %v3302 = vadd.f32 %v3200, %v3292
    %v3303 = vadd.f32 %v3201, %v3284
    %v3304 = vadd.f32 %v3202, %v3293
    %v3305 = vadd.f32 %v3203, %v3294
    %v3306 = vadd.f32 %v3204, %v3290
    %3313 = vrot.lane.b32.xlu0 %v3165, 96
    %v3314 = vpop.permute.xlu0 %3313
    %3315 = vrot.lane.b32.xlu0 %v3166, 96
    %v3316 = vpop.permute.xlu0 %3315
    %3317 = vrot.lane.b32.xlu0 %v3167, 96
    %v3318 = vpop.permute.xlu0 %3317
    %3319 = vrot.lane.b32.xlu0 %v3168, 96
    %v3320 = vpop.permute.xlu0 %3319
    %3321 = vrot.lane.b32.xlu0 %v3169, 96
    %v3322 = vpop.permute.xlu0 %3321
    %3323 = vrot.lane.b32.xlu0 %v3170, 96
    %v3324 = vpop.permute.xlu0 %3323
    %v3325 = vsel %vm590, %v3314, %v3316
    %v3326 = vsel %vm590, %v3316, %v3318
    %v3327 = vsel %vm590, %v3320, %v3322
    %v3328 = vsel %vm590, %v3322, %v3324
    %v3335 = vadd.f32 %v3267, %v3325
    %v3336 = vadd.f32 %v3268, %v3326
    %v3337 = vadd.f32 %v3269, %v3318
    %v3338 = vadd.f32 %v3270, %v3327
    %v3339 = vadd.f32 %v3271, %v3328
    %v3340 = vadd.f32 %v3272, %v3324
    %3347 = vrot.lane.b32.xlu0 %v3335, 64
    %v3348 = vpop.permute.xlu0 %3347
    %3349 = vrot.lane.b32.xlu0 %v3336, 64
    %v3350 = vpop.permute.xlu0 %3349
    %3351 = vrot.lane.b32.xlu0 %v3337, 64
    %v3352 = vpop.permute.xlu0 %3351
    %3353 = vrot.lane.b32.xlu0 %v3338, 64
    %v3354 = vpop.permute.xlu0 %3353
    %3355 = vrot.lane.b32.xlu0 %v3339, 64
    %v3356 = vpop.permute.xlu0 %3355
    %3357 = vrot.lane.b32.xlu0 %v3340, 64
    %v3358 = vpop.permute.xlu0 %3357
    %v3359 = vsel %vm655, %v3348, %v3350
    %v3360 = vsel %vm655, %v3350, %v3352
    %v3361 = vsel %vm655, %v3354, %v3356
    %v3362 = vsel %vm655, %v3356, %v3358
    %v3369 = vadd.f32 %v3301, %v3359
    %v3370 = vadd.f32 %v3302, %v3360
    %v3371 = vadd.f32 %v3303, %v3352
    %v3372 = vadd.f32 %v3304, %v3361
    %v3373 = vadd.f32 %v3305, %v3362
    %v3374 = vadd.f32 %v3306, %v3358
    %s3375 = sld [smem:[#allocation7 + $0x36]]
    %v3376 = vstv %s3375
    %v3377 = vmul.f32 %v3376, %v415
    %v3378 = vmul.f32 %v3376, %v407
    %v3379 = vmul.f32 %v3376, %v417
    %v3380 = vmul.f32 %v3376, %v416
    %v3381 = vmul.f32 %v3376, %v408
    %v3382 = vmul.f32 %v3376, %v418
    %s3383 = sld [smem:[#allocation7 + $0x3d]]
    %v3384 = vstv %s3383
    %v3385 = vmul.f32 %v3384, %v415
    %v3386 = vmul.f32 %v3384, %v407
    %v3387 = vmul.f32 %v3384, %v417
    %v3388 = vmul.f32 %v3384, %v416
    %v3389 = vmul.f32 %v3384, %v408
    %v3390 = vmul.f32 %v3384, %v418
    %s3391 = sld [smem:[#allocation7 + $0x44]]
    %v3392 = vstv %s3391
    %v3393 = vmul.f32 %v3392, %v415
    %v3394 = vmul.f32 %v3392, %v407
    %v3395 = vmul.f32 %v3392, %v417
    %v3396 = vmul.f32 %v3392, %v416
    %v3397 = vmul.f32 %v3392, %v408
    %v3398 = vmul.f32 %v3392, %v418
    %s3399 = sld [smem:[#allocation7 + $0x4b]]
    %v3400 = vstv %s3399
    %v3401 = vmul.f32 %v3400, %v415
    %v3402 = vmul.f32 %v3400, %v407
    %v3403 = vmul.f32 %v3400, %v417
    %v3404 = vmul.f32 %v3400, %v416
    %v3405 = vmul.f32 %v3400, %v408
    %v3406 = vmul.f32 %v3400, %v418
    %s3407 = sld [smem:[#allocation7 + $0x52]]
    %v3408 = vstv %s3407
    %v3409 = vmul.f32 %v3408, %v415
    %v3410 = vmul.f32 %v3408, %v407
    %v3411 = vmul.f32 %v3408, %v417
    %v3412 = vmul.f32 %v3408, %v416
    %v3413 = vmul.f32 %v3408, %v408
    %v3414 = vmul.f32 %v3408, %v418
    %s3415 = sld [smem:[#allocation7 + $0x59]]
    %v3416 = vstv %s3415
    %v3417 = vmul.f32 %v3416, %v415
    %v3418 = vmul.f32 %v3416, %v407
    %v3419 = vmul.f32 %v3416, %v417
    %v3420 = vmul.f32 %v3416, %v416
    %v3421 = vmul.f32 %v3416, %v408
    %v3422 = vmul.f32 %v3416, %v418
    %s3423 = sld [smem:[#allocation7 + $0x60]]
    %v3424 = vstv %s3423
    %v3425 = vmul.f32 %v3424, %v415
    %v3426 = vmul.f32 %v3424, %v407
    %v3427 = vmul.f32 %v3424, %v417
    %v3428 = vmul.f32 %v3424, %v416
    %v3429 = vmul.f32 %v3424, %v408
    %v3430 = vmul.f32 %v3424, %v418
    %3437 = vrot.lane.b32.xlu0 %v3385, 112
    %v3438 = vpop.permute.xlu0 %3437
    %3439 = vrot.lane.b32.xlu0 %v3386, 112
    %v3440 = vpop.permute.xlu0 %3439
    %3441 = vrot.lane.b32.xlu0 %v3387, 112
    %v3442 = vpop.permute.xlu0 %3441
    %3443 = vrot.lane.b32.xlu0 %v3388, 112
    %v3444 = vpop.permute.xlu0 %3443
    %3445 = vrot.lane.b32.xlu0 %v3389, 112
    %v3446 = vpop.permute.xlu0 %3445
    %3447 = vrot.lane.b32.xlu0 %v3390, 112
    %v3448 = vpop.permute.xlu0 %3447
    %v3449 = vsel %vm491, %v3438, %v3440
    %v3450 = vsel %vm491, %v3440, %v3442
    %v3451 = vsel %vm491, %v3444, %v3446
    %v3452 = vsel %vm491, %v3446, %v3448
    %v3459 = vadd.f32 %v3377, %v3449
    %v3460 = vadd.f32 %v3378, %v3450
    %v3461 = vadd.f32 %v3379, %v3442
    %v3462 = vadd.f32 %v3380, %v3451
    %v3463 = vadd.f32 %v3381, %v3452
    %v3464 = vadd.f32 %v3382, %v3448
    %3471 = vrot.lane.b32.xlu0 %v3401, 112
    %v3472 = vpop.permute.xlu0 %3471
    %3473 = vrot.lane.b32.xlu0 %v3402, 112
    %v3474 = vpop.permute.xlu0 %3473
    %3475 = vrot.lane.b32.xlu0 %v3403, 112
    %v3476 = vpop.permute.xlu0 %3475
    %3477 = vrot.lane.b32.xlu0 %v3404, 112
    %v3478 = vpop.permute.xlu0 %3477
    %3479 = vrot.lane.b32.xlu0 %v3405, 112
    %v3480 = vpop.permute.xlu0 %3479
    %3481 = vrot.lane.b32.xlu0 %v3406, 112
    %v3482 = vpop.permute.xlu0 %3481
    %v3483 = vsel %vm491, %v3472, %v3474
    %v3484 = vsel %vm491, %v3474, %v3476
    %v3485 = vsel %vm491, %v3478, %v3480
    %v3486 = vsel %vm491, %v3480, %v3482
    %v3493 = vadd.f32 %v3393, %v3483
    %v3494 = vadd.f32 %v3394, %v3484
    %v3495 = vadd.f32 %v3395, %v3476
    %v3496 = vadd.f32 %v3396, %v3485
    %v3497 = vadd.f32 %v3397, %v3486
    %v3498 = vadd.f32 %v3398, %v3482
    %3505 = vrot.lane.b32.xlu0 %v3417, 112
    %v3506 = vpop.permute.xlu0 %3505
    %3507 = vrot.lane.b32.xlu0 %v3418, 112
    %v3508 = vpop.permute.xlu0 %3507
    %3509 = vrot.lane.b32.xlu0 %v3419, 112
    %v3510 = vpop.permute.xlu0 %3509
    %3511 = vrot.lane.b32.xlu0 %v3420, 112
    %v3512 = vpop.permute.xlu0 %3511
    %3513 = vrot.lane.b32.xlu0 %v3421, 112
    %v3514 = vpop.permute.xlu0 %3513
    %3515 = vrot.lane.b32.xlu0 %v3422, 112
    %v3516 = vpop.permute.xlu0 %3515
    %v3517 = vsel %vm491, %v3506, %v3508
    %v3518 = vsel %vm491, %v3508, %v3510
    %v3519 = vsel %vm491, %v3512, %v3514
    %v3520 = vsel %vm491, %v3514, %v3516
    %v3527 = vadd.f32 %v3409, %v3517
    %v3528 = vadd.f32 %v3410, %v3518
    %v3529 = vadd.f32 %v3411, %v3510
    %v3530 = vadd.f32 %v3412, %v3519
    %v3531 = vadd.f32 %v3413, %v3520
    %v3532 = vadd.f32 %v3414, %v3516
    %3539 = vrot.lane.b32.xlu0 %v3493, 96
    %v3540 = vpop.permute.xlu0 %3539
    %3541 = vrot.lane.b32.xlu0 %v3494, 96
    %v3542 = vpop.permute.xlu0 %3541
    %3543 = vrot.lane.b32.xlu0 %v3495, 96
    %v3544 = vpop.permute.xlu0 %3543
    %3545 = vrot.lane.b32.xlu0 %v3496, 96
    %v3546 = vpop.permute.xlu0 %3545
    %3547 = vrot.lane.b32.xlu0 %v3497, 96
    %v3548 = vpop.permute.xlu0 %3547
    %3549 = vrot.lane.b32.xlu0 %v3498, 96
    %v3550 = vpop.permute.xlu0 %3549
    %v3551 = vsel %vm590, %v3540, %v3542
    %v3552 = vsel %vm590, %v3542, %v3544
    %v3553 = vsel %vm590, %v3546, %v3548
    %v3554 = vsel %vm590, %v3548, %v3550
    %v3561 = vadd.f32 %v3459, %v3551
    %v3562 = vadd.f32 %v3460, %v3552
    %v3563 = vadd.f32 %v3461, %v3544
    %v3564 = vadd.f32 %v3462, %v3553
    %v3565 = vadd.f32 %v3463, %v3554
    %v3566 = vadd.f32 %v3464, %v3550
    %3573 = vrot.lane.b32.xlu0 %v3425, 96
    %v3574 = vpop.permute.xlu0 %3573
    %3575 = vrot.lane.b32.xlu0 %v3426, 96
    %v3576 = vpop.permute.xlu0 %3575
    %3577 = vrot.lane.b32.xlu0 %v3427, 96
    %v3578 = vpop.permute.xlu0 %3577
    %3579 = vrot.lane.b32.xlu0 %v3428, 96
    %v3580 = vpop.permute.xlu0 %3579
    %3581 = vrot.lane.b32.xlu0 %v3429, 96
    %v3582 = vpop.permute.xlu0 %3581
    %3583 = vrot.lane.b32.xlu0 %v3430, 96
    %v3584 = vpop.permute.xlu0 %3583
    %v3585 = vsel %vm590, %v3574, %v3576
    %v3586 = vsel %vm590, %v3576, %v3578
    %v3587 = vsel %vm590, %v3580, %v3582
    %v3588 = vsel %vm590, %v3582, %v3584
    %v3595 = vadd.f32 %v3527, %v3585
    %v3596 = vadd.f32 %v3528, %v3586
    %v3597 = vadd.f32 %v3529, %v3578
    %v3598 = vadd.f32 %v3530, %v3587
    %v3599 = vadd.f32 %v3531, %v3588
    %v3600 = vadd.f32 %v3532, %v3584
    %3607 = vrot.lane.b32.xlu0 %v3595, 64
    %v3608 = vpop.permute.xlu0 %3607
    %3609 = vrot.lane.b32.xlu0 %v3596, 64
    %v3610 = vpop.permute.xlu0 %3609
    %3611 = vrot.lane.b32.xlu0 %v3597, 64
    %v3612 = vpop.permute.xlu0 %3611
    %3613 = vrot.lane.b32.xlu0 %v3598, 64
    %v3614 = vpop.permute.xlu0 %3613
    %3615 = vrot.lane.b32.xlu0 %v3599, 64
    %v3616 = vpop.permute.xlu0 %3615
    %3617 = vrot.lane.b32.xlu0 %v3600, 64
    %v3618 = vpop.permute.xlu0 %3617
    %v3619 = vsel %vm655, %v3608, %v3610
    %v3620 = vsel %vm655, %v3610, %v3612
    %v3621 = vsel %vm655, %v3614, %v3616
    %v3622 = vsel %vm655, %v3616, %v3618
    %v3629 = vadd.f32 %v3561, %v3619
    %v3630 = vadd.f32 %v3562, %v3620
    %v3631 = vadd.f32 %v3563, %v3612
    %v3632 = vadd.f32 %v3564, %v3621
    %v3633 = vadd.f32 %v3565, %v3622
    %v3634 = vadd.f32 %v3566, %v3618
    %v3635 = vadd.f32 %v3369, %v3629
    %v3636 = vadd.f32 %v3370, %v3630
    %v3637 = vadd.f32 %v3371, %v3631
    %v3638 = vadd.f32 %v3372, %v3632
    %v3639 = vadd.f32 %v3373, %v3633
    %v3640 = vadd.f32 %v3374, %v3634
    %s3641 = scalar_lea.vmem %s7, 5
    %v3642 = vld [vmem:[%s3641] ss:$8 sm:$0x3]
    %v3644 = vlaneseq
    %v3645 = vshrl.u32 %v3644, 7
    %v3646 = vsub.s32 0, %v3645
    %v3647 = vrot.slane %v3642, %v3646
    %v3648 = vlaneseq
    %v3649 = vshrl.u32 %v3648, 7
    %v3650 = vsub.s32 1, %v3649
    %v3651 = vrot.slane %v3642, %v3650
    %3652 = vrot.lane.b32.xlu0 %v3647, 5
    %v3653 = vpop.permute.xlu0 %3652
    %3654 = vrot.lane.b32.xlu0 %v3651, 5
    %v3655 = vpop.permute.xlu0 %3654
    %vm3656 = vcmask 39936
    %v3657 = vsel %vm3656, %v3653, %v3655
    %v3661 = vmul.f32 %v3635, %v3653
    %v3662 = vmul.f32 %v3636, %v3657
    %v3663 = vmul.f32 %v3637, %v3655
    %v3664 = vmul.f32 %v3638, %v3653
    %v3665 = vmul.f32 %v3639, %v3657
    %v3666 = vmul.f32 %v3640, %v3655
    %s3667 = sld [smem:[#allocation7 + $0x6]]
    %v3668 = vstv %s3667
    %v3669 = vmul.f32 %v3668, %v391
    %v3670 = vmul.f32 %v3668, %v383
    %v3671 = vmul.f32 %v3668, %v393
    %v3672 = vmul.f32 %v3668, %v392
    %v3673 = vmul.f32 %v3668, %v384
    %v3674 = vmul.f32 %v3668, %v394
    %s3675 = sld [smem:[#allocation7 + $0xd]]
    %v3676 = vstv %s3675
    %v3677 = vmul.f32 %v3676, %v391
    %v3678 = vmul.f32 %v3676, %v383
    %v3679 = vmul.f32 %v3676, %v393
    %v3680 = vmul.f32 %v3676, %v392
    %v3681 = vmul.f32 %v3676, %v384
    %v3682 = vmul.f32 %v3676, %v394
    %s3683 = sld [smem:[#allocation7 + $0x14]]
    %v3684 = vstv %s3683
    %v3685 = vmul.f32 %v3684, %v391
    %v3686 = vmul.f32 %v3684, %v383
    %v3687 = vmul.f32 %v3684, %v393
    %v3688 = vmul.f32 %v3684, %v392
    %v3689 = vmul.f32 %v3684, %v384
    %v3690 = vmul.f32 %v3684, %v394
    %s3691 = sld [smem:[#allocation7 + $0x1b]]
    %v3692 = vstv %s3691
    %v3693 = vmul.f32 %v3692, %v391
    %v3694 = vmul.f32 %v3692, %v383
    %v3695 = vmul.f32 %v3692, %v393
    %v3696 = vmul.f32 %v3692, %v392
    %v3697 = vmul.f32 %v3692, %v384
    %v3698 = vmul.f32 %v3692, %v394
    %s3699 = sld [smem:[#allocation7 + $0x22]]
    %v3700 = vstv %s3699
    %v3701 = vmul.f32 %v3700, %v391
    %v3702 = vmul.f32 %v3700, %v383
    %v3703 = vmul.f32 %v3700, %v393
    %v3704 = vmul.f32 %v3700, %v392
    %v3705 = vmul.f32 %v3700, %v384
    %v3706 = vmul.f32 %v3700, %v394
    %s3707 = sld [smem:[#allocation7 + $0x29]]
    %v3708 = vstv %s3707
    %v3709 = vmul.f32 %v3708, %v391
    %v3710 = vmul.f32 %v3708, %v383
    %v3711 = vmul.f32 %v3708, %v393
    %v3712 = vmul.f32 %v3708, %v392
    %v3713 = vmul.f32 %v3708, %v384
    %v3714 = vmul.f32 %v3708, %v394
    %s3715 = sld [smem:[#allocation7 + $0x30]]
    %v3716 = vstv %s3715
    %v3717 = vmul.f32 %v3716, %v391
    %v3718 = vmul.f32 %v3716, %v383
    %v3719 = vmul.f32 %v3716, %v393
    %v3720 = vmul.f32 %v3716, %v392
    %v3721 = vmul.f32 %v3716, %v384
    %v3722 = vmul.f32 %v3716, %v394
    %3729 = vrot.lane.b32.xlu0 %v3677, 112
    %v3730 = vpop.permute.xlu0 %3729
    %3731 = vrot.lane.b32.xlu0 %v3678, 112
    %v3732 = vpop.permute.xlu0 %3731
    %3733 = vrot.lane.b32.xlu0 %v3679, 112
    %v3734 = vpop.permute.xlu0 %3733
    %3735 = vrot.lane.b32.xlu0 %v3680, 112
    %v3736 = vpop.permute.xlu0 %3735
    %3737 = vrot.lane.b32.xlu0 %v3681, 112
    %v3738 = vpop.permute.xlu0 %3737
    %3739 = vrot.lane.b32.xlu0 %v3682, 112
    %v3740 = vpop.permute.xlu0 %3739
    %v3741 = vsel %vm491, %v3730, %v3732
    %v3742 = vsel %vm491, %v3732, %v3734
    %v3743 = vsel %vm491, %v3736, %v3738
    %v3744 = vsel %vm491, %v3738, %v3740
    %v3751 = vadd.f32 %v3669, %v3741
    %v3752 = vadd.f32 %v3670, %v3742
    %v3753 = vadd.f32 %v3671, %v3734
    %v3754 = vadd.f32 %v3672, %v3743
    %v3755 = vadd.f32 %v3673, %v3744
    %v3756 = vadd.f32 %v3674, %v3740
    %3763 = vrot.lane.b32.xlu0 %v3693, 112
    %v3764 = vpop.permute.xlu0 %3763
    %3765 = vrot.lane.b32.xlu0 %v3694, 112
    %v3766 = vpop.permute.xlu0 %3765
    %3767 = vrot.lane.b32.xlu0 %v3695, 112
    %v3768 = vpop.permute.xlu0 %3767
    %3769 = vrot.lane.b32.xlu0 %v3696, 112
    %v3770 = vpop.permute.xlu0 %3769
    %3771 = vrot.lane.b32.xlu0 %v3697, 112
    %v3772 = vpop.permute.xlu0 %3771
    %3773 = vrot.lane.b32.xlu0 %v3698, 112
    %v3774 = vpop.permute.xlu0 %3773
    %v3775 = vsel %vm491, %v3764, %v3766
    %v3776 = vsel %vm491, %v3766, %v3768
    %v3777 = vsel %vm491, %v3770, %v3772
    %v3778 = vsel %vm491, %v3772, %v3774
    %v3785 = vadd.f32 %v3685, %v3775
    %v3786 = vadd.f32 %v3686, %v3776
    %v3787 = vadd.f32 %v3687, %v3768
    %v3788 = vadd.f32 %v3688, %v3777
    %v3789 = vadd.f32 %v3689, %v3778
    %v3790 = vadd.f32 %v3690, %v3774
    %3797 = vrot.lane.b32.xlu0 %v3709, 112
    %v3798 = vpop.permute.xlu0 %3797
    %3799 = vrot.lane.b32.xlu0 %v3710, 112
    %v3800 = vpop.permute.xlu0 %3799
    %3801 = vrot.lane.b32.xlu0 %v3711, 112
    %v3802 = vpop.permute.xlu0 %3801
    %3803 = vrot.lane.b32.xlu0 %v3712, 112
    %v3804 = vpop.permute.xlu0 %3803
    %3805 = vrot.lane.b32.xlu0 %v3713, 112
    %v3806 = vpop.permute.xlu0 %3805
    %3807 = vrot.lane.b32.xlu0 %v3714, 112
    %v3808 = vpop.permute.xlu0 %3807
    %v3809 = vsel %vm491, %v3798, %v3800
    %v3810 = vsel %vm491, %v3800, %v3802
    %v3811 = vsel %vm491, %v3804, %v3806
    %v3812 = vsel %vm491, %v3806, %v3808
    %v3819 = vadd.f32 %v3701, %v3809
    %v3820 = vadd.f32 %v3702, %v3810
    %v3821 = vadd.f32 %v3703, %v3802
    %v3822 = vadd.f32 %v3704, %v3811
    %v3823 = vadd.f32 %v3705, %v3812
    %v3824 = vadd.f32 %v3706, %v3808
    %3831 = vrot.lane.b32.xlu0 %v3785, 96
    %v3832 = vpop.permute.xlu0 %3831
    %3833 = vrot.lane.b32.xlu0 %v3786, 96
    %v3834 = vpop.permute.xlu0 %3833
    %3835 = vrot.lane.b32.xlu0 %v3787, 96
    %v3836 = vpop.permute.xlu0 %3835
    %3837 = vrot.lane.b32.xlu0 %v3788, 96
    %v3838 = vpop.permute.xlu0 %3837
    %3839 = vrot.lane.b32.xlu0 %v3789, 96
    %v3840 = vpop.permute.xlu0 %3839
    %3841 = vrot.lane.b32.xlu0 %v3790, 96
    %v3842 = vpop.permute.xlu0 %3841
    %v3843 = vsel %vm590, %v3832, %v3834
    %v3844 = vsel %vm590, %v3834, %v3836
    %v3845 = vsel %vm590, %v3838, %v3840
    %v3846 = vsel %vm590, %v3840, %v3842
    %v3853 = vadd.f32 %v3751, %v3843
    %v3854 = vadd.f32 %v3752, %v3844
    %v3855 = vadd.f32 %v3753, %v3836
    %v3856 = vadd.f32 %v3754, %v3845
    %v3857 = vadd.f32 %v3755, %v3846
    %v3858 = vadd.f32 %v3756, %v3842
    %3865 = vrot.lane.b32.xlu0 %v3717, 96
    %v3866 = vpop.permute.xlu0 %3865
    %3867 = vrot.lane.b32.xlu0 %v3718, 96
    %v3868 = vpop.permute.xlu0 %3867
    %3869 = vrot.lane.b32.xlu0 %v3719, 96
    %v3870 = vpop.permute.xlu0 %3869
    %3871 = vrot.lane.b32.xlu0 %v3720, 96
    %v3872 = vpop.permute.xlu0 %3871
    %3873 = vrot.lane.b32.xlu0 %v3721, 96
    %v3874 = vpop.permute.xlu0 %3873
    %3875 = vrot.lane.b32.xlu0 %v3722, 96
    %v3876 = vpop.permute.xlu0 %3875
    %v3877 = vsel %vm590, %v3866, %v3868
    %v3878 = vsel %vm590, %v3868, %v3870
    %v3879 = vsel %vm590, %v3872, %v3874
    %v3880 = vsel %vm590, %v3874, %v3876
    %v3887 = vadd.f32 %v3819, %v3877
    %v3888 = vadd.f32 %v3820, %v3878
    %v3889 = vadd.f32 %v3821, %v3870
    %v3890 = vadd.f32 %v3822, %v3879
    %v3891 = vadd.f32 %v3823, %v3880
    %v3892 = vadd.f32 %v3824, %v3876
    %3899 = vrot.lane.b32.xlu0 %v3887, 64
    %v3900 = vpop.permute.xlu0 %3899
    %3901 = vrot.lane.b32.xlu0 %v3888, 64
    %v3902 = vpop.permute.xlu0 %3901
    %3903 = vrot.lane.b32.xlu0 %v3889, 64
    %v3904 = vpop.permute.xlu0 %3903
    %3905 = vrot.lane.b32.xlu0 %v3890, 64
    %v3906 = vpop.permute.xlu0 %3905
    %3907 = vrot.lane.b32.xlu0 %v3891, 64
    %v3908 = vpop.permute.xlu0 %3907
    %3909 = vrot.lane.b32.xlu0 %v3892, 64
    %v3910 = vpop.permute.xlu0 %3909
    %v3911 = vsel %vm655, %v3900, %v3902
    %v3912 = vsel %vm655, %v3902, %v3904
    %v3913 = vsel %vm655, %v3906, %v3908
    %v3914 = vsel %vm655, %v3908, %v3910
    %v3921 = vadd.f32 %v3853, %v3911
    %v3922 = vadd.f32 %v3854, %v3912
    %v3923 = vadd.f32 %v3855, %v3904
    %v3924 = vadd.f32 %v3856, %v3913
    %v3925 = vadd.f32 %v3857, %v3914
    %v3926 = vadd.f32 %v3858, %v3910
    %s3927 = sld [smem:[#allocation7 + $0x37]]
    %v3928 = vstv %s3927
    %v3929 = vmul.f32 %v3928, %v415
    %v3930 = vmul.f32 %v3928, %v407
    %v3931 = vmul.f32 %v3928, %v417
    %v3932 = vmul.f32 %v3928, %v416
    %v3933 = vmul.f32 %v3928, %v408
    %v3934 = vmul.f32 %v3928, %v418
    %s3935 = sld [smem:[#allocation7 + $0x3e]]
    %v3936 = vstv %s3935
    %v3937 = vmul.f32 %v3936, %v415
    %v3938 = vmul.f32 %v3936, %v407
    %v3939 = vmul.f32 %v3936, %v417
    %v3940 = vmul.f32 %v3936, %v416
    %v3941 = vmul.f32 %v3936, %v408
    %v3942 = vmul.f32 %v3936, %v418
    %s3943 = sld [smem:[#allocation7 + $0x45]]
    %v3944 = vstv %s3943
    %v3945 = vmul.f32 %v3944, %v415
    %v3946 = vmul.f32 %v3944, %v407
    %v3947 = vmul.f32 %v3944, %v417
    %v3948 = vmul.f32 %v3944, %v416
    %v3949 = vmul.f32 %v3944, %v408
    %v3950 = vmul.f32 %v3944, %v418
    %s3951 = sld [smem:[#allocation7 + $0x4c]]
    %v3952 = vstv %s3951
    %v3953 = vmul.f32 %v3952, %v415
    %v3954 = vmul.f32 %v3952, %v407
    %v3955 = vmul.f32 %v3952, %v417
    %v3956 = vmul.f32 %v3952, %v416
    %v3957 = vmul.f32 %v3952, %v408
    %v3958 = vmul.f32 %v3952, %v418
    %s3959 = sld [smem:[#allocation7 + $0x53]]
    %v3960 = vstv %s3959
    %v3961 = vmul.f32 %v3960, %v415
    %v3962 = vmul.f32 %v3960, %v407
    %v3963 = vmul.f32 %v3960, %v417
    %v3964 = vmul.f32 %v3960, %v416
    %v3965 = vmul.f32 %v3960, %v408
    %v3966 = vmul.f32 %v3960, %v418
    %s3967 = sld [smem:[#allocation7 + $0x5a]]
    %v3968 = vstv %s3967
    %v3969 = vmul.f32 %v3968, %v415
    %v3970 = vmul.f32 %v3968, %v407
    %v3971 = vmul.f32 %v3968, %v417
    %v3972 = vmul.f32 %v3968, %v416
    %v3973 = vmul.f32 %v3968, %v408
    %v3974 = vmul.f32 %v3968, %v418
    %s3975 = sld [smem:[#allocation7 + $0x61]]
    %v3976 = vstv %s3975
    %v3977 = vmul.f32 %v3976, %v415
    %v3978 = vmul.f32 %v3976, %v407
    %v3979 = vmul.f32 %v3976, %v417
    %v3980 = vmul.f32 %v3976, %v416
    %v3981 = vmul.f32 %v3976, %v408
    %v3982 = vmul.f32 %v3976, %v418
    %3989 = vrot.lane.b32.xlu0 %v3937, 112
    %v3990 = vpop.permute.xlu0 %3989
    %3991 = vrot.lane.b32.xlu0 %v3938, 112
    %v3992 = vpop.permute.xlu0 %3991
    %3993 = vrot.lane.b32.xlu0 %v3939, 112
    %v3994 = vpop.permute.xlu0 %3993
    %3995 = vrot.lane.b32.xlu0 %v3940, 112
    %v3996 = vpop.permute.xlu0 %3995
    %3997 = vrot.lane.b32.xlu0 %v3941, 112
    %v3998 = vpop.permute.xlu0 %3997
    %3999 = vrot.lane.b32.xlu0 %v3942, 112
    %v4000 = vpop.permute.xlu0 %3999
    %v4001 = vsel %vm491, %v3990, %v3992
    %v4002 = vsel %vm491, %v3992, %v3994
    %v4003 = vsel %vm491, %v3996, %v3998
    %v4004 = vsel %vm491, %v3998, %v4000
    %v4011 = vadd.f32 %v3929, %v4001
    %v4012 = vadd.f32 %v3930, %v4002
    %v4013 = vadd.f32 %v3931, %v3994
    %v4014 = vadd.f32 %v3932, %v4003
    %v4015 = vadd.f32 %v3933, %v4004
    %v4016 = vadd.f32 %v3934, %v4000
    %4023 = vrot.lane.b32.xlu0 %v3953, 112
    %v4024 = vpop.permute.xlu0 %4023
    %4025 = vrot.lane.b32.xlu0 %v3954, 112
    %v4026 = vpop.permute.xlu0 %4025
    %4027 = vrot.lane.b32.xlu0 %v3955, 112
    %v4028 = vpop.permute.xlu0 %4027
    %4029 = vrot.lane.b32.xlu0 %v3956, 112
    %v4030 = vpop.permute.xlu0 %4029
    %4031 = vrot.lane.b32.xlu0 %v3957, 112
    %v4032 = vpop.permute.xlu0 %4031
    %4033 = vrot.lane.b32.xlu0 %v3958, 112
    %v4034 = vpop.permute.xlu0 %4033
    %v4035 = vsel %vm491, %v4024, %v4026
    %v4036 = vsel %vm491, %v4026, %v4028
    %v4037 = vsel %vm491, %v4030, %v4032
    %v4038 = vsel %vm491, %v4032, %v4034
    %v4045 = vadd.f32 %v3945, %v4035
    %v4046 = vadd.f32 %v3946, %v4036
    %v4047 = vadd.f32 %v3947, %v4028
    %v4048 = vadd.f32 %v3948, %v4037
    %v4049 = vadd.f32 %v3949, %v4038
    %v4050 = vadd.f32 %v3950, %v4034
    %4057 = vrot.lane.b32.xlu0 %v3969, 112
    %v4058 = vpop.permute.xlu0 %4057
    %4059 = vrot.lane.b32.xlu0 %v3970, 112
    %v4060 = vpop.permute.xlu0 %4059
    %4061 = vrot.lane.b32.xlu0 %v3971, 112
    %v4062 = vpop.permute.xlu0 %4061
    %4063 = vrot.lane.b32.xlu0 %v3972, 112
    %v4064 = vpop.permute.xlu0 %4063
    %4065 = vrot.lane.b32.xlu0 %v3973, 112
    %v4066 = vpop.permute.xlu0 %4065
    %4067 = vrot.lane.b32.xlu0 %v3974, 112
    %v4068 = vpop.permute.xlu0 %4067
    %v4069 = vsel %vm491, %v4058, %v4060
    %v4070 = vsel %vm491, %v4060, %v4062
    %v4071 = vsel %vm491, %v4064, %v4066
    %v4072 = vsel %vm491, %v4066, %v4068
    %v4079 = vadd.f32 %v3961, %v4069
    %v4080 = vadd.f32 %v3962, %v4070
    %v4081 = vadd.f32 %v3963, %v4062
    %v4082 = vadd.f32 %v3964, %v4071
    %v4083 = vadd.f32 %v3965, %v4072
    %v4084 = vadd.f32 %v3966, %v4068
    %4091 = vrot.lane.b32.xlu0 %v4045, 96
    %v4092 = vpop.permute.xlu0 %4091
    %4093 = vrot.lane.b32.xlu0 %v4046, 96
    %v4094 = vpop.permute.xlu0 %4093
    %4095 = vrot.lane.b32.xlu0 %v4047, 96
    %v4096 = vpop.permute.xlu0 %4095
    %4097 = vrot.lane.b32.xlu0 %v4048, 96
    %v4098 = vpop.permute.xlu0 %4097
    %4099 = vrot.lane.b32.xlu0 %v4049, 96
    %v4100 = vpop.permute.xlu0 %4099
    %4101 = vrot.lane.b32.xlu0 %v4050, 96
    %v4102 = vpop.permute.xlu0 %4101
    %v4103 = vsel %vm590, %v4092, %v4094
    %v4104 = vsel %vm590, %v4094, %v4096
    %v4105 = vsel %vm590, %v4098, %v4100
    %v4106 = vsel %vm590, %v4100, %v4102
    %v4113 = vadd.f32 %v4011, %v4103
    %v4114 = vadd.f32 %v4012, %v4104
    %v4115 = vadd.f32 %v4013, %v4096
    %v4116 = vadd.f32 %v4014, %v4105
    %v4117 = vadd.f32 %v4015, %v4106
    %v4118 = vadd.f32 %v4016, %v4102
    %4125 = vrot.lane.b32.xlu0 %v3977, 96
    %v4126 = vpop.permute.xlu0 %4125
    %4127 = vrot.lane.b32.xlu0 %v3978, 96
    %v4128 = vpop.permute.xlu0 %4127
    %4129 = vrot.lane.b32.xlu0 %v3979, 96
    %v4130 = vpop.permute.xlu0 %4129
    %4131 = vrot.lane.b32.xlu0 %v3980, 96
    %v4132 = vpop.permute.xlu0 %4131
    %4133 = vrot.lane.b32.xlu0 %v3981, 96
    %v4134 = vpop.permute.xlu0 %4133
    %4135 = vrot.lane.b32.xlu0 %v3982, 96
    %v4136 = vpop.permute.xlu0 %4135
    %v4137 = vsel %vm590, %v4126, %v4128
    %v4138 = vsel %vm590, %v4128, %v4130
    %v4139 = vsel %vm590, %v4132, %v4134
    %v4140 = vsel %vm590, %v4134, %v4136
    %v4147 = vadd.f32 %v4079, %v4137
    %v4148 = vadd.f32 %v4080, %v4138
    %v4149 = vadd.f32 %v4081, %v4130
    %v4150 = vadd.f32 %v4082, %v4139
    %v4151 = vadd.f32 %v4083, %v4140
    %v4152 = vadd.f32 %v4084, %v4136
    %4159 = vrot.lane.b32.xlu0 %v4147, 64
    %v4160 = vpop.permute.xlu0 %4159
    %4161 = vrot.lane.b32.xlu0 %v4148, 64
    %v4162 = vpop.permute.xlu0 %4161
    %4163 = vrot.lane.b32.xlu0 %v4149, 64
    %v4164 = vpop.permute.xlu0 %4163
    %4165 = vrot.lane.b32.xlu0 %v4150, 64
    %v4166 = vpop.permute.xlu0 %4165
    %4167 = vrot.lane.b32.xlu0 %v4151, 64
    %v4168 = vpop.permute.xlu0 %4167
    %4169 = vrot.lane.b32.xlu0 %v4152, 64
    %v4170 = vpop.permute.xlu0 %4169
    %v4171 = vsel %vm655, %v4160, %v4162
    %v4172 = vsel %vm655, %v4162, %v4164
    %v4173 = vsel %vm655, %v4166, %v4168
    %v4174 = vsel %vm655, %v4168, %v4170
    %v4181 = vadd.f32 %v4113, %v4171
    %v4182 = vadd.f32 %v4114, %v4172
    %v4183 = vadd.f32 %v4115, %v4164
    %v4184 = vadd.f32 %v4116, %v4173
    %v4185 = vadd.f32 %v4117, %v4174
    %v4186 = vadd.f32 %v4118, %v4170
    %v4187 = vadd.f32 %v3921, %v4181
    %v4188 = vadd.f32 %v3922, %v4182
    %v4189 = vadd.f32 %v3923, %v4183
    %v4190 = vadd.f32 %v3924, %v4184
    %v4191 = vadd.f32 %v3925, %v4185
    %v4192 = vadd.f32 %v3926, %v4186
    %s4193 = scalar_lea.vmem %s7, 6
    %v4194 = vld [vmem:[%s4193] ss:$8 sm:$0x3]
    %v4196 = vlaneseq
    %v4197 = vshrl.u32 %v4196, 7
    %v4198 = vsub.s32 0, %v4197
    %v4199 = vrot.slane %v4194, %v4198
    %v4200 = vlaneseq
    %v4201 = vshrl.u32 %v4200, 7
    %v4202 = vsub.s32 1, %v4201
    %v4203 = vrot.slane %v4194, %v4202
    %4204 = vrot.lane.b32.xlu0 %v4199, 6
    %v4205 = vpop.permute.xlu0 %4204
    %4206 = vrot.lane.b32.xlu0 %v4203, 6
    %v4207 = vpop.permute.xlu0 %4206
    %vm4208 = vcmask 48128
    %v4209 = vsel %vm4208, %v4205, %v4207
    %v4213 = vmul.f32 %v4187, %v4205
    %v4214 = vmul.f32 %v4188, %v4209
    %v4215 = vmul.f32 %v4189, %v4207
    %v4216 = vmul.f32 %v4190, %v4205
    %v4217 = vmul.f32 %v4191, %v4209
    %v4218 = vmul.f32 %v4192, %v4207
    %4225 = vrot.lane.b32.xlu0 %v1480, 127
    %v4226 = vpop.permute.xlu0 %4225
    %4227 = vrot.lane.b32.xlu0 %v1481, 127
    %v4228 = vpop.permute.xlu0 %4227
    %4229 = vrot.lane.b32.xlu0 %v1482, 127
    %v4230 = vpop.permute.xlu0 %4229
    %4231 = vrot.lane.b32.xlu0 %v1483, 127
    %v4232 = vpop.permute.xlu0 %4231
    %4233 = vrot.lane.b32.xlu0 %v1484, 127
    %v4234 = vpop.permute.xlu0 %4233
    %4235 = vrot.lane.b32.xlu0 %v1485, 127
    %v4236 = vpop.permute.xlu0 %4235
    %vm4237 = vcmask 1039360
    %v4238 = vsel %vm4237, %v4226, %v4228
    %v4239 = vsel %vm4237, %v4228, %v4230
    %v4240 = vsel %vm4237, %v4232, %v4234
    %v4241 = vsel %vm4237, %v4234, %v4236
    %v4246 = vadd.f32 %v930, %v4238
    %v4247 = vadd.f32 %v931, %v4239
    %v4248 = vadd.f32 %v932, %v4240
    %v4249 = vadd.f32 %v933, %v4241
    %4256 = vrot.lane.b32.xlu0 %v2557, 127
    %v4257 = vpop.permute.xlu0 %4256
    %4258 = vrot.lane.b32.xlu0 %v2558, 127
    %v4259 = vpop.permute.xlu0 %4258
    %4260 = vrot.lane.b32.xlu0 %v2559, 127
    %v4261 = vpop.permute.xlu0 %4260
    %4262 = vrot.lane.b32.xlu0 %v2560, 127
    %v4263 = vpop.permute.xlu0 %4262
    %4264 = vrot.lane.b32.xlu0 %v2561, 127
    %v4265 = vpop.permute.xlu0 %4264
    %4266 = vrot.lane.b32.xlu0 %v2562, 127
    %v4267 = vpop.permute.xlu0 %4266
    %v4268 = vsel %vm4237, %v4257, %v4259
    %v4269 = vsel %vm4237, %v4259, %v4261
    %v4270 = vsel %vm4237, %v4263, %v4265
    %v4271 = vsel %vm4237, %v4265, %v4267
    %v4278 = vadd.f32 %v2031, %v4268
    %v4279 = vadd.f32 %v2032, %v4269
    %v4280 = vadd.f32 %v2033, %v4261
    %v4281 = vadd.f32 %v2034, %v4270
    %v4282 = vadd.f32 %v2035, %v4271
    %v4283 = vadd.f32 %v2036, %v4267
    %4290 = vrot.lane.b32.xlu0 %v3661, 127
    %v4291 = vpop.permute.xlu0 %4290
    %4292 = vrot.lane.b32.xlu0 %v3662, 127
    %v4293 = vpop.permute.xlu0 %4292
    %4294 = vrot.lane.b32.xlu0 %v3663, 127
    %v4295 = vpop.permute.xlu0 %4294
    %4296 = vrot.lane.b32.xlu0 %v3664, 127
    %v4297 = vpop.permute.xlu0 %4296
    %4298 = vrot.lane.b32.xlu0 %v3665, 127
    %v4299 = vpop.permute.xlu0 %4298
    %4300 = vrot.lane.b32.xlu0 %v3666, 127
    %v4301 = vpop.permute.xlu0 %4300
    %v4302 = vsel %vm4237, %v4291, %v4293
    %v4303 = vsel %vm4237, %v4293, %v4295
    %v4304 = vsel %vm4237, %v4297, %v4299
    %v4305 = vsel %vm4237, %v4299, %v4301
    %v4312 = vadd.f32 %v3109, %v4302
    %v4313 = vadd.f32 %v3110, %v4303
    %v4314 = vadd.f32 %v3111, %v4295
    %v4315 = vadd.f32 %v3112, %v4304
    %v4316 = vadd.f32 %v3113, %v4305
    %v4317 = vadd.f32 %v3114, %v4301
    %4324 = vrot.lane.b32.xlu0 %v4278, 126
    %v4325 = vpop.permute.xlu0 %4324
    %4326 = vrot.lane.b32.xlu0 %v4279, 126
    %v4327 = vpop.permute.xlu0 %4326
    %4328 = vrot.lane.b32.xlu0 %v4280, 126
    %v4329 = vpop.permute.xlu0 %4328
    %4330 = vrot.lane.b32.xlu0 %v4281, 126
    %v4331 = vpop.permute.xlu0 %4330
    %4332 = vrot.lane.b32.xlu0 %v4282, 126
    %v4333 = vpop.permute.xlu0 %4332
    %4334 = vrot.lane.b32.xlu0 %v4283, 126
    %v4335 = vpop.permute.xlu0 %4334
    %vm4336 = vcmask 1031168
    %v4337 = vsel %vm4336, %v4325, %v4327
    %v4338 = vsel %vm4336, %v4327, %v4329
    %v4339 = vsel %vm4336, %v4331, %v4333
    %v4340 = vsel %vm4336, %v4333, %v4335
    %v4345 = vadd.f32 %v4246, %v4337
    %v4346 = vadd.f32 %v4247, %v4338
    %v4347 = vadd.f32 %v4248, %v4339
    %v4348 = vadd.f32 %v4249, %v4340
    %4355 = vrot.lane.b32.xlu0 %v4213, 126
    %v4356 = vpop.permute.xlu0 %4355
    %4357 = vrot.lane.b32.xlu0 %v4214, 126
    %v4358 = vpop.permute.xlu0 %4357
    %4359 = vrot.lane.b32.xlu0 %v4215, 126
    %v4360 = vpop.permute.xlu0 %4359
    %4361 = vrot.lane.b32.xlu0 %v4216, 126
    %v4362 = vpop.permute.xlu0 %4361
    %4363 = vrot.lane.b32.xlu0 %v4217, 126
    %v4364 = vpop.permute.xlu0 %4363
    %4365 = vrot.lane.b32.xlu0 %v4218, 126
    %v4366 = vpop.permute.xlu0 %4365
    %v4367 = vsel %vm4336, %v4356, %v4358
    %v4368 = vsel %vm4336, %v4358, %v4360
    %v4369 = vsel %vm4336, %v4362, %v4364
    %v4370 = vsel %vm4336, %v4364, %v4366
    %v4377 = vadd.f32 %v4312, %v4367
    %v4378 = vadd.f32 %v4313, %v4368
    %v4379 = vadd.f32 %v4314, %v4360
    %v4380 = vadd.f32 %v4315, %v4369
    %v4381 = vadd.f32 %v4316, %v4370
    %v4382 = vadd.f32 %v4317, %v4366
    %4389 = vrot.lane.b32.xlu0 %v4377, 124
    %v4390 = vpop.permute.xlu0 %4389
    %4391 = vrot.lane.b32.xlu0 %v4378, 124
    %v4392 = vpop.permute.xlu0 %4391
    %4393 = vrot.lane.b32.xlu0 %v4379, 124
    %v4394 = vpop.permute.xlu0 %4393
    %4395 = vrot.lane.b32.xlu0 %v4380, 124
    %v4396 = vpop.permute.xlu0 %4395
    %4397 = vrot.lane.b32.xlu0 %v4381, 124
    %v4398 = vpop.permute.xlu0 %4397
    %4399 = vrot.lane.b32.xlu0 %v4382, 124
    %v4400 = vpop.permute.xlu0 %4399
    %vm4401 = vcmask 1014784
    %v4402 = vsel %vm4401, %v4390, %v4392
    %v4403 = vsel %vm4401, %v4392, %v4394
    %v4404 = vsel %vm4401, %v4396, %v4398
    %v4405 = vsel %vm4401, %v4398, %v4400
    %v4410 = vadd.f32 %v4345, %v4402
    %v4411 = vadd.f32 %v4346, %v4403
    %v4412 = vadd.f32 %v4347, %v4404
    %v4413 = vadd.f32 %v4348, %v4405
    %s4414 = sld [smem:[#allocation2]]
    %v4415 = vstv %s4414
    %v4416 = vadd.f32 %v4410, %v4415
    %v4417 = vadd.f32 %v4411, %v4415
    %v4418 = vadd.f32 %v4412, %v4415
    %v4419 = vadd.f32 %v4413, %v4415
    %v4420 = vmul.f32 %v4416, 0.5
    %v4421 = vmul.f32 %v4417, 0.5
    %v4422 = vmul.f32 %v4418, 0.5
    %v4423 = vmul.f32 %v4419, 0.5
    %v4424 = vtanh.pop %v4420
    %v4425 = vtanh.pop %v4421
    %v4426 = vtanh.pop %v4422
    %v4427 = vtanh.pop %v4423
    %v4428 = vmul.f32 %v4424, 0.5
    %v4429 = vmul.f32 %v4425, 0.5
    %v4430 = vmul.f32 %v4426, 0.5
    %v4431 = vmul.f32 %v4427, 0.5
    %v4432 = vadd.f32 %v4428, 0.5
    %v4433 = vadd.f32 %v4429, 0.5
    %v4434 = vadd.f32 %v4430, 0.5
    %v4435 = vadd.f32 %v4431, 0.5
    %v4436 = vlaneseq
    %v4437 = vshrl.u32 %v4436, 7
    %v4438 = vsub.s32 0, %v4437
    %v4439 = vrot.slane %v4432, %v4438
    %v4440 = vlaneseq
    %v4441 = vshrl.u32 %v4440, 7
    %v4442 = vsub.s32 0, %v4441
    %v4443 = vrot.slane %v4433, %v4442
    %v4444 = vlaneseq
    %v4445 = vshrl.u32 %v4444, 7
    %v4446 = vsub.s32 0, %v4445
    %v4447 = vrot.slane %v4434, %v4446
    %v4448 = vlaneseq
    %v4449 = vshrl.u32 %v4448, 7
    %v4450 = vsub.s32 0, %v4449
    %v4451 = vrot.slane %v4435, %v4450
    %v4452 = vmul.f32 %v278, %v4439
    %v4453 = vmul.f32 %v279, %v4443
    %v4454 = vmul.f32 %v280, %v4439
    %v4455 = vmul.f32 %v281, %v4443
    %v4456 = vmul.f32 %v282, %v4439
    %v4457 = vmul.f32 %v283, %v4443
    %v4458 = vmul.f32 %v284, %v4439
    %v4459 = vmul.f32 %v285, %v4443
    %v4460 = vmul.f32 %v286, %v4447
    %v4461 = vmul.f32 %v287, %v4451
    %v4462 = vmul.f32 %v288, %v4447
    %v4463 = vmul.f32 %v289, %v4451
    %v4464 = vmul.f32 %v290, %v4447
    %v4465 = vmul.f32 %v291, %v4451
    %v4466 = vmul.f32 %v292, %v4447
    %v4467 = vmul.f32 %v293, %v4451
    %4468 = vst [vmem:[#allocation8] sm:$0xff] %v4452
    %4469 = vst [vmem:[#allocation8 + $0x8] sm:$0xff] %v4453
    %4470 = vst [vmem:[#allocation8 + $0x10] sm:$0xff] %v4454
    %4471 = vst [vmem:[#allocation8 + $0x18] sm:$0xff] %v4455
    %4472 = vst [vmem:[#allocation8 + $0x20] sm:$0xff] %v4456
    %4473 = vst [vmem:[#allocation8 + $0x28] sm:$0xff] %v4457
    %4474 = vst [vmem:[#allocation8 + $0x30] sm:$0xff] %v4458
    %4475 = vst [vmem:[#allocation8 + $0x38] sm:$0xff] %v4459
    %4476 = vst [vmem:[#allocation8 + $0x40] sm:$0xff] %v4460
    %4477 = vst [vmem:[#allocation8 + $0x48] sm:$0xff] %v4461
    %4478 = vst [vmem:[#allocation8 + $0x50] sm:$0xff] %v4462
    %4479 = vst [vmem:[#allocation8 + $0x58] sm:$0xff] %v4463
    %4480 = vst [vmem:[#allocation8 + $0x60] sm:$0xff] %v4464
    %4481 = vst [vmem:[#allocation8 + $0x68] sm:$0xff] %v4465
    %4482 = vst [vmem:[#allocation8 + $0x70] sm:$0xff] %v4466
    %4483 = vst [vmem:[#allocation8 + $0x78] sm:$0xff] %v4467
    // Predicated region
    $region42: #{tpu_custom_call.1} parent=1 // pred_check
      _
    $region43: #{tpu_custom_call.1} parent=1 // pred_check_branch
      %4485 = sbr.rel (0) target = $region45
    $region44: #{tpu_custom_call.1} parent=1 // pred_region
      %s4487 = ssub.s32 2048, 2048
      %4488 = vsyncadd [#allocation5], %s4487
      %s4489 = sshll.u32 [#allocation8], 4
      %s4490 = int_to_ptr.vmem [resolvable:$true] %s4489
      %4495 = dma.vmem_to_hbm [thread:$0]  %s4490, 2048, %s8, [#allocation5], 256, 256, 16
    $region45: #{tpu_custom_call.1} parent=1 // pred_fallthru
      _
    // Predicated region
    $region46: #{tpu_custom_call.1} parent=1 // pred_check
      _
    $region47: #{tpu_custom_call.1} parent=1 // pred_check_branch
      %4497 = sbr.rel (0) target = $region49
    $region48: #{tpu_custom_call.1} parent=1 // pred_region
      %4498 = dma.done [#allocation5], 2048
    $region49: #{tpu_custom_call.1} parent=1 // pred_fallthru
      _
    %4499 = vsyncpa [#allocation4], 1
    %4500 = vsyncpa [#allocation5], 1
    %4501 = vsyncpa [#allocation6], 1

</llo_original>
